<compile_context>
chip_gen: v6e
topology: v6e:2x2x1
jax: 0.10.0
libtpu: 0.0.40
codegen_flags: <defaults>
</compile_context>

<pallas_src>
import math

import jax
import jax.numpy as jnp
from jax import lax
from jax.experimental import pallas as pl
from jax.experimental.pallas import tpu as pltpu


_BF16 = jnp.bfloat16
_UNROLL_FULL_MAX = 16  # fully unroll the recurrence when seq <= this


# ----------------------------- in-kernel math helpers -----------------------
def _sigmoid(x):
    # sigmoid(x) = 0.5*(1+tanh(x/2)): single EUP tanh, no exp+divide chain.
    return 0.5 * (jnp.tanh(0.5 * x) + 1.0)


def _silu(x):
    return x * _sigmoid(x)


def _logsigmoid(x):
    # stable log(sigmoid(x)); element-wise path stays f32, so log(1+.) is fine.
    return jnp.minimum(x, 0.0) - jnp.log(1.0 + jnp.exp(-jnp.abs(x)))


def _gelu_tanh(x):
    # TODO(synk): PyTorch nn.GELU default is exact erf-GELU; tanh approximation
    # used for robust Mosaic lowering (small systematic deviation in the FFN).
    c = 0.7978845608028654  # sqrt(2/pi)
    return 0.5 * x * (1.0 + jnp.tanh(c * (x + 0.044715 * x * x * x)))


def _layernorm(v, g, eps=1e-5):
    # weight-only LayerNorm over the last (feature/lane) axis (bias=False).
    mu = jnp.mean(v, axis=-1, keepdims=True)
    var = jnp.mean((v - mu) ** 2, axis=-1, keepdims=True)
    return (v - mu) * jax.lax.rsqrt(var + eps) * g


def _slstm_step(raw_if, raw_zo, y_prev, c_prev, n_prev, m_prev, H):
    """Vanilla-backend sLSTM pointwise step (f32 element-wise state)."""
    iraw = raw_if[:, 0:H]
    fraw = raw_if[:, H:2 * H]
    zraw = raw_zo[:, 0:H]
    oraw = raw_zo[:, H:2 * H]
    logfplusm = m_prev + _logsigmoid(fraw)
    mnew = jnp.maximum(iraw, logfplusm)
    igate = jnp.exp(iraw - mnew)
    fgate = jnp.exp(logfplusm - mnew)
    cnew = fgate * c_prev + igate * jnp.tanh(zraw)
    nnew = fgate * n_prev + igate
    # Exact divide: this reciprocal sits in the recurrent feedback path (ynew
    # feeds y_prev @ R next step), so the approx-EUP form would compound.
    ynew = _sigmoid(oraw) * (cnew / nnew)
    return ynew, cnew, nnew, mnew


# ----------------------------- fused block-stack kernel ----------------------
def make_stack_kernel(num_heads, seq, batch):
    SB = seq * batch

    def kernel(x_hbm, inpw_hbm, inpb_hbm, ln1_ref, convw_ref, convb_ref,
               wif_ref, wzo_ref, rker_ref, gbias_ref, gng_ref, ln2_ref,
               wup_g_ref, wup_v_ref, wdn_ref, m_ref, mt_ref,
               postg_hbm, outw_hbm, outb_hbm,
               logits_ref,
               state_ref, wxif_ref, wxzo_ref, y_ref, xpad_ref):
        nb = pl.program_id(0)
        H = state_ref.shape[1]
        K = convw_ref.shape[1]
        DH = H // num_heads
        pad = (K - 1) * batch

        # --- block 0: fused input projection.  Weights/input DMA'd once into
        #     scoped VMEM (not resident across the NB loop); residual stream
        #     stays in the persistent state_ref scratch.
        @pl.when(nb == 0)
        def _():
            def first(xv, wv, bv):
                pltpu.sync_copy(x_hbm, xv)
                pltpu.sync_copy(inpw_hbm, wv)
                pltpu.sync_copy(inpb_hbm, bv)
                state_ref[...] = (
                    jnp.dot(xv[...].astype(_BF16), wv[...],
                            preferred_element_type=jnp.float32) + bv[...])
                # zero left-padding rows for the causal conv (written once).
                xpad_ref[0:pad, :] = jnp.zeros((pad, H), jnp.float32)

            pl.run_scoped(first,
                          pltpu.VMEM(x_hbm.shape, jnp.float32),
                          pltpu.VMEM(inpw_hbm.shape, _BF16),
                          pltpu.VMEM(inpb_hbm.shape, jnp.float32))

        state = state_ref[...]                                  # (SB, H) f32

        # ======================= sLSTM sub-block =======================
        xn = _layernorm(state, ln1_ref[0])                      # xlstm_norm

        # causal depthwise conv1d (kernel K, zero left padding) + SiLU.
        # Shifted taps are static sublane-aligned slices of the padded scratch.
        xpad_ref[pad:pad + SB, :] = xn
        cw = convw_ref[0]                                       # (K, H) f32
        conv = convb_ref[0] + cw[K - 1:K, :] * xn               # delay d = 0
        for d in range(1, K):
            off = (K - 1 - d) * batch                           # multiple of 8
            conv = conv + cw[K - 1 - d:K - d, :] * xpad_ref[off:off + SB, :]
        x_conv = _silu(conv)

        # headwise gate projections -> per-path scratch; bf16 MXU operands,
        # f32 accumulation.  (i,f from the conv path; z,o from the normed x.)
        # TODO(synk): use per-head matmuls on the block-diagonal structure once
        #   DH is padded to >=128 (NHx FLOP/DMA/VMEM reduction).
        gb = gbias_ref[0]                                       # (1, 4H) f32
        wxif_ref[...] = (
            jnp.dot(x_conv.astype(_BF16), wif_ref[0],
                    preferred_element_type=jnp.float32) + gb[:, 0:2 * H])
        wxzo_ref[...] = (
            jnp.dot(xn.astype(_BF16), wzo_ref[0],
                    preferred_element_type=jnp.float32) + gb[:, 2 * H:4 * H])

        # serial sLSTM recurrence (vanilla backend semantics).  Per-step R
        # matmul in bf16; element-wise state kept f32.
        # TODO(synk): keep R resident across timesteps via matmul_push_rhs /
        #   matmul_acc_lhs at production H.
        r_mat = rker_ref[0]                                     # (H, 4H) bf16
        y0 = jnp.zeros((batch, H), jnp.float32)
        c0 = jnp.zeros((batch, H), jnp.float32)
        n0 = jnp.zeros((batch, H), jnp.float32)
        # very negative m => first-step mnew == iraw ("all n == 0" branch).
        m0 = jnp.full((batch, H), -1e30, jnp.float32)

        def recur_step(row, carry):
            y_prev, c_prev, n_prev, m_prev = carry
            ry = jnp.dot(y_prev.astype(_BF16), r_mat,
                         preferred_element_type=jnp.float32)
            raw_if = wxif_ref[pl.ds(row, batch), :] + ry[:, 0:2 * H]
            raw_zo = wxzo_ref[pl.ds(row, batch), :] + ry[:, 2 * H:4 * H]
            ynew, cnew, nnew, mnew = _slstm_step(
                raw_if, raw_zo, y_prev, c_prev, n_prev, m_prev, H)
            y_ref[pl.ds(row, batch), :] = ynew
            return ynew, cnew, nnew, mnew

        if seq <= _UNROLL_FULL_MAX:
            # short static context: full unroll (static slices, scheduler
            # visibility across steps).
            carry = (y0, c0, n0, m0)
            for t in range(seq):
                carry = recur_step(t * batch, carry)
        else:
            # long context: bounded register pressure, sublane-aligned
            # dynamic slices.
            def body(t, carry):
                row = pl.multiple_of(t * batch, batch)
                return recur_step(row, carry)
            lax.fori_loop(0, seq, body, (y0, c0, n0, m0), unroll=4)

        # MultiHeadLayerNorm (group norm over head_dim per (t,b,head)),
        # weight-only affine.  Per-head reductions via precomputed one-hot
        # matmuls; large (SB,H) reductions in bf16, small (SB,NH) broadcast-
        # back matmuls kept f32 for exact centering.  Two-pass variance.
        yf = y_ref[...]                                         # (SB, H) f32
        M = m_ref[...]                                          # (H, NH) bf16
        MT = mt_ref[...]                                        # (NH, H) f32
        inv_dh = 1.0 / DH
        mean_h = jnp.dot(yf.astype(_BF16), M,
                         preferred_element_type=jnp.float32) * inv_dh
        mean_f = jnp.dot(mean_h, MT, preferred_element_type=jnp.float32)
        cen = yf - mean_f
        var_h = jnp.dot((cen * cen).astype(_BF16), M,
                        preferred_element_type=jnp.float32) * inv_dh
        var_f = jnp.dot(var_h, MT, preferred_element_type=jnp.float32)
        y_gn = cen * jax.lax.rsqrt(var_f + 1e-5) * gng_ref[0]

        state = state + y_gn                          # residual (dropout = id)

        # ======================= gated FFN sub-block ====================
        x2 = _layernorm(state, ln2_ref[0]).astype(_BF16)        # ffn_norm
        up_g = jnp.dot(x2, wup_g_ref[0], preferred_element_type=jnp.float32)
        up_v = jnp.dot(x2, wup_v_ref[0], preferred_element_type=jnp.float32)
        ffv = _gelu_tanh(up_g) * up_v
        down = jnp.dot(ffv.astype(_BF16), wdn_ref[0],
                       preferred_element_type=jnp.float32)
        state = state + down
        state_ref[...] = state

        # post_blocks_norm + last-timestep output projection, last block only;
        # head weights DMA'd into scoped VMEM (not resident across NB).
        @pl.when(nb == pl.num_programs(0) - 1)
        def _():
            def last(pg, ow, ob):
                pltpu.sync_copy(postg_hbm, pg)
                pltpu.sync_copy(outw_hbm, ow)
                pltpu.sync_copy(outb_hbm, ob)
                post = _layernorm(state, pg[...])
                last_rows = post[(seq - 1) * batch:seq * batch, :]   # (B, H)
                logits_ref[...] = (
                    jnp.dot(last_rows.astype(_BF16), ow[...],
                            preferred_element_type=jnp.float32) + ob[...])

            pl.run_scoped(last,
                          pltpu.VMEM(postg_hbm.shape, jnp.float32),
                          pltpu.VMEM(outw_hbm.shape, _BF16),
                          pltpu.VMEM(outb_hbm.shape, jnp.float32))

    return kernel


def xlstm_stack_fused(xt, params, num_heads, seq, batch):
    """xt: (S*Bp, In) time-major flattened input -> (Bp, O_padded) logits."""
    SB, In = xt.shape
    H = params["inp_w"].shape[1]
    NB = params["ln1"].shape[0]
    K = params["conv_w"].shape[1]
    FF = params["w_down"].shape[1]
    OP = params["out_w"].shape[1]
    NH = num_heads
    pad = (K - 1) * batch

    kernel = make_stack_kernel(num_heads=NH, seq=seq, batch=batch)

    return pl.pallas_call(
        kernel,
        out_shape=jax.ShapeDtypeStruct((batch, OP), jnp.float32),
        grid_spec=pltpu.PrefetchScalarGridSpec(
            num_scalar_prefetch=0,
            grid=(NB,),
            in_specs=[
                pl.BlockSpec(memory_space=pl.ANY),                    # x (flat)
                pl.BlockSpec(memory_space=pl.ANY),                    # in-proj W
                pl.BlockSpec(memory_space=pl.ANY),                    # in-proj b
                pl.BlockSpec((1, 1, H), lambda nb: (nb, 0, 0)),       # ln1 gamma
                pl.BlockSpec((1, K, H), lambda nb: (nb, 0, 0)),       # conv w
                pl.BlockSpec((1, 1, H), lambda nb: (nb, 0, 0)),       # conv b
                pl.BlockSpec((1, H, 2 * H), lambda nb: (nb, 0, 0)),   # W_[i|f]
                pl.BlockSpec((1, H, 2 * H), lambda nb: (nb, 0, 0)),   # W_[z|o]
                pl.BlockSpec((1, H, 4 * H), lambda nb: (nb, 0, 0)),   # recurrent R
                pl.BlockSpec((1, 1, 4 * H), lambda nb: (nb, 0, 0)),   # gate bias
                pl.BlockSpec((1, 1, H), lambda nb: (nb, 0, 0)),       # gn gamma
                pl.BlockSpec((1, 1, H), lambda nb: (nb, 0, 0)),       # ln2 gamma
                pl.BlockSpec((1, H, FF), lambda nb: (nb, 0, 0)),      # ffn up (act)
                pl.BlockSpec((1, H, FF), lambda nb: (nb, 0, 0)),      # ffn up (gate)
                pl.BlockSpec((1, FF, H), lambda nb: (nb, 0, 0)),      # ffn down
                pl.BlockSpec((H, NH), lambda nb: (0, 0)),             # gn one-hot M
                pl.BlockSpec((NH, H), lambda nb: (0, 0)),             # gn one-hot M^T
                pl.BlockSpec(memory_space=pl.ANY),                    # post-norm g
                pl.BlockSpec(memory_space=pl.ANY),                    # out-proj W
                pl.BlockSpec(memory_space=pl.ANY),                    # out-proj b
            ],
            out_specs=pl.BlockSpec((batch, OP), lambda nb: (0, 0)),
            scratch_shapes=[
                pltpu.VMEM((SB, H), jnp.float32),        # residual stream
                pltpu.VMEM((SB, 2 * H), jnp.float32),    # i/f pre-activations
                pltpu.VMEM((SB, 2 * H), jnp.float32),    # z/o pre-activations
                pltpu.VMEM((SB, H), jnp.float32),        # per-step cell outputs
                pltpu.VMEM((pad + SB, H), jnp.float32),  # zero-padded conv input
            ],
        ),
        compiler_params=pltpu.CompilerParams(
            dimension_semantics=("arbitrary",),
            # TODO(synk): per-generation limits at production shapes
            #   (~100MiB v5e/v6e, <=~56MiB v7x).
            vmem_limit_bytes=56 * 1024 * 1024),
    )(xt, params["inp_w"], params["inp_b"], params["ln1"], params["conv_w"],
      params["conv_b"], params["w_if"], params["w_zo"], params["r_full"],
      params["gate_b"], params["gn_g"], params["ln2"], params["w_up_g"],
      params["w_up_v"], params["w_down"], params["gn_M"], params["gn_MT"],
      params["post_g"], params["out_w"], params["out_b"])


# ----------------------------- full model forward ---------------------------
def xlstm_forward(x, params, num_heads, output_size):
    """x: (B, S, input_size) -> (B, output_size)."""
    B, S, In = x.shape
    Bp = ((B + 7) // 8) * 8        # sublane-aligned batch (pad rows are inert)
    xt = jnp.transpose(x, (1, 0, 2))                 # time-major (S, B, In)
    if Bp != B:
        xt = jnp.pad(xt, ((0, 0), (0, Bp - B), (0, 0)))
    xt = xt.reshape(S * Bp, In)
    # TODO(synk): on v7x, additionally shard batch tiles over the 2nd TC via a
    #   leading 'parallel' grid axis.
    logits = xlstm_stack_fused(xt, params, num_heads=num_heads, seq=S, batch=Bp)
    return logits[:B, :output_size]


# ----------------------------- deterministic parameter init ------------------
def init_params(key, In, H, NB, O, NH, K, FF):
    DH = H // NH
    OP = ((O + 127) // 128) * 128      # lane-dense padded logits width
    ks = jax.random.split(key, 10)

    def nrm(k, shp, s):
        return jax.random.normal(k, shp, jnp.float32) * s

    inp_w = nrm(ks[0], (In, H), 1.0 / math.sqrt(In))
    inp_b = jnp.zeros((1, H), jnp.float32)
    out_w = jnp.zeros((H, OP), jnp.float32).at[:, :O].set(
        nrm(ks[1], (H, O), 1.0 / math.sqrt(H)))
    out_b = jnp.zeros((1, OP), jnp.float32)

    # Headwise gate / recurrent weights (LinearHeadwiseExpand & per-head R),
    # gate order: i, f, z, o.
    gate_w = nrm(ks[2], (NB, 4, NH, DH, DH), 1.0 / math.sqrt(DH))
    rec_w = nrm(ks[3], (NB, 4, NH, DH, DH), 1.0 / math.sqrt(DH))

    def headwise_full(w):  # (NH, DH_out, DH_in) -> (H, H), used as x_flat @ W
        return jax.scipy.linalg.block_diag(*[w[h].T for h in range(NH)])
    # TODO(synk): keep per-head (NH,DH,*) weights (no dense block-diag) once
    #   DH is padded to >=128 and the kernel does per-head matmuls.

    w_if, w_zo, r_full = [], [], []
    for b in range(NB):
        wi = headwise_full(gate_w[b, 0])
        wf = headwise_full(gate_w[b, 1])
        wz = headwise_full(gate_w[b, 2])
        wo = headwise_full(gate_w[b, 3])
        w_if.append(jnp.concatenate([wi, wf], axis=1))
        w_zo.append(jnp.concatenate([wz, wo], axis=1))
        r_full.append(jnp.concatenate(
            [headwise_full(rec_w[b, g]) for g in range(4)], axis=1))
    w_if = jnp.stack(w_if)          # (NB, H, 2H)
    w_zo = jnp.stack(w_zo)          # (NB, H, 2H)
    r_full = jnp.stack(r_full)      # (NB, H, 4H)

    conv_w = nrm(ks[4], (NB, K, H), 1.0 / math.sqrt(K))
    conv_b = jnp.zeros((NB, 1, H), jnp.float32)

    # Gate bias layout [i | f | z | o]; forget-gate bias gets a block-dependent
    # power-law-style positive init (spirit of 'powerlaw_blockdependent').
    # TODO(synk): exact library powerlaw_blockdependent formula not reproduced.
    idx = jnp.arange(H, dtype=jnp.float32) / max(H - 1, 1)
    ib_all = nrm(ks[5], (NB, H), 0.1)
    gate_b = []
    for b in range(NB):
        ratio = b / (NB - 1) if NB > 1 else 0.0
        fb = 3.0 + 3.0 * idx ** (0.3 + 1.3 * ratio)
        gate_b.append(jnp.concatenate(
            [ib_all[b], fb, jnp.zeros((H,), jnp.float32),
             jnp.zeros((H,), jnp.float32)]))
    gate_b = jnp.stack(gate_b)[:, None, :]                    # (NB, 1, 4H)

    w_up = nrm(ks[6], (NB, H, 2 * FF), 1.0 / math.sqrt(H))
    w_up_g, w_up_v = w_up[:, :, :FF], w_up[:, :, FF:]         # act / gate halves
    w_down = nrm(ks[7], (NB, FF, H), 1.0 / math.sqrt(FF))

    # Hoisted group-norm per-head one-hot reduction matrices.
    gn_M = (jnp.arange(H)[:, None] // DH == jnp.arange(NH)[None, :]
            ).astype(jnp.float32)                              # (H, NH)
    gn_MT = jnp.transpose(gn_M)                                # (NH, H) keep f32

    ones_h = jnp.ones((NB, 1, H), jnp.float32)
    bf = lambda a: a.astype(jnp.bfloat16)
    return dict(
        inp_w=bf(inp_w), inp_b=inp_b, out_w=bf(out_w), out_b=out_b,
        ln1=ones_h, conv_w=conv_w, conv_b=conv_b,
        w_if=bf(w_if), w_zo=bf(w_zo), r_full=bf(r_full), gate_b=gate_b,
        gn_g=ones_h, ln2=ones_h,
        w_up_g=bf(w_up_g), w_up_v=bf(w_up_v), w_down=bf(w_down),
        post_g=jnp.ones((1, H), jnp.float32),
        gn_M=bf(gn_M), gn_MT=gn_MT,
    )


# ----------------------------- main ------------------------------------------
if __name__ == "__main__":
    # Small config consistent with xLSTMModel(input_size=6, hidden_size=32,
    # num_blocks=2, output_size=3, context_length=8, num_heads=4, conv1d=4,
    # proj_factor=1.3); batch=2.
    B, S, IN, H, NB, O, NH, K = 2, 8, 6, 32, 2, 3, 4, 4
    FF = int(math.ceil(1.3 * H / 64.0) * 64)  # proj_up dim rounded to 64 -> 64

    key = jax.random.PRNGKey(0)
    pkey, xkey = jax.random.split(key)
    params = init_params(pkey, IN, H, NB, O, NH, K, FF)
    x = jax.random.normal(xkey, (B, S, IN), jnp.float32)

    out = xlstm_forward(x, params, num_heads=NH, output_size=O)
    out = jax.block_until_ready(out)

    assert out.shape == (B, O), out.shape
    assert bool(jnp.all(jnp.isfinite(out)))
    print("KERNEL_OK")
</pallas_src>

<mosaic_0001>
module attributes {stable_mosaic.version = 11 : i64} {
  func.func @kernel(%arg0: i32, %arg1: memref<64x6xf32, #tpu.memory_space<any>>, %arg2: memref<6x32xbf16, #tpu.memory_space<any>>, %arg3: memref<1x32xf32, #tpu.memory_space<any>>, %arg4: memref<1x1x32xf32, #tpu.memory_space<vmem>>, %arg5: memref<1x4x32xf32, #tpu.memory_space<vmem>>, %arg6: memref<1x1x32xf32, #tpu.memory_space<vmem>>, %arg7: memref<1x32x64xbf16, #tpu.memory_space<vmem>>, %arg8: memref<1x32x64xbf16, #tpu.memory_space<vmem>>, %arg9: memref<1x32x128xbf16, #tpu.memory_space<vmem>>, %arg10: memref<1x1x128xf32, #tpu.memory_space<vmem>>, %arg11: memref<1x1x32xf32, #tpu.memory_space<vmem>>, %arg12: memref<1x1x32xf32, #tpu.memory_space<vmem>>, %arg13: memref<1x32x64xbf16, #tpu.memory_space<vmem>>, %arg14: memref<1x32x64xbf16, #tpu.memory_space<vmem>>, %arg15: memref<1x64x32xbf16, #tpu.memory_space<vmem>>, %arg16: memref<32x4xbf16, #tpu.memory_space<vmem>>, %arg17: memref<4x32xf32, #tpu.memory_space<vmem>>, %arg18: memref<1x32xf32, #tpu.memory_space<any>>, %arg19: memref<32x128xbf16, #tpu.memory_space<any>>, %arg20: memref<1x128xf32, #tpu.memory_space<any>>, %arg21: memref<8x128xf32, #tpu.memory_space<vmem>>, %arg22: memref<64x32xf32, #tpu.memory_space<vmem>>, %arg23: memref<64x64xf32, #tpu.memory_space<vmem>>, %arg24: memref<64x64xf32, #tpu.memory_space<vmem>>, %arg25: memref<64x32xf32, #tpu.memory_space<vmem>>, %arg26: memref<88x32xf32, #tpu.memory_space<vmem>>) attributes {dimension_semantics = [#tpu.dimension_semantics<arbitrary>], iteration_bounds = array<i64: 2>, scalar_prefetch = 0 : i64, scratch_operands = 5 : i64, tpu.core_type = #tpu.core_type<tc>, window_params = [{}, {}, {}, {transform_indices = @transform_3, window_bounds = array<i64: 1, 1, 32>}, {transform_indices = @transform_4, window_bounds = array<i64: 1, 4, 32>}, {transform_indices = @transform_5, window_bounds = array<i64: 1, 1, 32>}, {transform_indices = @transform_6, window_bounds = array<i64: 1, 32, 64>}, {transform_indices = @transform_7, window_bounds = array<i64: 1, 32, 64>}, {transform_indices = @transform_8, window_bounds = array<i64: 1, 32, 128>}, {transform_indices = @transform_9, window_bounds = array<i64: 1, 1, 128>}, {transform_indices = @transform_10, window_bounds = array<i64: 1, 1, 32>}, {transform_indices = @transform_11, window_bounds = array<i64: 1, 1, 32>}, {transform_indices = @transform_12, window_bounds = array<i64: 1, 32, 64>}, {transform_indices = @transform_13, window_bounds = array<i64: 1, 32, 64>}, {transform_indices = @transform_14, window_bounds = array<i64: 1, 64, 32>}, {pipeline_mode = #tpu.pipeline_mode<synchronous>, transform_indices = @transform_15, window_bounds = array<i64: 32, 4>}, {pipeline_mode = #tpu.pipeline_mode<synchronous>, transform_indices = @transform_16, window_bounds = array<i64: 4, 32>}, {}, {}, {}, {pipeline_mode = #tpu.pipeline_mode<synchronous>, transform_indices = @transform_20, window_bounds = array<i64: 8, 128>}]} {
    %c0_i32 = arith.constant 0 : i32
    %0 = arith.cmpi eq, %arg0, %c0_i32 : i32
    %1 = arith.extui %0 : i1 to i32
    %c0_i32_0 = arith.constant 0 : i32
    %2 = arith.cmpi ne, %1, %c0_i32_0 : i32
    scf.if %2 {
      "tpu.region"() ({
        %alloca = memref.alloca() : memref<64x6xf32, #tpu.memory_space<vmem>>
        %alloca_188 = memref.alloca() : memref<6x32xbf16, #tpu.memory_space<vmem>>
        %alloca_189 = memref.alloca() : memref<1x32xf32, #tpu.memory_space<vmem>>
        "tpu.region"() ({
          %521 = tpu.sem_alloc : memref<!tpu.dma_semaphore, #tpu.memory_space<semaphore_mem>>
          tpu.enqueue_dma source(%arg1 : memref<64x6xf32, #tpu.memory_space<any>>) target(%alloca : memref<64x6xf32, #tpu.memory_space<vmem>>) target_semaphore(%521 : memref<!tpu.dma_semaphore, #tpu.memory_space<semaphore_mem>>)
          tpu.wait_dma2 semaphore(%521 : memref<!tpu.dma_semaphore, #tpu.memory_space<semaphore_mem>>) src(%arg1 : memref<64x6xf32, #tpu.memory_space<any>>) dst(%alloca : memref<64x6xf32, #tpu.memory_space<vmem>>)
          tpu.yield
        }) : () -> ()
        "tpu.region"() ({
          %521 = tpu.sem_alloc : memref<!tpu.dma_semaphore, #tpu.memory_space<semaphore_mem>>
          tpu.enqueue_dma source(%arg2 : memref<6x32xbf16, #tpu.memory_space<any>>) target(%alloca_188 : memref<6x32xbf16, #tpu.memory_space<vmem>>) target_semaphore(%521 : memref<!tpu.dma_semaphore, #tpu.memory_space<semaphore_mem>>)
          tpu.wait_dma2 semaphore(%521 : memref<!tpu.dma_semaphore, #tpu.memory_space<semaphore_mem>>) src(%arg2 : memref<6x32xbf16, #tpu.memory_space<any>>) dst(%alloca_188 : memref<6x32xbf16, #tpu.memory_space<vmem>>)
          tpu.yield
        }) : () -> ()
        "tpu.region"() ({
          %521 = tpu.sem_alloc : memref<!tpu.dma_semaphore, #tpu.memory_space<semaphore_mem>>
          tpu.enqueue_dma source(%arg3 : memref<1x32xf32, #tpu.memory_space<any>>) target(%alloca_189 : memref<1x32xf32, #tpu.memory_space<vmem>>) target_semaphore(%521 : memref<!tpu.dma_semaphore, #tpu.memory_space<semaphore_mem>>)
          tpu.wait_dma2 semaphore(%521 : memref<!tpu.dma_semaphore, #tpu.memory_space<semaphore_mem>>) src(%arg3 : memref<1x32xf32, #tpu.memory_space<any>>) dst(%alloca_189 : memref<1x32xf32, #tpu.memory_space<vmem>>)
          tpu.yield
        }) : () -> ()
        %c0_190 = arith.constant 0 : index
        %c0_191 = arith.constant 0 : index
        %511 = vector.load %alloca[%c0_190, %c0_191] : memref<64x6xf32, #tpu.memory_space<vmem>>, vector<64x6xf32>
        %512 = arith.truncf %511 : vector<64x6xf32> to vector<64x6xbf16>
        %c0_192 = arith.constant 0 : index
        %c0_193 = arith.constant 0 : index
        %513 = vector.load %alloca_188[%c0_192, %c0_193] : memref<6x32xbf16, #tpu.memory_space<vmem>>, vector<6x32xbf16>
        %cst_194 = arith.constant dense<0.000000e+00> : vector<64x32xf32>
        %514 = tpu.matmul %512, %513, %cst_194 {dimension_numbers = #tpu.dot_dimension_numbers<[1], [0], [0], [1], [0, 0, 1, 1], [], []>} : vector<64x6xbf16>, vector<6x32xbf16>, vector<64x32xf32> -> vector<64x32xf32>
        %c0_195 = arith.constant 0 : index
        %c0_196 = arith.constant 0 : index
        %515 = vector.load %alloca_189[%c0_195, %c0_196] : memref<1x32xf32, #tpu.memory_space<vmem>>, vector<1x32xf32>
        %516 = vector.broadcast %515 : vector<1x32xf32> to vector<64x32xf32>
        %517 = arith.addf %514, %516 : vector<64x32xf32>
        %c0_197 = arith.constant 0 : index
        %c0_198 = arith.constant 0 : index
        %518 = vector.load %arg22[%c0_197, %c0_198] : memref<64x32xf32, #tpu.memory_space<vmem>>, vector<64x32xf32>
        tpu.vector_store %arg22[%c0_197, %c0_198], %517 {strides = array<i32>} : memref<64x32xf32, #tpu.memory_space<vmem>>, vector<64x32xf32>,
        %cst_199 = arith.constant 0.000000e+00 : f32
        %519 = vector.broadcast %cst_199 : f32 to vector<24x32xf32>
        %c0_200 = arith.constant 0 : index
        %c0_201 = arith.constant 0 : index
        %520 = vector.load %arg26[%c0_200, %c0_201] : memref<88x32xf32, #tpu.memory_space<vmem>>, vector<24x32xf32>
        tpu.vector_store %arg26[%c0_200, %c0_201], %519 {strides = array<i32>} : memref<88x32xf32, #tpu.memory_space<vmem>>, vector<24x32xf32>,
        tpu.yield
      }) : () -> ()
    } else {
    }
    %c0 = arith.constant 0 : index
    %c0_1 = arith.constant 0 : index
    %3 = vector.load %arg22[%c0, %c0_1] : memref<64x32xf32, #tpu.memory_space<vmem>>, vector<64x32xf32>
    %c0_2 = arith.constant 0 : index
    %c0_3 = arith.constant 0 : index
    %c0_4 = arith.constant 0 : index
    %4 = vector.load %arg4[%c0_2, %c0_3, %c0_4] : memref<1x1x32xf32, #tpu.memory_space<vmem>>, vector<1x1x32xf32>
    %5 = vector.shape_cast %4 : vector<1x1x32xf32> to vector<1x32xf32>
    %cst = arith.constant dense<0.000000e+00> : vector<64xf32>
    %6 = vector.multi_reduction <add>, %3, %cst [1] : vector<64x32xf32> to vector<64xf32>
    %7 = vector.shape_cast %6 : vector<64xf32> to vector<64x1xf32>
    %cst_5 = arith.constant 3.200000e+01 : f32
    %8 = vector.broadcast %cst_5 : f32 to vector<64x1xf32>
    %9 = arith.divf %7, %8 : vector<64x1xf32>
    %10 = vector.broadcast %9 : vector<64x1xf32> to vector<64x32xf32>
    %11 = arith.subf %3, %10 : vector<64x32xf32>
    %12 = arith.mulf %11, %11 : vector<64x32xf32>
    %cst_6 = arith.constant dense<0.000000e+00> : vector<64xf32>
    %13 = vector.multi_reduction <add>, %12, %cst_6 [1] : vector<64x32xf32> to vector<64xf32>
    %14 = vector.shape_cast %13 : vector<64xf32> to vector<64x1xf32>
    %cst_7 = arith.constant 3.200000e+01 : f32
    %15 = vector.broadcast %cst_7 : f32 to vector<64x1xf32>
    %16 = arith.divf %14, %15 : vector<64x1xf32>
    %17 = vector.broadcast %9 : vector<64x1xf32> to vector<64x32xf32>
    %18 = arith.subf %3, %17 : vector<64x32xf32>
    %cst_8 = arith.constant 9.99999974E-6 : f32
    %19 = vector.broadcast %cst_8 : f32 to vector<64x1xf32>
    %20 = arith.addf %16, %19 : vector<64x1xf32>
    %21 = math.rsqrt %20 : vector<64x1xf32>
    %22 = vector.broadcast %21 : vector<64x1xf32> to vector<64x32xf32>
    %23 = arith.mulf %18, %22 : vector<64x32xf32>
    %24 = vector.broadcast %5 : vector<1x32xf32> to vector<64x32xf32>
    %25 = arith.mulf %23, %24 : vector<64x32xf32>
    %c24 = arith.constant 24 : index
    %c0_9 = arith.constant 0 : index
    %26 = vector.load %arg26[%c24, %c0_9] : memref<88x32xf32, #tpu.memory_space<vmem>>, vector<64x32xf32>
    tpu.vector_store %arg26[%c24, %c0_9], %25 {strides = array<i32>} : memref<88x32xf32, #tpu.memory_space<vmem>>, vector<64x32xf32>,
    %c0_10 = arith.constant 0 : index
    %c0_11 = arith.constant 0 : index
    %c0_12 = arith.constant 0 : index
    %27 = vector.load %arg5[%c0_10, %c0_11, %c0_12] : memref<1x4x32xf32, #tpu.memory_space<vmem>>, vector<1x4x32xf32>
    %28 = vector.shape_cast %27 : vector<1x4x32xf32> to vector<4x32xf32>
    %c0_13 = arith.constant 0 : index
    %c0_14 = arith.constant 0 : index
    %c0_15 = arith.constant 0 : index
    %29 = vector.load %arg6[%c0_13, %c0_14, %c0_15] : memref<1x1x32xf32, #tpu.memory_space<vmem>>, vector<1x1x32xf32>
    %30 = vector.shape_cast %29 : vector<1x1x32xf32> to vector<1x32xf32>
    %31 = vector.extract_strided_slice %28 {offsets = [3, 0], sizes = [1, 32], strides = [1, 1]} : vector<4x32xf32> to vector<1x32xf32>
    %32 = vector.broadcast %31 : vector<1x32xf32> to vector<64x32xf32>
    %33 = arith.mulf %32, %25 : vector<64x32xf32>
    %34 = vector.broadcast %30 : vector<1x32xf32> to vector<64x32xf32>
    %35 = arith.addf %34, %33 : vector<64x32xf32>
    %36 = vector.extract_strided_slice %28 {offsets = [2, 0], sizes = [1, 32], strides = [1, 1]} : vector<4x32xf32> to vector<1x32xf32>
    %c16 = arith.constant 16 : index
    %c0_16 = arith.constant 0 : index
    %37 = vector.load %arg26[%c16, %c0_16] : memref<88x32xf32, #tpu.memory_space<vmem>>, vector<64x32xf32>
    %38 = vector.broadcast %36 : vector<1x32xf32> to vector<64x32xf32>
    %39 = arith.mulf %38, %37 : vector<64x32xf32>
    %40 = arith.addf %35, %39 : vector<64x32xf32>
    %41 = vector.extract_strided_slice %28 {offsets = [1, 0], sizes = [1, 32], strides = [1, 1]} : vector<4x32xf32> to vector<1x32xf32>
    %c8 = arith.constant 8 : index
    %c0_17 = arith.constant 0 : index
    %42 = vector.load %arg26[%c8, %c0_17] : memref<88x32xf32, #tpu.memory_space<vmem>>, vector<64x32xf32>
    %43 = vector.broadcast %41 : vector<1x32xf32> to vector<64x32xf32>
    %44 = arith.mulf %43, %42 : vector<64x32xf32>
    %45 = arith.addf %40, %44 : vector<64x32xf32>
    %46 = vector.extract_strided_slice %28 {offsets = [0, 0], sizes = [1, 32], strides = [1, 1]} : vector<4x32xf32> to vector<1x32xf32>
    %c0_18 = arith.constant 0 : index
    %c0_19 = arith.constant 0 : index
    %47 = vector.load %arg26[%c0_18, %c0_19] : memref<88x32xf32, #tpu.memory_space<vmem>>, vector<64x32xf32>
    %48 = vector.broadcast %46 : vector<1x32xf32> to vector<64x32xf32>
    %49 = arith.mulf %48, %47 : vector<64x32xf32>
    %50 = arith.addf %45, %49 : vector<64x32xf32>
    %cst_20 = arith.constant 5.000000e-01 : f32
    %51 = vector.broadcast %cst_20 : f32 to vector<64x32xf32>
    %52 = arith.mulf %51, %50 : vector<64x32xf32>
    %53 = math.tanh %52 : vector<64x32xf32>
    %cst_21 = arith.constant 1.000000e+00 : f32
    %54 = vector.broadcast %cst_21 : f32 to vector<64x32xf32>
    %55 = arith.addf %53, %54 : vector<64x32xf32>
    %cst_22 = arith.constant 5.000000e-01 : f32
    %56 = vector.broadcast %cst_22 : f32 to vector<64x32xf32>
    %57 = arith.mulf %56, %55 : vector<64x32xf32>
    %58 = arith.mulf %50, %57 : vector<64x32xf32>
    %c0_23 = arith.constant 0 : index
    %c0_24 = arith.constant 0 : index
    %c0_25 = arith.constant 0 : index
    %59 = vector.load %arg10[%c0_23, %c0_24, %c0_25] : memref<1x1x128xf32, #tpu.memory_space<vmem>>, vector<1x1x128xf32>
    %60 = vector.shape_cast %59 : vector<1x1x128xf32> to vector<1x128xf32>
    %61 = arith.truncf %58 : vector<64x32xf32> to vector<64x32xbf16>
    %c0_26 = arith.constant 0 : index
    %c0_27 = arith.constant 0 : index
    %c0_28 = arith.constant 0 : index
    %62 = vector.load %arg7[%c0_26, %c0_27, %c0_28] : memref<1x32x64xbf16, #tpu.memory_space<vmem>>, vector<1x32x64xbf16>
    %63 = vector.shape_cast %62 : vector<1x32x64xbf16> to vector<32x64xbf16>
    %cst_29 = arith.constant dense<0.000000e+00> : vector<64x64xf32>
    %64 = tpu.matmul %61, %63, %cst_29 {dimension_numbers = #tpu.dot_dimension_numbers<[1], [0], [0], [1], [0, 0, 1, 1], [], []>} : vector<64x32xbf16>, vector<32x64xbf16>, vector<64x64xf32> -> vector<64x64xf32>
    %65 = vector.extract_strided_slice %60 {offsets = [0, 0], sizes = [1, 64], strides = [1, 1]} : vector<1x128xf32> to vector<1x64xf32>
    %66 = vector.broadcast %65 : vector<1x64xf32> to vector<64x64xf32>
    %67 = arith.addf %64, %66 : vector<64x64xf32>
    %c0_30 = arith.constant 0 : index
    %c0_31 = arith.constant 0 : index
    %68 = vector.load %arg23[%c0_30, %c0_31] : memref<64x64xf32, #tpu.memory_space<vmem>>, vector<64x64xf32>
    tpu.vector_store %arg23[%c0_30, %c0_31], %67 {strides = array<i32>} : memref<64x64xf32, #tpu.memory_space<vmem>>, vector<64x64xf32>,
    %69 = arith.truncf %25 : vector<64x32xf32> to vector<64x32xbf16>
    %c0_32 = arith.constant 0 : index
    %c0_33 = arith.constant 0 : index
    %c0_34 = arith.constant 0 : index
    %70 = vector.load %arg8[%c0_32, %c0_33, %c0_34] : memref<1x32x64xbf16, #tpu.memory_space<vmem>>, vector<1x32x64xbf16>
    %71 = vector.shape_cast %70 : vector<1x32x64xbf16> to vector<32x64xbf16>
    %cst_35 = arith.constant dense<0.000000e+00> : vector<64x64xf32>
    %72 = tpu.matmul %69, %71, %cst_35 {dimension_numbers = #tpu.dot_dimension_numbers<[1], [0], [0], [1], [0, 0, 1, 1], [], []>} : vector<64x32xbf16>, vector<32x64xbf16>, vector<64x64xf32> -> vector<64x64xf32>
    %73 = vector.extract_strided_slice %60 {offsets = [0, 64], sizes = [1, 64], strides = [1, 1]} : vector<1x128xf32> to vector<1x64xf32>
    %74 = vector.broadcast %73 : vector<1x64xf32> to vector<64x64xf32>
    %75 = arith.addf %72, %74 : vector<64x64xf32>
    %c0_36 = arith.constant 0 : index
    %c0_37 = arith.constant 0 : index
    %76 = vector.load %arg24[%c0_36, %c0_37] : memref<64x64xf32, #tpu.memory_space<vmem>>, vector<64x64xf32>
    tpu.vector_store %arg24[%c0_36, %c0_37], %75 {strides = array<i32>} : memref<64x64xf32, #tpu.memory_space<vmem>>, vector<64x64xf32>,
    %c0_38 = arith.constant 0 : index
    %c0_39 = arith.constant 0 : index
    %c0_40 = arith.constant 0 : index
    %77 = vector.load %arg9[%c0_38, %c0_39, %c0_40] : memref<1x32x128xbf16, #tpu.memory_space<vmem>>, vector<1x32x128xbf16>
    %78 = vector.shape_cast %77 : vector<1x32x128xbf16> to vector<32x128xbf16>
    %cst_41 = arith.constant 0.000000e+00 : f32
    %79 = vector.broadcast %cst_41 : f32 to vector<8x32xf32>
    %cst_42 = arith.constant 0.000000e+00 : f32
    %80 = vector.broadcast %cst_42 : f32 to vector<8x32xf32>
    %cst_43 = arith.constant 0.000000e+00 : f32
    %81 = vector.broadcast %cst_43 : f32 to vector<8x32xf32>
    %cst_44 = arith.constant -1.000000e+30 : f32
    %82 = vector.broadcast %cst_44 : f32 to vector<8x32xf32>
    %83 = arith.truncf %79 : vector<8x32xf32> to vector<8x32xbf16>
    %cst_45 = arith.constant dense<0.000000e+00> : vector<8x128xf32>
    %84 = tpu.matmul %83, %78, %cst_45 {dimension_numbers = #tpu.dot_dimension_numbers<[1], [0], [0], [1], [0, 0, 1, 1], [], []>} : vector<8x32xbf16>, vector<32x128xbf16>, vector<8x128xf32> -> vector<8x128xf32>
    %c0_46 = arith.constant 0 : index
    %c0_47 = arith.constant 0 : index
    %85 = vector.load %arg23[%c0_46, %c0_47] : memref<64x64xf32, #tpu.memory_space<vmem>>, vector<8x64xf32>
    %86 = vector.extract_strided_slice %84 {offsets = [0, 0], sizes = [8, 64], strides = [1, 1]} : vector<8x128xf32> to vector<8x64xf32>
    %87 = arith.addf %85, %86 : vector<8x64xf32>
    %c0_48 = arith.constant 0 : index
    %c0_49 = arith.constant 0 : index
    %88 = vector.load %arg24[%c0_48, %c0_49] : memref<64x64xf32, #tpu.memory_space<vmem>>, vector<8x64xf32>
    %89 = vector.extract_strided_slice %84 {offsets = [0, 64], sizes = [8, 64], strides = [1, 1]} : vector<8x128xf32> to vector<8x64xf32>
    %90 = arith.addf %88, %89 : vector<8x64xf32>
    %91 = vector.extract_strided_slice %87 {offsets = [0, 0], sizes = [8, 32], strides = [1, 1]} : vector<8x64xf32> to vector<8x32xf32>
    %92 = vector.extract_strided_slice %87 {offsets = [0, 32], sizes = [8, 32], strides = [1, 1]} : vector<8x64xf32> to vector<8x32xf32>
    %93 = vector.extract_strided_slice %90 {offsets = [0, 0], sizes = [8, 32], strides = [1, 1]} : vector<8x64xf32> to vector<8x32xf32>
    %94 = vector.extract_strided_slice %90 {offsets = [0, 32], sizes = [8, 32], strides = [1, 1]} : vector<8x64xf32> to vector<8x32xf32>
    %cst_50 = arith.constant 0.000000e+00 : f32
    %95 = vector.broadcast %cst_50 : f32 to vector<8x32xf32>
    %96 = arith.minimumf %92, %95 : vector<8x32xf32>
    %97 = math.absf %92 : vector<8x32xf32>
    %cst_51 = arith.constant 0.000000e+00 : f32
    %98 = vector.broadcast %cst_51 : f32 to vector<8x32xf32>
    %99 = arith.subf %98, %97 : vector<8x32xf32>
    %100 = math.exp %99 : vector<8x32xf32>
    %cst_52 = arith.constant 1.000000e+00 : f32
    %101 = vector.broadcast %cst_52 : f32 to vector<8x32xf32>
    %102 = arith.addf %101, %100 : vector<8x32xf32>
    %103 = math.log %102 : vector<8x32xf32>
    %104 = arith.subf %96, %103 : vector<8x32xf32>
    %105 = arith.addf %82, %104 : vector<8x32xf32>
    %106 = arith.maximumf %91, %105 : vector<8x32xf32>
    %107 = arith.subf %91, %106 : vector<8x32xf32>
    %108 = math.exp %107 : vector<8x32xf32>
    %109 = arith.subf %105, %106 : vector<8x32xf32>
    %110 = math.exp %109 : vector<8x32xf32>
    %111 = arith.mulf %110, %80 : vector<8x32xf32>
    %112 = math.tanh %93 : vector<8x32xf32>
    %113 = arith.mulf %108, %112 : vector<8x32xf32>
    %114 = arith.addf %111, %113 : vector<8x32xf32>
    %115 = arith.mulf %110, %81 : vector<8x32xf32>
    %116 = arith.addf %115, %108 : vector<8x32xf32>
    %cst_53 = arith.constant 5.000000e-01 : f32
    %117 = vector.broadcast %cst_53 : f32 to vector<8x32xf32>
    %118 = arith.mulf %117, %94 : vector<8x32xf32>
    %119 = math.tanh %118 : vector<8x32xf32>
    %cst_54 = arith.constant 1.000000e+00 : f32
    %120 = vector.broadcast %cst_54 : f32 to vector<8x32xf32>
    %121 = arith.addf %119, %120 : vector<8x32xf32>
    %cst_55 = arith.constant 5.000000e-01 : f32
    %122 = vector.broadcast %cst_55 : f32 to vector<8x32xf32>
    %123 = arith.mulf %122, %121 : vector<8x32xf32>
    %124 = arith.divf %114, %116 : vector<8x32xf32>
    %125 = arith.mulf %123, %124 : vector<8x32xf32>
    %c0_56 = arith.constant 0 : index
    %c0_57 = arith.constant 0 : index
    %126 = vector.load %arg25[%c0_56, %c0_57] : memref<64x32xf32, #tpu.memory_space<vmem>>, vector<8x32xf32>
    tpu.vector_store %arg25[%c0_56, %c0_57], %125 {strides = array<i32>} : memref<64x32xf32, #tpu.memory_space<vmem>>, vector<8x32xf32>,
    %127 = arith.truncf %125 : vector<8x32xf32> to vector<8x32xbf16>
    %cst_58 = arith.constant dense<0.000000e+00> : vector<8x128xf32>
    %128 = tpu.matmul %127, %78, %cst_58 {dimension_numbers = #tpu.dot_dimension_numbers<[1], [0], [0], [1], [0, 0, 1, 1], [], []>} : vector<8x32xbf16>, vector<32x128xbf16>, vector<8x128xf32> -> vector<8x128xf32>
    %c8_59 = arith.constant 8 : index
    %c0_60 = arith.constant 0 : index
    %129 = vector.load %arg23[%c8_59, %c0_60] : memref<64x64xf32, #tpu.memory_space<vmem>>, vector<8x64xf32>
    %130 = vector.extract_strided_slice %128 {offsets = [0, 0], sizes = [8, 64], strides = [1, 1]} : vector<8x128xf32> to vector<8x64xf32>
    %131 = arith.addf %129, %130 : vector<8x64xf32>
    %c8_61 = arith.constant 8 : index
    %c0_62 = arith.constant 0 : index
    %132 = vector.load %arg24[%c8_61, %c0_62] : memref<64x64xf32, #tpu.memory_space<vmem>>, vector<8x64xf32>
    %133 = vector.extract_strided_slice %128 {offsets = [0, 64], sizes = [8, 64], strides = [1, 1]} : vector<8x128xf32> to vector<8x64xf32>
    %134 = arith.addf %132, %133 : vector<8x64xf32>
    %135 = vector.extract_strided_slice %131 {offsets = [0, 0], sizes = [8, 32], strides = [1, 1]} : vector<8x64xf32> to vector<8x32xf32>
    %136 = vector.extract_strided_slice %131 {offsets = [0, 32], sizes = [8, 32], strides = [1, 1]} : vector<8x64xf32> to vector<8x32xf32>
    %137 = vector.extract_strided_slice %134 {offsets = [0, 0], sizes = [8, 32], strides = [1, 1]} : vector<8x64xf32> to vector<8x32xf32>
    %138 = vector.extract_strided_slice %134 {offsets = [0, 32], sizes = [8, 32], strides = [1, 1]} : vector<8x64xf32> to vector<8x32xf32>
    %cst_63 = arith.constant 0.000000e+00 : f32
    %139 = vector.broadcast %cst_63 : f32 to vector<8x32xf32>
    %140 = arith.minimumf %136, %139 : vector<8x32xf32>
    %141 = math.absf %136 : vector<8x32xf32>
    %cst_64 = arith.constant 0.000000e+00 : f32
    %142 = vector.broadcast %cst_64 : f32 to vector<8x32xf32>
    %143 = arith.subf %142, %141 : vector<8x32xf32>
    %144 = math.exp %143 : vector<8x32xf32>
    %cst_65 = arith.constant 1.000000e+00 : f32
    %145 = vector.broadcast %cst_65 : f32 to vector<8x32xf32>
    %146 = arith.addf %145, %144 : vector<8x32xf32>
    %147 = math.log %146 : vector<8x32xf32>
    %148 = arith.subf %140, %147 : vector<8x32xf32>
    %149 = arith.addf %106, %148 : vector<8x32xf32>
    %150 = arith.maximumf %135, %149 : vector<8x32xf32>
    %151 = arith.subf %135, %150 : vector<8x32xf32>
    %152 = math.exp %151 : vector<8x32xf32>
    %153 = arith.subf %149, %150 : vector<8x32xf32>
    %154 = math.exp %153 : vector<8x32xf32>
    %155 = arith.mulf %154, %114 : vector<8x32xf32>
    %156 = math.tanh %137 : vector<8x32xf32>
    %157 = arith.mulf %152, %156 : vector<8x32xf32>
    %158 = arith.addf %155, %157 : vector<8x32xf32>
    %159 = arith.mulf %154, %116 : vector<8x32xf32>
    %160 = arith.addf %159, %152 : vector<8x32xf32>
    %cst_66 = arith.constant 5.000000e-01 : f32
    %161 = vector.broadcast %cst_66 : f32 to vector<8x32xf32>
    %162 = arith.mulf %161, %138 : vector<8x32xf32>
    %163 = math.tanh %162 : vector<8x32xf32>
    %cst_67 = arith.constant 1.000000e+00 : f32
    %164 = vector.broadcast %cst_67 : f32 to vector<8x32xf32>
    %165 = arith.addf %163, %164 : vector<8x32xf32>
    %cst_68 = arith.constant 5.000000e-01 : f32
    %166 = vector.broadcast %cst_68 : f32 to vector<8x32xf32>
    %167 = arith.mulf %166, %165 : vector<8x32xf32>
    %168 = arith.divf %158, %160 : vector<8x32xf32>
    %169 = arith.mulf %167, %168 : vector<8x32xf32>
    %c8_69 = arith.constant 8 : index
    %c0_70 = arith.constant 0 : index
    %170 = vector.load %arg25[%c8_69, %c0_70] : memref<64x32xf32, #tpu.memory_space<vmem>>, vector<8x32xf32>
    tpu.vector_store %arg25[%c8_69, %c0_70], %169 {strides = array<i32>} : memref<64x32xf32, #tpu.memory_space<vmem>>, vector<8x32xf32>,
    %171 = arith.truncf %169 : vector<8x32xf32> to vector<8x32xbf16>
    %cst_71 = arith.constant dense<0.000000e+00> : vector<8x128xf32>
    %172 = tpu.matmul %171, %78, %cst_71 {dimension_numbers = #tpu.dot_dimension_numbers<[1], [0], [0], [1], [0, 0, 1, 1], [], []>} : vector<8x32xbf16>, vector<32x128xbf16>, vector<8x128xf32> -> vector<8x128xf32>
    %c16_72 = arith.constant 16 : index
    %c0_73 = arith.constant 0 : index
    %173 = vector.load %arg23[%c16_72, %c0_73] : memref<64x64xf32, #tpu.memory_space<vmem>>, vector<8x64xf32>
    %174 = vector.extract_strided_slice %172 {offsets = [0, 0], sizes = [8, 64], strides = [1, 1]} : vector<8x128xf32> to vector<8x64xf32>
    %175 = arith.addf %173, %174 : vector<8x64xf32>
    %c16_74 = arith.constant 16 : index
    %c0_75 = arith.constant 0 : index
    %176 = vector.load %arg24[%c16_74, %c0_75] : memref<64x64xf32, #tpu.memory_space<vmem>>, vector<8x64xf32>
    %177 = vector.extract_strided_slice %172 {offsets = [0, 64], sizes = [8, 64], strides = [1, 1]} : vector<8x128xf32> to vector<8x64xf32>
    %178 = arith.addf %176, %177 : vector<8x64xf32>
    %179 = vector.extract_strided_slice %175 {offsets = [0, 0], sizes = [8, 32], strides = [1, 1]} : vector<8x64xf32> to vector<8x32xf32>
    %180 = vector.extract_strided_slice %175 {offsets = [0, 32], sizes = [8, 32], strides = [1, 1]} : vector<8x64xf32> to vector<8x32xf32>
    %181 = vector.extract_strided_slice %178 {offsets = [0, 0], sizes = [8, 32], strides = [1, 1]} : vector<8x64xf32> to vector<8x32xf32>
    %182 = vector.extract_strided_slice %178 {offsets = [0, 32], sizes = [8, 32], strides = [1, 1]} : vector<8x64xf32> to vector<8x32xf32>
    %cst_76 = arith.constant 0.000000e+00 : f32
    %183 = vector.broadcast %cst_76 : f32 to vector<8x32xf32>
    %184 = arith.minimumf %180, %183 : vector<8x32xf32>
    %185 = math.absf %180 : vector<8x32xf32>
    %cst_77 = arith.constant 0.000000e+00 : f32
    %186 = vector.broadcast %cst_77 : f32 to vector<8x32xf32>
    %187 = arith.subf %186, %185 : vector<8x32xf32>
    %188 = math.exp %187 : vector<8x32xf32>
    %cst_78 = arith.constant 1.000000e+00 : f32
    %189 = vector.broadcast %cst_78 : f32 to vector<8x32xf32>
    %190 = arith.addf %189, %188 : vector<8x32xf32>
    %191 = math.log %190 : vector<8x32xf32>
    %192 = arith.subf %184, %191 : vector<8x32xf32>
    %193 = arith.addf %150, %192 : vector<8x32xf32>
    %194 = arith.maximumf %179, %193 : vector<8x32xf32>
    %195 = arith.subf %179, %194 : vector<8x32xf32>
    %196 = math.exp %195 : vector<8x32xf32>
    %197 = arith.subf %193, %194 : vector<8x32xf32>
    %198 = math.exp %197 : vector<8x32xf32>
    %199 = arith.mulf %198, %158 : vector<8x32xf32>
    %200 = math.tanh %181 : vector<8x32xf32>
    %201 = arith.mulf %196, %200 : vector<8x32xf32>
    %202 = arith.addf %199, %201 : vector<8x32xf32>
    %203 = arith.mulf %198, %160 : vector<8x32xf32>
    %204 = arith.addf %203, %196 : vector<8x32xf32>
    %cst_79 = arith.constant 5.000000e-01 : f32
    %205 = vector.broadcast %cst_79 : f32 to vector<8x32xf32>
    %206 = arith.mulf %205, %182 : vector<8x32xf32>
    %207 = math.tanh %206 : vector<8x32xf32>
    %cst_80 = arith.constant 1.000000e+00 : f32
    %208 = vector.broadcast %cst_80 : f32 to vector<8x32xf32>
    %209 = arith.addf %207, %208 : vector<8x32xf32>
    %cst_81 = arith.constant 5.000000e-01 : f32
    %210 = vector.broadcast %cst_81 : f32 to vector<8x32xf32>
    %211 = arith.mulf %210, %209 : vector<8x32xf32>
    %212 = arith.divf %202, %204 : vector<8x32xf32>
    %213 = arith.mulf %211, %212 : vector<8x32xf32>
    %c16_82 = arith.constant 16 : index
    %c0_83 = arith.constant 0 : index
    %214 = vector.load %arg25[%c16_82, %c0_83] : memref<64x32xf32, #tpu.memory_space<vmem>>, vector<8x32xf32>
    tpu.vector_store %arg25[%c16_82, %c0_83], %213 {strides = array<i32>} : memref<64x32xf32, #tpu.memory_space<vmem>>, vector<8x32xf32>,
    %215 = arith.truncf %213 : vector<8x32xf32> to vector<8x32xbf16>
    %cst_84 = arith.constant dense<0.000000e+00> : vector<8x128xf32>
    %216 = tpu.matmul %215, %78, %cst_84 {dimension_numbers = #tpu.dot_dimension_numbers<[1], [0], [0], [1], [0, 0, 1, 1], [], []>} : vector<8x32xbf16>, vector<32x128xbf16>, vector<8x128xf32> -> vector<8x128xf32>
    %c24_85 = arith.constant 24 : index
    %c0_86 = arith.constant 0 : index
    %217 = vector.load %arg23[%c24_85, %c0_86] : memref<64x64xf32, #tpu.memory_space<vmem>>, vector<8x64xf32>
    %218 = vector.extract_strided_slice %216 {offsets = [0, 0], sizes = [8, 64], strides = [1, 1]} : vector<8x128xf32> to vector<8x64xf32>
    %219 = arith.addf %217, %218 : vector<8x64xf32>
    %c24_87 = arith.constant 24 : index
    %c0_88 = arith.constant 0 : index
    %220 = vector.load %arg24[%c24_87, %c0_88] : memref<64x64xf32, #tpu.memory_space<vmem>>, vector<8x64xf32>
    %221 = vector.extract_strided_slice %216 {offsets = [0, 64], sizes = [8, 64], strides = [1, 1]} : vector<8x128xf32> to vector<8x64xf32>
    %222 = arith.addf %220, %221 : vector<8x64xf32>
    %223 = vector.extract_strided_slice %219 {offsets = [0, 0], sizes = [8, 32], strides = [1, 1]} : vector<8x64xf32> to vector<8x32xf32>
    %224 = vector.extract_strided_slice %219 {offsets = [0, 32], sizes = [8, 32], strides = [1, 1]} : vector<8x64xf32> to vector<8x32xf32>
    %225 = vector.extract_strided_slice %222 {offsets = [0, 0], sizes = [8, 32], strides = [1, 1]} : vector<8x64xf32> to vector<8x32xf32>
    %226 = vector.extract_strided_slice %222 {offsets = [0, 32], sizes = [8, 32], strides = [1, 1]} : vector<8x64xf32> to vector<8x32xf32>
    %cst_89 = arith.constant 0.000000e+00 : f32
    %227 = vector.broadcast %cst_89 : f32 to vector<8x32xf32>
    %228 = arith.minimumf %224, %227 : vector<8x32xf32>
    %229 = math.absf %224 : vector<8x32xf32>
    %cst_90 = arith.constant 0.000000e+00 : f32
    %230 = vector.broadcast %cst_90 : f32 to vector<8x32xf32>
    %231 = arith.subf %230, %229 : vector<8x32xf32>
    %232 = math.exp %231 : vector<8x32xf32>
    %cst_91 = arith.constant 1.000000e+00 : f32
    %233 = vector.broadcast %cst_91 : f32 to vector<8x32xf32>
    %234 = arith.addf %233, %232 : vector<8x32xf32>
    %235 = math.log %234 : vector<8x32xf32>
    %236 = arith.subf %228, %235 : vector<8x32xf32>
    %237 = arith.addf %194, %236 : vector<8x32xf32>
    %238 = arith.maximumf %223, %237 : vector<8x32xf32>
    %239 = arith.subf %223, %238 : vector<8x32xf32>
    %240 = math.exp %239 : vector<8x32xf32>
    %241 = arith.subf %237, %238 : vector<8x32xf32>
    %242 = math.exp %241 : vector<8x32xf32>
    %243 = arith.mulf %242, %202 : vector<8x32xf32>
    %244 = math.tanh %225 : vector<8x32xf32>
    %245 = arith.mulf %240, %244 : vector<8x32xf32>
    %246 = arith.addf %243, %245 : vector<8x32xf32>
    %247 = arith.mulf %242, %204 : vector<8x32xf32>
    %248 = arith.addf %247, %240 : vector<8x32xf32>
    %cst_92 = arith.constant 5.000000e-01 : f32
    %249 = vector.broadcast %cst_92 : f32 to vector<8x32xf32>
    %250 = arith.mulf %249, %226 : vector<8x32xf32>
    %251 = math.tanh %250 : vector<8x32xf32>
    %cst_93 = arith.constant 1.000000e+00 : f32
    %252 = vector.broadcast %cst_93 : f32 to vector<8x32xf32>
    %253 = arith.addf %251, %252 : vector<8x32xf32>
    %cst_94 = arith.constant 5.000000e-01 : f32
    %254 = vector.broadcast %cst_94 : f32 to vector<8x32xf32>
    %255 = arith.mulf %254, %253 : vector<8x32xf32>
    %256 = arith.divf %246, %248 : vector<8x32xf32>
    %257 = arith.mulf %255, %256 : vector<8x32xf32>
    %c24_95 = arith.constant 24 : index
    %c0_96 = arith.constant 0 : index
    %258 = vector.load %arg25[%c24_95, %c0_96] : memref<64x32xf32, #tpu.memory_space<vmem>>, vector<8x32xf32>
    tpu.vector_store %arg25[%c24_95, %c0_96], %257 {strides = array<i32>} : memref<64x32xf32, #tpu.memory_space<vmem>>, vector<8x32xf32>,
    %259 = arith.truncf %257 : vector<8x32xf32> to vector<8x32xbf16>
    %cst_97 = arith.constant dense<0.000000e+00> : vector<8x128xf32>
    %260 = tpu.matmul %259, %78, %cst_97 {dimension_numbers = #tpu.dot_dimension_numbers<[1], [0], [0], [1], [0, 0, 1, 1], [], []>} : vector<8x32xbf16>, vector<32x128xbf16>, vector<8x128xf32> -> vector<8x128xf32>
    %c32 = arith.constant 32 : index
    %c0_98 = arith.constant 0 : index
    %261 = vector.load %arg23[%c32, %c0_98] : memref<64x64xf32, #tpu.memory_space<vmem>>, vector<8x64xf32>
    %262 = vector.extract_strided_slice %260 {offsets = [0, 0], sizes = [8, 64], strides = [1, 1]} : vector<8x128xf32> to vector<8x64xf32>
    %263 = arith.addf %261, %262 : vector<8x64xf32>
    %c32_99 = arith.constant 32 : index
    %c0_100 = arith.constant 0 : index
    %264 = vector.load %arg24[%c32_99, %c0_100] : memref<64x64xf32, #tpu.memory_space<vmem>>, vector<8x64xf32>
    %265 = vector.extract_strided_slice %260 {offsets = [0, 64], sizes = [8, 64], strides = [1, 1]} : vector<8x128xf32> to vector<8x64xf32>
    %266 = arith.addf %264, %265 : vector<8x64xf32>
    %267 = vector.extract_strided_slice %263 {offsets = [0, 0], sizes = [8, 32], strides = [1, 1]} : vector<8x64xf32> to vector<8x32xf32>
    %268 = vector.extract_strided_slice %263 {offsets = [0, 32], sizes = [8, 32], strides = [1, 1]} : vector<8x64xf32> to vector<8x32xf32>
    %269 = vector.extract_strided_slice %266 {offsets = [0, 0], sizes = [8, 32], strides = [1, 1]} : vector<8x64xf32> to vector<8x32xf32>
    %270 = vector.extract_strided_slice %266 {offsets = [0, 32], sizes = [8, 32], strides = [1, 1]} : vector<8x64xf32> to vector<8x32xf32>
    %cst_101 = arith.constant 0.000000e+00 : f32
    %271 = vector.broadcast %cst_101 : f32 to vector<8x32xf32>
    %272 = arith.minimumf %268, %271 : vector<8x32xf32>
    %273 = math.absf %268 : vector<8x32xf32>
    %cst_102 = arith.constant 0.000000e+00 : f32
    %274 = vector.broadcast %cst_102 : f32 to vector<8x32xf32>
    %275 = arith.subf %274, %273 : vector<8x32xf32>
    %276 = math.exp %275 : vector<8x32xf32>
    %cst_103 = arith.constant 1.000000e+00 : f32
    %277 = vector.broadcast %cst_103 : f32 to vector<8x32xf32>
    %278 = arith.addf %277, %276 : vector<8x32xf32>
    %279 = math.log %278 : vector<8x32xf32>
    %280 = arith.subf %272, %279 : vector<8x32xf32>
    %281 = arith.addf %238, %280 : vector<8x32xf32>
    %282 = arith.maximumf %267, %281 : vector<8x32xf32>
    %283 = arith.subf %267, %282 : vector<8x32xf32>
    %284 = math.exp %283 : vector<8x32xf32>
    %285 = arith.subf %281, %282 : vector<8x32xf32>
    %286 = math.exp %285 : vector<8x32xf32>
    %287 = arith.mulf %286, %246 : vector<8x32xf32>
    %288 = math.tanh %269 : vector<8x32xf32>
    %289 = arith.mulf %284, %288 : vector<8x32xf32>
    %290 = arith.addf %287, %289 : vector<8x32xf32>
    %291 = arith.mulf %286, %248 : vector<8x32xf32>
    %292 = arith.addf %291, %284 : vector<8x32xf32>
    %cst_104 = arith.constant 5.000000e-01 : f32
    %293 = vector.broadcast %cst_104 : f32 to vector<8x32xf32>
    %294 = arith.mulf %293, %270 : vector<8x32xf32>
    %295 = math.tanh %294 : vector<8x32xf32>
    %cst_105 = arith.constant 1.000000e+00 : f32
    %296 = vector.broadcast %cst_105 : f32 to vector<8x32xf32>
    %297 = arith.addf %295, %296 : vector<8x32xf32>
    %cst_106 = arith.constant 5.000000e-01 : f32
    %298 = vector.broadcast %cst_106 : f32 to vector<8x32xf32>
    %299 = arith.mulf %298, %297 : vector<8x32xf32>
    %300 = arith.divf %290, %292 : vector<8x32xf32>
    %301 = arith.mulf %299, %300 : vector<8x32xf32>
    %c32_107 = arith.constant 32 : index
    %c0_108 = arith.constant 0 : index
    %302 = vector.load %arg25[%c32_107, %c0_108] : memref<64x32xf32, #tpu.memory_space<vmem>>, vector<8x32xf32>
    tpu.vector_store %arg25[%c32_107, %c0_108], %301 {strides = array<i32>} : memref<64x32xf32, #tpu.memory_space<vmem>>, vector<8x32xf32>,
    %303 = arith.truncf %301 : vector<8x32xf32> to vector<8x32xbf16>
    %cst_109 = arith.constant dense<0.000000e+00> : vector<8x128xf32>
    %304 = tpu.matmul %303, %78, %cst_109 {dimension_numbers = #tpu.dot_dimension_numbers<[1], [0], [0], [1], [0, 0, 1, 1], [], []>} : vector<8x32xbf16>, vector<32x128xbf16>, vector<8x128xf32> -> vector<8x128xf32>
    %c40 = arith.constant 40 : index
    %c0_110 = arith.constant 0 : index
    %305 = vector.load %arg23[%c40, %c0_110] : memref<64x64xf32, #tpu.memory_space<vmem>>, vector<8x64xf32>
    %306 = vector.extract_strided_slice %304 {offsets = [0, 0], sizes = [8, 64], strides = [1, 1]} : vector<8x128xf32> to vector<8x64xf32>
    %307 = arith.addf %305, %306 : vector<8x64xf32>
    %c40_111 = arith.constant 40 : index
    %c0_112 = arith.constant 0 : index
    %308 = vector.load %arg24[%c40_111, %c0_112] : memref<64x64xf32, #tpu.memory_space<vmem>>, vector<8x64xf32>
    %309 = vector.extract_strided_slice %304 {offsets = [0, 64], sizes = [8, 64], strides = [1, 1]} : vector<8x128xf32> to vector<8x64xf32>
    %310 = arith.addf %308, %309 : vector<8x64xf32>
    %311 = vector.extract_strided_slice %307 {offsets = [0, 0], sizes = [8, 32], strides = [1, 1]} : vector<8x64xf32> to vector<8x32xf32>
    %312 = vector.extract_strided_slice %307 {offsets = [0, 32], sizes = [8, 32], strides = [1, 1]} : vector<8x64xf32> to vector<8x32xf32>
    %313 = vector.extract_strided_slice %310 {offsets = [0, 0], sizes = [8, 32], strides = [1, 1]} : vector<8x64xf32> to vector<8x32xf32>
    %314 = vector.extract_strided_slice %310 {offsets = [0, 32], sizes = [8, 32], strides = [1, 1]} : vector<8x64xf32> to vector<8x32xf32>
    %cst_113 = arith.constant 0.000000e+00 : f32
    %315 = vector.broadcast %cst_113 : f32 to vector<8x32xf32>
    %316 = arith.minimumf %312, %315 : vector<8x32xf32>
    %317 = math.absf %312 : vector<8x32xf32>
    %cst_114 = arith.constant 0.000000e+00 : f32
    %318 = vector.broadcast %cst_114 : f32 to vector<8x32xf32>
    %319 = arith.subf %318, %317 : vector<8x32xf32>
    %320 = math.exp %319 : vector<8x32xf32>
    %cst_115 = arith.constant 1.000000e+00 : f32
    %321 = vector.broadcast %cst_115 : f32 to vector<8x32xf32>
    %322 = arith.addf %321, %320 : vector<8x32xf32>
    %323 = math.log %322 : vector<8x32xf32>
    %324 = arith.subf %316, %323 : vector<8x32xf32>
    %325 = arith.addf %282, %324 : vector<8x32xf32>
    %326 = arith.maximumf %311, %325 : vector<8x32xf32>
    %327 = arith.subf %311, %326 : vector<8x32xf32>
    %328 = math.exp %327 : vector<8x32xf32>
    %329 = arith.subf %325, %326 : vector<8x32xf32>
    %330 = math.exp %329 : vector<8x32xf32>
    %331 = arith.mulf %330, %290 : vector<8x32xf32>
    %332 = math.tanh %313 : vector<8x32xf32>
    %333 = arith.mulf %328, %332 : vector<8x32xf32>
    %334 = arith.addf %331, %333 : vector<8x32xf32>
    %335 = arith.mulf %330, %292 : vector<8x32xf32>
    %336 = arith.addf %335, %328 : vector<8x32xf32>
    %cst_116 = arith.constant 5.000000e-01 : f32
    %337 = vector.broadcast %cst_116 : f32 to vector<8x32xf32>
    %338 = arith.mulf %337, %314 : vector<8x32xf32>
    %339 = math.tanh %338 : vector<8x32xf32>
    %cst_117 = arith.constant 1.000000e+00 : f32
    %340 = vector.broadcast %cst_117 : f32 to vector<8x32xf32>
    %341 = arith.addf %339, %340 : vector<8x32xf32>
    %cst_118 = arith.constant 5.000000e-01 : f32
    %342 = vector.broadcast %cst_118 : f32 to vector<8x32xf32>
    %343 = arith.mulf %342, %341 : vector<8x32xf32>
    %344 = arith.divf %334, %336 : vector<8x32xf32>
    %345 = arith.mulf %343, %344 : vector<8x32xf32>
    %c40_119 = arith.constant 40 : index
    %c0_120 = arith.constant 0 : index
    %346 = vector.load %arg25[%c40_119, %c0_120] : memref<64x32xf32, #tpu.memory_space<vmem>>, vector<8x32xf32>
    tpu.vector_store %arg25[%c40_119, %c0_120], %345 {strides = array<i32>} : memref<64x32xf32, #tpu.memory_space<vmem>>, vector<8x32xf32>,
    %347 = arith.truncf %345 : vector<8x32xf32> to vector<8x32xbf16>
    %cst_121 = arith.constant dense<0.000000e+00> : vector<8x128xf32>
    %348 = tpu.matmul %347, %78, %cst_121 {dimension_numbers = #tpu.dot_dimension_numbers<[1], [0], [0], [1], [0, 0, 1, 1], [], []>} : vector<8x32xbf16>, vector<32x128xbf16>, vector<8x128xf32> -> vector<8x128xf32>
    %c48 = arith.constant 48 : index
    %c0_122 = arith.constant 0 : index
    %349 = vector.load %arg23[%c48, %c0_122] : memref<64x64xf32, #tpu.memory_space<vmem>>, vector<8x64xf32>
    %350 = vector.extract_strided_slice %348 {offsets = [0, 0], sizes = [8, 64], strides = [1, 1]} : vector<8x128xf32> to vector<8x64xf32>
    %351 = arith.addf %349, %350 : vector<8x64xf32>
    %c48_123 = arith.constant 48 : index
    %c0_124 = arith.constant 0 : index
    %352 = vector.load %arg24[%c48_123, %c0_124] : memref<64x64xf32, #tpu.memory_space<vmem>>, vector<8x64xf32>
    %353 = vector.extract_strided_slice %348 {offsets = [0, 64], sizes = [8, 64], strides = [1, 1]} : vector<8x128xf32> to vector<8x64xf32>
    %354 = arith.addf %352, %353 : vector<8x64xf32>
    %355 = vector.extract_strided_slice %351 {offsets = [0, 0], sizes = [8, 32], strides = [1, 1]} : vector<8x64xf32> to vector<8x32xf32>
    %356 = vector.extract_strided_slice %351 {offsets = [0, 32], sizes = [8, 32], strides = [1, 1]} : vector<8x64xf32> to vector<8x32xf32>
    %357 = vector.extract_strided_slice %354 {offsets = [0, 0], sizes = [8, 32], strides = [1, 1]} : vector<8x64xf32> to vector<8x32xf32>
    %358 = vector.extract_strided_slice %354 {offsets = [0, 32], sizes = [8, 32], strides = [1, 1]} : vector<8x64xf32> to vector<8x32xf32>
    %cst_125 = arith.constant 0.000000e+00 : f32
    %359 = vector.broadcast %cst_125 : f32 to vector<8x32xf32>
    %360 = arith.minimumf %356, %359 : vector<8x32xf32>
    %361 = math.absf %356 : vector<8x32xf32>
    %cst_126 = arith.constant 0.000000e+00 : f32
    %362 = vector.broadcast %cst_126 : f32 to vector<8x32xf32>
    %363 = arith.subf %362, %361 : vector<8x32xf32>
    %364 = math.exp %363 : vector<8x32xf32>
    %cst_127 = arith.constant 1.000000e+00 : f32
    %365 = vector.broadcast %cst_127 : f32 to vector<8x32xf32>
    %366 = arith.addf %365, %364 : vector<8x32xf32>
    %367 = math.log %366 : vector<8x32xf32>
    %368 = arith.subf %360, %367 : vector<8x32xf32>
    %369 = arith.addf %326, %368 : vector<8x32xf32>
    %370 = arith.maximumf %355, %369 : vector<8x32xf32>
    %371 = arith.subf %355, %370 : vector<8x32xf32>
    %372 = math.exp %371 : vector<8x32xf32>
    %373 = arith.subf %369, %370 : vector<8x32xf32>
    %374 = math.exp %373 : vector<8x32xf32>
    %375 = arith.mulf %374, %334 : vector<8x32xf32>
    %376 = math.tanh %357 : vector<8x32xf32>
    %377 = arith.mulf %372, %376 : vector<8x32xf32>
    %378 = arith.addf %375, %377 : vector<8x32xf32>
    %379 = arith.mulf %374, %336 : vector<8x32xf32>
    %380 = arith.addf %379, %372 : vector<8x32xf32>
    %cst_128 = arith.constant 5.000000e-01 : f32
    %381 = vector.broadcast %cst_128 : f32 to vector<8x32xf32>
    %382 = arith.mulf %381, %358 : vector<8x32xf32>
    %383 = math.tanh %382 : vector<8x32xf32>
    %cst_129 = arith.constant 1.000000e+00 : f32
    %384 = vector.broadcast %cst_129 : f32 to vector<8x32xf32>
    %385 = arith.addf %383, %384 : vector<8x32xf32>
    %cst_130 = arith.constant 5.000000e-01 : f32
    %386 = vector.broadcast %cst_130 : f32 to vector<8x32xf32>
    %387 = arith.mulf %386, %385 : vector<8x32xf32>
    %388 = arith.divf %378, %380 : vector<8x32xf32>
    %389 = arith.mulf %387, %388 : vector<8x32xf32>
    %c48_131 = arith.constant 48 : index
    %c0_132 = arith.constant 0 : index
    %390 = vector.load %arg25[%c48_131, %c0_132] : memref<64x32xf32, #tpu.memory_space<vmem>>, vector<8x32xf32>
    tpu.vector_store %arg25[%c48_131, %c0_132], %389 {strides = array<i32>} : memref<64x32xf32, #tpu.memory_space<vmem>>, vector<8x32xf32>,
    %391 = arith.truncf %389 : vector<8x32xf32> to vector<8x32xbf16>
    %cst_133 = arith.constant dense<0.000000e+00> : vector<8x128xf32>
    %392 = tpu.matmul %391, %78, %cst_133 {dimension_numbers = #tpu.dot_dimension_numbers<[1], [0], [0], [1], [0, 0, 1, 1], [], []>} : vector<8x32xbf16>, vector<32x128xbf16>, vector<8x128xf32> -> vector<8x128xf32>
    %c56 = arith.constant 56 : index
    %c0_134 = arith.constant 0 : index
    %393 = vector.load %arg23[%c56, %c0_134] : memref<64x64xf32, #tpu.memory_space<vmem>>, vector<8x64xf32>
    %394 = vector.extract_strided_slice %392 {offsets = [0, 0], sizes = [8, 64], strides = [1, 1]} : vector<8x128xf32> to vector<8x64xf32>
    %395 = arith.addf %393, %394 : vector<8x64xf32>
    %c56_135 = arith.constant 56 : index
    %c0_136 = arith.constant 0 : index
    %396 = vector.load %arg24[%c56_135, %c0_136] : memref<64x64xf32, #tpu.memory_space<vmem>>, vector<8x64xf32>
    %397 = vector.extract_strided_slice %392 {offsets = [0, 64], sizes = [8, 64], strides = [1, 1]} : vector<8x128xf32> to vector<8x64xf32>
    %398 = arith.addf %396, %397 : vector<8x64xf32>
    %399 = vector.extract_strided_slice %395 {offsets = [0, 0], sizes = [8, 32], strides = [1, 1]} : vector<8x64xf32> to vector<8x32xf32>
    %400 = vector.extract_strided_slice %395 {offsets = [0, 32], sizes = [8, 32], strides = [1, 1]} : vector<8x64xf32> to vector<8x32xf32>
    %401 = vector.extract_strided_slice %398 {offsets = [0, 0], sizes = [8, 32], strides = [1, 1]} : vector<8x64xf32> to vector<8x32xf32>
    %402 = vector.extract_strided_slice %398 {offsets = [0, 32], sizes = [8, 32], strides = [1, 1]} : vector<8x64xf32> to vector<8x32xf32>
    %cst_137 = arith.constant 0.000000e+00 : f32
    %403 = vector.broadcast %cst_137 : f32 to vector<8x32xf32>
    %404 = arith.minimumf %400, %403 : vector<8x32xf32>
    %405 = math.absf %400 : vector<8x32xf32>
    %cst_138 = arith.constant 0.000000e+00 : f32
    %406 = vector.broadcast %cst_138 : f32 to vector<8x32xf32>
    %407 = arith.subf %406, %405 : vector<8x32xf32>
    %408 = math.exp %407 : vector<8x32xf32>
    %cst_139 = arith.constant 1.000000e+00 : f32
    %409 = vector.broadcast %cst_139 : f32 to vector<8x32xf32>
    %410 = arith.addf %409, %408 : vector<8x32xf32>
    %411 = math.log %410 : vector<8x32xf32>
    %412 = arith.subf %404, %411 : vector<8x32xf32>
    %413 = arith.addf %370, %412 : vector<8x32xf32>
    %414 = arith.maximumf %399, %413 : vector<8x32xf32>
    %415 = arith.subf %399, %414 : vector<8x32xf32>
    %416 = math.exp %415 : vector<8x32xf32>
    %417 = arith.subf %413, %414 : vector<8x32xf32>
    %418 = math.exp %417 : vector<8x32xf32>
    %419 = arith.mulf %418, %378 : vector<8x32xf32>
    %420 = math.tanh %401 : vector<8x32xf32>
    %421 = arith.mulf %416, %420 : vector<8x32xf32>
    %422 = arith.addf %419, %421 : vector<8x32xf32>
    %423 = arith.mulf %418, %380 : vector<8x32xf32>
    %424 = arith.addf %423, %416 : vector<8x32xf32>
    %cst_140 = arith.constant 5.000000e-01 : f32
    %425 = vector.broadcast %cst_140 : f32 to vector<8x32xf32>
    %426 = arith.mulf %425, %402 : vector<8x32xf32>
    %427 = math.tanh %426 : vector<8x32xf32>
    %cst_141 = arith.constant 1.000000e+00 : f32
    %428 = vector.broadcast %cst_141 : f32 to vector<8x32xf32>
    %429 = arith.addf %427, %428 : vector<8x32xf32>
    %cst_142 = arith.constant 5.000000e-01 : f32
    %430 = vector.broadcast %cst_142 : f32 to vector<8x32xf32>
    %431 = arith.mulf %430, %429 : vector<8x32xf32>
    %432 = arith.divf %422, %424 : vector<8x32xf32>
    %433 = arith.mulf %431, %432 : vector<8x32xf32>
    %c56_143 = arith.constant 56 : index
    %c0_144 = arith.constant 0 : index
    %434 = vector.load %arg25[%c56_143, %c0_144] : memref<64x32xf32, #tpu.memory_space<vmem>>, vector<8x32xf32>
    tpu.vector_store %arg25[%c56_143, %c0_144], %433 {strides = array<i32>} : memref<64x32xf32, #tpu.memory_space<vmem>>, vector<8x32xf32>,
    %c0_145 = arith.constant 0 : index
    %c0_146 = arith.constant 0 : index
    %435 = vector.load %arg25[%c0_145, %c0_146] : memref<64x32xf32, #tpu.memory_space<vmem>>, vector<64x32xf32>
    %c0_147 = arith.constant 0 : index
    %c0_148 = arith.constant 0 : index
    %436 = vector.load %arg16[%c0_147, %c0_148] : memref<32x4xbf16, #tpu.memory_space<vmem>>, vector<32x4xbf16>
    %c0_149 = arith.constant 0 : index
    %c0_150 = arith.constant 0 : index
    %437 = vector.load %arg17[%c0_149, %c0_150] : memref<4x32xf32, #tpu.memory_space<vmem>>, vector<4x32xf32>
    %438 = arith.truncf %435 : vector<64x32xf32> to vector<64x32xbf16>
    %cst_151 = arith.constant dense<0.000000e+00> : vector<64x4xf32>
    %439 = tpu.matmul %438, %436, %cst_151 {dimension_numbers = #tpu.dot_dimension_numbers<[1], [0], [0], [1], [0, 0, 1, 1], [], []>} : vector<64x32xbf16>, vector<32x4xbf16>, vector<64x4xf32> -> vector<64x4xf32>
    %cst_152 = arith.constant 1.250000e-01 : f32
    %440 = vector.broadcast %cst_152 : f32 to vector<64x4xf32>
    %441 = arith.mulf %439, %440 : vector<64x4xf32>
    %cst_153 = arith.constant dense<0.000000e+00> : vector<64x32xf32>
    %442 = tpu.matmul %441, %437, %cst_153 {dimension_numbers = #tpu.dot_dimension_numbers<[1], [0], [0], [1], [0, 0, 1, 1], [], []>} : vector<64x4xf32>, vector<4x32xf32>, vector<64x32xf32> -> vector<64x32xf32>
    %443 = arith.subf %435, %442 : vector<64x32xf32>
    %444 = arith.mulf %443, %443 : vector<64x32xf32>
    %445 = arith.truncf %444 : vector<64x32xf32> to vector<64x32xbf16>
    %cst_154 = arith.constant dense<0.000000e+00> : vector<64x4xf32>
    %446 = tpu.matmul %445, %436, %cst_154 {dimension_numbers = #tpu.dot_dimension_numbers<[1], [0], [0], [1], [0, 0, 1, 1], [], []>} : vector<64x32xbf16>, vector<32x4xbf16>, vector<64x4xf32> -> vector<64x4xf32>
    %cst_155 = arith.constant 1.250000e-01 : f32
    %447 = vector.broadcast %cst_155 : f32 to vector<64x4xf32>
    %448 = arith.mulf %446, %447 : vector<64x4xf32>
    %cst_156 = arith.constant dense<0.000000e+00> : vector<64x32xf32>
    %449 = tpu.matmul %448, %437, %cst_156 {dimension_numbers = #tpu.dot_dimension_numbers<[1], [0], [0], [1], [0, 0, 1, 1], [], []>} : vector<64x4xf32>, vector<4x32xf32>, vector<64x32xf32> -> vector<64x32xf32>
    %cst_157 = arith.constant 9.99999974E-6 : f32
    %450 = vector.broadcast %cst_157 : f32 to vector<64x32xf32>
    %451 = arith.addf %449, %450 : vector<64x32xf32>
    %452 = math.rsqrt %451 : vector<64x32xf32>
    %453 = arith.mulf %443, %452 : vector<64x32xf32>
    %c0_158 = arith.constant 0 : index
    %c0_159 = arith.constant 0 : index
    %c0_160 = arith.constant 0 : index
    %454 = vector.load %arg11[%c0_158, %c0_159, %c0_160] : memref<1x1x32xf32, #tpu.memory_space<vmem>>, vector<1x1x32xf32>
    %455 = vector.shape_cast %454 : vector<1x1x32xf32> to vector<1x32xf32>
    %456 = vector.broadcast %455 : vector<1x32xf32> to vector<64x32xf32>
    %457 = arith.mulf %453, %456 : vector<64x32xf32>
    %458 = arith.addf %3, %457 : vector<64x32xf32>
    %c0_161 = arith.constant 0 : index
    %c0_162 = arith.constant 0 : index
    %c0_163 = arith.constant 0 : index
    %459 = vector.load %arg12[%c0_161, %c0_162, %c0_163] : memref<1x1x32xf32, #tpu.memory_space<vmem>>, vector<1x1x32xf32>
    %460 = vector.shape_cast %459 : vector<1x1x32xf32> to vector<1x32xf32>
    %cst_164 = arith.constant dense<0.000000e+00> : vector<64xf32>
    %461 = vector.multi_reduction <add>, %458, %cst_164 [1] : vector<64x32xf32> to vector<64xf32>
    %462 = vector.shape_cast %461 : vector<64xf32> to vector<64x1xf32>
    %cst_165 = arith.constant 3.200000e+01 : f32
    %463 = vector.broadcast %cst_165 : f32 to vector<64x1xf32>
    %464 = arith.divf %462, %463 : vector<64x1xf32>
    %465 = vector.broadcast %464 : vector<64x1xf32> to vector<64x32xf32>
    %466 = arith.subf %458, %465 : vector<64x32xf32>
    %467 = arith.mulf %466, %466 : vector<64x32xf32>
    %cst_166 = arith.constant dense<0.000000e+00> : vector<64xf32>
    %468 = vector.multi_reduction <add>, %467, %cst_166 [1] : vector<64x32xf32> to vector<64xf32>
    %469 = vector.shape_cast %468 : vector<64xf32> to vector<64x1xf32>
    %cst_167 = arith.constant 3.200000e+01 : f32
    %470 = vector.broadcast %cst_167 : f32 to vector<64x1xf32>
    %471 = arith.divf %469, %470 : vector<64x1xf32>
    %472 = vector.broadcast %464 : vector<64x1xf32> to vector<64x32xf32>
    %473 = arith.subf %458, %472 : vector<64x32xf32>
    %cst_168 = arith.constant 9.99999974E-6 : f32
    %474 = vector.broadcast %cst_168 : f32 to vector<64x1xf32>
    %475 = arith.addf %471, %474 : vector<64x1xf32>
    %476 = math.rsqrt %475 : vector<64x1xf32>
    %477 = vector.broadcast %476 : vector<64x1xf32> to vector<64x32xf32>
    %478 = arith.mulf %473, %477 : vector<64x32xf32>
    %479 = vector.broadcast %460 : vector<1x32xf32> to vector<64x32xf32>
    %480 = arith.mulf %478, %479 : vector<64x32xf32>
    %481 = arith.truncf %480 : vector<64x32xf32> to vector<64x32xbf16>
    %c0_169 = arith.constant 0 : index
    %c0_170 = arith.constant 0 : index
    %c0_171 = arith.constant 0 : index
    %482 = vector.load %arg13[%c0_169, %c0_170, %c0_171] : memref<1x32x64xbf16, #tpu.memory_space<vmem>>, vector<1x32x64xbf16>
    %483 = vector.shape_cast %482 : vector<1x32x64xbf16> to vector<32x64xbf16>
    %cst_172 = arith.constant dense<0.000000e+00> : vector<64x64xf32>
    %484 = tpu.matmul %481, %483, %cst_172 {dimension_numbers = #tpu.dot_dimension_numbers<[1], [0], [0], [1], [0, 0, 1, 1], [], []>} : vector<64x32xbf16>, vector<32x64xbf16>, vector<64x64xf32> -> vector<64x64xf32>
    %c0_173 = arith.constant 0 : index
    %c0_174 = arith.constant 0 : index
    %c0_175 = arith.constant 0 : index
    %485 = vector.load %arg14[%c0_173, %c0_174, %c0_175] : memref<1x32x64xbf16, #tpu.memory_space<vmem>>, vector<1x32x64xbf16>
    %486 = vector.shape_cast %485 : vector<1x32x64xbf16> to vector<32x64xbf16>
    %cst_176 = arith.constant dense<0.000000e+00> : vector<64x64xf32>
    %487 = tpu.matmul %481, %486, %cst_176 {dimension_numbers = #tpu.dot_dimension_numbers<[1], [0], [0], [1], [0, 0, 1, 1], [], []>} : vector<64x32xbf16>, vector<32x64xbf16>, vector<64x64xf32> -> vector<64x64xf32>
    %cst_177 = arith.constant 5.000000e-01 : f32
    %488 = vector.broadcast %cst_177 : f32 to vector<64x64xf32>
    %489 = arith.mulf %488, %484 : vector<64x64xf32>
    %cst_178 = arith.constant 4.471500e-02 : f32
    %490 = vector.broadcast %cst_178 : f32 to vector<64x64xf32>
    %491 = arith.mulf %490, %484 : vector<64x64xf32>
    %492 = arith.mulf %491, %484 : vector<64x64xf32>
    %493 = arith.mulf %492, %484 : vector<64x64xf32>
    %494 = arith.addf %484, %493 : vector<64x64xf32>
    %cst_179 = arith.constant 0.797884583 : f32
    %495 = vector.broadcast %cst_179 : f32 to vector<64x64xf32>
    %496 = arith.mulf %495, %494 : vector<64x64xf32>
    %497 = math.tanh %496 : vector<64x64xf32>
    %cst_180 = arith.constant 1.000000e+00 : f32
    %498 = vector.broadcast %cst_180 : f32 to vector<64x64xf32>
    %499 = arith.addf %498, %497 : vector<64x64xf32>
    %500 = arith.mulf %489, %499 : vector<64x64xf32>
    %501 = arith.mulf %500, %487 : vector<64x64xf32>
    %502 = arith.truncf %501 : vector<64x64xf32> to vector<64x64xbf16>
    %c0_181 = arith.constant 0 : index
    %c0_182 = arith.constant 0 : index
    %c0_183 = arith.constant 0 : index
    %503 = vector.load %arg15[%c0_181, %c0_182, %c0_183] : memref<1x64x32xbf16, #tpu.memory_space<vmem>>, vector<1x64x32xbf16>
    %504 = vector.shape_cast %503 : vector<1x64x32xbf16> to vector<64x32xbf16>
    %cst_184 = arith.constant dense<0.000000e+00> : vector<64x32xf32>
    %505 = tpu.matmul %502, %504, %cst_184 {dimension_numbers = #tpu.dot_dimension_numbers<[1], [0], [0], [1], [0, 0, 1, 1], [], []>} : vector<64x64xbf16>, vector<64x32xbf16>, vector<64x32xf32> -> vector<64x32xf32>
    %506 = arith.addf %458, %505 : vector<64x32xf32>
    %c0_185 = arith.constant 0 : index
    %c0_186 = arith.constant 0 : index
    %507 = vector.load %arg22[%c0_185, %c0_186] : memref<64x32xf32, #tpu.memory_space<vmem>>, vector<64x32xf32>
    tpu.vector_store %arg22[%c0_185, %c0_186], %506 {strides = array<i32>} : memref<64x32xf32, #tpu.memory_space<vmem>>, vector<64x32xf32>,
    %c1_i32 = arith.constant 1 : i32
    %508 = arith.cmpi eq, %arg0, %c1_i32 : i32
    %509 = arith.extui %508 : i1 to i32
    %c0_i32_187 = arith.constant 0 : i32
    %510 = arith.cmpi ne, %509, %c0_i32_187 : i32
    scf.if %510 {
      "tpu.region"() ({
        %alloca = memref.alloca() : memref<1x32xf32, #tpu.memory_space<vmem>>
        %alloca_188 = memref.alloca() : memref<32x128xbf16, #tpu.memory_space<vmem>>
        %alloca_189 = memref.alloca() : memref<1x128xf32, #tpu.memory_space<vmem>>
        "tpu.region"() ({
          %540 = tpu.sem_alloc : memref<!tpu.dma_semaphore, #tpu.memory_space<semaphore_mem>>
          tpu.enqueue_dma source(%arg18 : memref<1x32xf32, #tpu.memory_space<any>>) target(%alloca : memref<1x32xf32, #tpu.memory_space<vmem>>) target_semaphore(%540 : memref<!tpu.dma_semaphore, #tpu.memory_space<semaphore_mem>>)
          tpu.wait_dma2 semaphore(%540 : memref<!tpu.dma_semaphore, #tpu.memory_space<semaphore_mem>>) src(%arg18 : memref<1x32xf32, #tpu.memory_space<any>>) dst(%alloca : memref<1x32xf32, #tpu.memory_space<vmem>>)
          tpu.yield
        }) : () -> ()
        "tpu.region"() ({
          %540 = tpu.sem_alloc : memref<!tpu.dma_semaphore, #tpu.memory_space<semaphore_mem>>
          tpu.enqueue_dma source(%arg19 : memref<32x128xbf16, #tpu.memory_space<any>>) target(%alloca_188 : memref<32x128xbf16, #tpu.memory_space<vmem>>) target_semaphore(%540 : memref<!tpu.dma_semaphore, #tpu.memory_space<semaphore_mem>>)
          tpu.wait_dma2 semaphore(%540 : memref<!tpu.dma_semaphore, #tpu.memory_space<semaphore_mem>>) src(%arg19 : memref<32x128xbf16, #tpu.memory_space<any>>) dst(%alloca_188 : memref<32x128xbf16, #tpu.memory_space<vmem>>)
          tpu.yield
        }) : () -> ()
        "tpu.region"() ({
          %540 = tpu.sem_alloc : memref<!tpu.dma_semaphore, #tpu.memory_space<semaphore_mem>>
          tpu.enqueue_dma source(%arg20 : memref<1x128xf32, #tpu.memory_space<any>>) target(%alloca_189 : memref<1x128xf32, #tpu.memory_space<vmem>>) target_semaphore(%540 : memref<!tpu.dma_semaphore, #tpu.memory_space<semaphore_mem>>)
          tpu.wait_dma2 semaphore(%540 : memref<!tpu.dma_semaphore, #tpu.memory_space<semaphore_mem>>) src(%arg20 : memref<1x128xf32, #tpu.memory_space<any>>) dst(%alloca_189 : memref<1x128xf32, #tpu.memory_space<vmem>>)
          tpu.yield
        }) : () -> ()
        %c0_190 = arith.constant 0 : index
        %c0_191 = arith.constant 0 : index
        %511 = vector.load %alloca[%c0_190, %c0_191] : memref<1x32xf32, #tpu.memory_space<vmem>>, vector<1x32xf32>
        %cst_192 = arith.constant dense<0.000000e+00> : vector<64xf32>
        %512 = vector.multi_reduction <add>, %506, %cst_192 [1] : vector<64x32xf32> to vector<64xf32>
        %513 = vector.shape_cast %512 : vector<64xf32> to vector<64x1xf32>
        %cst_193 = arith.constant 3.200000e+01 : f32
        %514 = vector.broadcast %cst_193 : f32 to vector<64x1xf32>
        %515 = arith.divf %513, %514 : vector<64x1xf32>
        %516 = vector.broadcast %515 : vector<64x1xf32> to vector<64x32xf32>
        %517 = arith.subf %506, %516 : vector<64x32xf32>
        %518 = arith.mulf %517, %517 : vector<64x32xf32>
        %cst_194 = arith.constant dense<0.000000e+00> : vector<64xf32>
        %519 = vector.multi_reduction <add>, %518, %cst_194 [1] : vector<64x32xf32> to vector<64xf32>
        %520 = vector.shape_cast %519 : vector<64xf32> to vector<64x1xf32>
        %cst_195 = arith.constant 3.200000e+01 : f32
        %521 = vector.broadcast %cst_195 : f32 to vector<64x1xf32>
        %522 = arith.divf %520, %521 : vector<64x1xf32>
        %523 = vector.broadcast %515 : vector<64x1xf32> to vector<64x32xf32>
        %524 = arith.subf %506, %523 : vector<64x32xf32>
        %cst_196 = arith.constant 9.99999974E-6 : f32
        %525 = vector.broadcast %cst_196 : f32 to vector<64x1xf32>
        %526 = arith.addf %522, %525 : vector<64x1xf32>
        %527 = math.rsqrt %526 : vector<64x1xf32>
        %528 = vector.broadcast %527 : vector<64x1xf32> to vector<64x32xf32>
        %529 = arith.mulf %524, %528 : vector<64x32xf32>
        %530 = vector.broadcast %511 : vector<1x32xf32> to vector<64x32xf32>
        %531 = arith.mulf %529, %530 : vector<64x32xf32>
        %532 = vector.extract_strided_slice %531 {offsets = [56, 0], sizes = [8, 32], strides = [1, 1]} : vector<64x32xf32> to vector<8x32xf32>
        %533 = arith.truncf %532 : vector<8x32xf32> to vector<8x32xbf16>
        %c0_197 = arith.constant 0 : index
        %c0_198 = arith.constant 0 : index
        %534 = vector.load %alloca_188[%c0_197, %c0_198] : memref<32x128xbf16, #tpu.memory_space<vmem>>, vector<32x128xbf16>
        %cst_199 = arith.constant dense<0.000000e+00> : vector<8x128xf32>
        %535 = tpu.matmul %533, %534, %cst_199 {dimension_numbers = #tpu.dot_dimension_numbers<[1], [0], [0], [1], [0, 0, 1, 1], [], []>} : vector<8x32xbf16>, vector<32x128xbf16>, vector<8x128xf32> -> vector<8x128xf32>
        %c0_200 = arith.constant 0 : index
        %c0_201 = arith.constant 0 : index
        %536 = vector.load %alloca_189[%c0_200, %c0_201] : memref<1x128xf32, #tpu.memory_space<vmem>>, vector<1x128xf32>
        %537 = vector.broadcast %536 : vector<1x128xf32> to vector<8x128xf32>
        %538 = arith.addf %535, %537 : vector<8x128xf32>
        %c0_202 = arith.constant 0 : index
        %c0_203 = arith.constant 0 : index
        %539 = vector.load %arg21[%c0_202, %c0_203] : memref<8x128xf32, #tpu.memory_space<vmem>>, vector<8x128xf32>
        tpu.vector_store %arg21[%c0_202, %c0_203], %538 {strides = array<i32>} : memref<8x128xf32, #tpu.memory_space<vmem>>, vector<8x128xf32>,
        tpu.yield
      }) : () -> ()
    } else {
    }
    return
  }
  func.func @transform_3(%arg0: i32) -> (i32, i32, i32) {
    %c0_i32 = arith.constant 0 : i32
    %c0_i32_0 = arith.constant 0 : i32
    %c0_i32_1 = arith.constant 0 : i32
    return %arg0, %c0_i32, %c0_i32_0 : i32, i32, i32
  }
  func.func @transform_4(%arg0: i32) -> (i32, i32, i32) {
    %c0_i32 = arith.constant 0 : i32
    %c0_i32_0 = arith.constant 0 : i32
    %c0_i32_1 = arith.constant 0 : i32
    return %arg0, %c0_i32, %c0_i32_0 : i32, i32, i32
  }
  func.func @transform_5(%arg0: i32) -> (i32, i32, i32) {
    %c0_i32 = arith.constant 0 : i32
    %c0_i32_0 = arith.constant 0 : i32
    %c0_i32_1 = arith.constant 0 : i32
    return %arg0, %c0_i32, %c0_i32_0 : i32, i32, i32
  }
  func.func @transform_6(%arg0: i32) -> (i32, i32, i32) {
    %c0_i32 = arith.constant 0 : i32
    %c0_i32_0 = arith.constant 0 : i32
    %c0_i32_1 = arith.constant 0 : i32
    return %arg0, %c0_i32, %c0_i32_0 : i32, i32, i32
  }
  func.func @transform_7(%arg0: i32) -> (i32, i32, i32) {
    %c0_i32 = arith.constant 0 : i32
    %c0_i32_0 = arith.constant 0 : i32
    %c0_i32_1 = arith.constant 0 : i32
    return %arg0, %c0_i32, %c0_i32_0 : i32, i32, i32
  }
  func.func @transform_8(%arg0: i32) -> (i32, i32, i32) {
    %c0_i32 = arith.constant 0 : i32
    %c0_i32_0 = arith.constant 0 : i32
    %c0_i32_1 = arith.constant 0 : i32
    return %arg0, %c0_i32, %c0_i32_0 : i32, i32, i32
  }
  func.func @transform_9(%arg0: i32) -> (i32, i32, i32) {
    %c0_i32 = arith.constant 0 : i32
    %c0_i32_0 = arith.constant 0 : i32
    %c0_i32_1 = arith.constant 0 : i32
    return %arg0, %c0_i32, %c0_i32_0 : i32, i32, i32
  }
  func.func @transform_10(%arg0: i32) -> (i32, i32, i32) {
    %c0_i32 = arith.constant 0 : i32
    %c0_i32_0 = arith.constant 0 : i32
    %c0_i32_1 = arith.constant 0 : i32
    return %arg0, %c0_i32, %c0_i32_0 : i32, i32, i32
  }
  func.func @transform_11(%arg0: i32) -> (i32, i32, i32) {
    %c0_i32 = arith.constant 0 : i32
    %c0_i32_0 = arith.constant 0 : i32
    %c0_i32_1 = arith.constant 0 : i32
    return %arg0, %c0_i32, %c0_i32_0 : i32, i32, i32
  }
  func.func @transform_12(%arg0: i32) -> (i32, i32, i32) {
    %c0_i32 = arith.constant 0 : i32
    %c0_i32_0 = arith.constant 0 : i32
    %c0_i32_1 = arith.constant 0 : i32
    return %arg0, %c0_i32, %c0_i32_0 : i32, i32, i32
  }
  func.func @transform_13(%arg0: i32) -> (i32, i32, i32) {
    %c0_i32 = arith.constant 0 : i32
    %c0_i32_0 = arith.constant 0 : i32
    %c0_i32_1 = arith.constant 0 : i32
    return %arg0, %c0_i32, %c0_i32_0 : i32, i32, i32
  }
  func.func @transform_14(%arg0: i32) -> (i32, i32, i32) {
    %c0_i32 = arith.constant 0 : i32
    %c0_i32_0 = arith.constant 0 : i32
    %c0_i32_1 = arith.constant 0 : i32
    return %arg0, %c0_i32, %c0_i32_0 : i32, i32, i32
  }
  func.func @transform_15(%arg0: i32) -> (i32, i32) {
    %c0_i32 = arith.constant 0 : i32
    %c0_i32_0 = arith.constant 0 : i32
    %c0_i32_1 = arith.constant 0 : i32
    return %c0_i32, %c0_i32_0 : i32, i32
  }
  func.func @transform_16(%arg0: i32) -> (i32, i32) {
    %c0_i32 = arith.constant 0 : i32
    %c0_i32_0 = arith.constant 0 : i32
    %c0_i32_1 = arith.constant 0 : i32
    return %c0_i32, %c0_i32_0 : i32, i32
  }
  func.func @transform_20(%arg0: i32) -> (i32, i32) {
    %c0_i32 = arith.constant 0 : i32
    %c0_i32_0 = arith.constant 0 : i32
    %c0_i32_1 = arith.constant 0 : i32
    return %c0_i32, %c0_i32_0 : i32, i32
  }
}

</mosaic_0001>

<llo_original>
// kernel: tpu_custom_call.1
$region0: #{tpu_custom_call.1}
  #allocation0 [shape = 'u32[]', space=smem, size = 0x4, offset = 0x4, fixed_abs, tag = 'smem constant byte address 0x4 - core index']
  #allocation1 [shape = 'u32[144,128]{1,0:T(1,128)}', space=vmem, size = 0x12000, scoped, tag = 'internal scratch']
  #allocation2 [shape = 'f32[64,32]{1,0:T(8,128)}', space=vmem, size = 0x8000, scoped, tag = 'scratch operand']
  #allocation3 [shape = 'f32[64,64]{1,0:T(8,128)}', space=vmem, size = 0x8000, scoped, tag = 'scratch operand']
  #allocation4 [shape = 'f32[64,64]{1,0:T(8,128)}', space=vmem, size = 0x8000, scoped, tag = 'scratch operand']
  #allocation5 [shape = 'f32[64,32]{1,0:T(8,128)}', space=vmem, size = 0x8000, scoped, tag = 'scratch operand']
  #allocation6 [shape = 'f32[88,32]{1,0:T(8,128)}', space=vmem, size = 0xb000, scoped, tag = 'scratch operand']
  #allocation23 [shape = 's32[]', space=sflag, size = 0x4, offset = 0, fixed_abs, tag = 'sflag constant byte address 0x0 - dummy sync flag']
  #allocation25 [shape = 's32[]', space=sflag, size = 0x4, offset = 0, fixed_abs, tag = 'sflag constant byte address 0x0 - dummy sync flag']
  #allocation26 [shape = 's32[]', space=sflag, size = 0x4, offset = 0, fixed_abs, tag = 'sflag constant byte address 0x0 - dummy sync flag']
  #allocation27 [shape = 'u32[]', space=smem, size = 0x4, offset = 0x44, fixed_abs, tag = 'smem constant byte address 0x44 - assertion arg 0']
  #allocation28 [shape = 'u32[]', space=smem, size = 0x4, offset = 0x48, fixed_abs, tag = 'smem constant byte address 0x48 - assertion arg 1']
  #allocation30 [shape = 's32[]', space=sflag, size = 0x4, offset = 0, fixed_abs, tag = 'sflag constant byte address 0x0 - dummy sync flag']
  #allocation35 [shape = 's32[]', space=sflag, size = 0x4, offset = 0, fixed_abs, tag = 'sflag constant byte address 0x0 - dummy sync flag']
  #allocation36 [shape = 's32[]', space=sflag, size = 0x4, offset = 0, fixed_abs, tag = 'sflag constant byte address 0x0 - dummy sync flag']
  #allocation38 [shape = 's32[]', space=sflag, size = 0x4, offset = 0, fixed_abs, tag = 'sflag constant byte address 0x0 - dummy sync flag']
  #allocation40 [shape = 's32[]', space=sflag, size = 0x4, offset = 0, fixed_abs, tag = 'sflag constant byte address 0x0 - dummy sync flag']
  %s0 = inlined_call_operand.vmem [shape: f32[64,6], index: 0, kind: input, shape index: {}]
  %s1 = inlined_call_operand.hbm [shape: bf16[6,32], index: 1, kind: input, shape index: {}]
  %s2 = inlined_call_operand.vmem [shape: f32[1,32], index: 2, kind: input, shape index: {}]
  %s3 = inlined_call_operand.hbm [shape: f32[2,1,32], index: 3, kind: input, shape index: {}]
  %s4 = inlined_call_operand.hbm [shape: f32[2,4,32], index: 4, kind: input, shape index: {}]
  %s5 = inlined_call_operand.hbm [shape: f32[2,1,32], index: 5, kind: input, shape index: {}]
  %s6 = inlined_call_operand.vmem [shape: bf16[2,32,64], index: 6, kind: input, shape index: {}]
  %s7 = inlined_call_operand.vmem [shape: bf16[2,32,64], index: 7, kind: input, shape index: {}]
  %s8 = inlined_call_operand.vmem [shape: bf16[2,32,128], index: 8, kind: input, shape index: {}]
  %s9 = inlined_call_operand.hbm [shape: f32[2,1,128], index: 9, kind: input, shape index: {}]
  %s10 = inlined_call_operand.hbm [shape: f32[2,1,32], index: 10, kind: input, shape index: {}]
  %s11 = inlined_call_operand.hbm [shape: f32[2,1,32], index: 11, kind: input, shape index: {}]
  %s12 = inlined_call_operand.vmem [shape: bf16[2,32,64], index: 12, kind: input, shape index: {}]
  %s13 = inlined_call_operand.vmem [shape: bf16[2,32,64], index: 13, kind: input, shape index: {}]
  %s14 = inlined_call_operand.vmem [shape: bf16[2,64,32], index: 14, kind: input, shape index: {}]
  %s15 = inlined_call_operand.vmem [shape: bf16[32,4], index: 15, kind: input, shape index: {}]
  %s16 = inlined_call_operand.vmem [shape: f32[4,32], index: 16, kind: input, shape index: {}]
  %s17 = inlined_call_operand.hbm [shape: f32[1,32], index: 17, kind: input, shape index: {}]
  %s18 = inlined_call_operand.vmem [shape: bf16[32,128], index: 18, kind: input, shape index: {}]
  %s19 = inlined_call_operand.vmem [shape: f32[1,128], index: 19, kind: input, shape index: {}]
  %s20 = inlined_call_operand.hbm [shape: f32[8,128], index: 20, kind: output, shape index: {}]
  %s21 = sld [smem:[#allocation0]]
  $region265: #{tpu_custom_call.1} parent=0
    _
  %s23 = ssub.s32 1, %s21
  %s24 = scalar_select 0, %s23, %s21
  $region1: #{tpu_custom_call.1} parent=0
    #allocation7 [shape = 'u8[1024]{0}', space=vmem, size = 0x400, scoped, tag = 'input window, operand 3']
    #allocation8 [shape = 's32[2]{0}', space=sflag, size = 0x8, scoped, tag = 'scoped memory for tpu_custom_call.1']
    #allocation9 [shape = 's32[2]{0}', space=sflag, size = 0x8, scoped, tag = 'scoped memory for tpu_custom_call.1']
    #allocation10 [shape = 'u8[4096]{0}', space=vmem, size = 0x1000, scoped, tag = 'input window, operand 4']
    #allocation11 [shape = 's32[2]{0}', space=sflag, size = 0x8, scoped, tag = 'scoped memory for tpu_custom_call.1']
    #allocation12 [shape = 'u8[1024]{0}', space=vmem, size = 0x400, scoped, tag = 'input window, operand 5']
    #allocation13 [shape = 'u8[1024]{0}', space=vmem, size = 0x400, scoped, tag = 'input window, operand 9']
    #allocation14 [shape = 's32[2]{0}', space=sflag, size = 0x8, scoped, tag = 'scoped memory for tpu_custom_call.1']
    #allocation15 [shape = 'u8[1024]{0}', space=vmem, size = 0x400, scoped, tag = 'input window, operand 10']
    #allocation16 [shape = 'u8[1024]{0}', space=vmem, size = 0x400, scoped, tag = 'input window, operand 11']
    #allocation17 [shape = 's32[2]{0}', space=sflag, size = 0x8, scoped, tag = 'scoped memory for tpu_custom_call.1']
    #allocation18 [shape = 'u8[4096]{0}', space=vmem, size = 0x1000, scoped, tag = 'output window, operand 0, single buffered']
    %25 = vsyncpa [#allocation8], 0
    %s26 = scalar_lea.sflag [#allocation8], 1
    %27 = vsyncpa %s26, 0
    %28 = vsyncpa [#allocation11], 0
    %s29 = scalar_lea.sflag [#allocation11], 1
    %30 = vsyncpa %s29, 0
    %31 = vsyncpa [#allocation14], 0
    %s32 = scalar_lea.sflag [#allocation14], 1
    %33 = vsyncpa %s32, 0
    %34 = vsyncpa [#allocation17], 0
    %s35 = scalar_lea.sflag [#allocation17], 1
    %36 = vsyncpa %s35, 0
    %37 = vsyncpa [#allocation9], 0
    loop: start=0, step=1, limit=4
    $region2: #{tpu_custom_call.1} parent=1 // loop_pre_header
      _
    $region3: #{tpu_custom_call.1} parent=1 // loop_header
      %s39 = sphi 0, %s43
      %p40 = scmp.ge.s32.totalorder %s39, 4
      %s49 = sphi 0, %s51
      %s52 = sphi 0, %s49
      %s53 = sphi 0, %s52
      %s69 = sphi 0, %s53
      %s75 = sphi 0, %s77
      %s78 = sphi 0, %s75
      %s79 = sphi 0, %s78
      %s95 = sphi 0, %s79
      %s101 = sphi 0, %s103
      %s104 = sphi 0, %s101
      %s105 = sphi 0, %s104
      %s121 = sphi 0, %s105
      %s127 = sphi 0, %s129
      %s130 = sphi 0, %s127
      %s131 = sphi 0, %s130
      %s147 = sphi 0, %s131
      %s153 = sphi 0, %s155
      %s156 = sphi 0, %s153
      %s157 = sphi 0, %s156
      %s173 = sphi 0, %s157
      %s179 = sphi 0, %s181
      %s182 = sphi 0, %s179
      %s183 = sphi 0, %s182
      %s199 = sphi 0, %s183
      %s205 = sphi 0, %s207
      %s208 = sphi 0, %s205
      %s209 = sphi 0, %s208
      %s225 = sphi 0, %s209
      %s231 = sphi 0, %s233
      %s234 = sphi 0, %s231
      %s235 = sphi 0, %s234
      %s251 = sphi 0, %s235
      %s257 = sphi 0, %s259
      %s260 = sphi 0, %s257
      %s261 = sphi 0, %s260
      %s277 = sphi 0, %s261
      %s283 = sphi 0, %s285
      %s286 = sphi 0, %s283
      %s287 = sphi 0, %s286
      %s303 = sphi 0, %s287
      %s309 = sphi 0, %s311
      %s312 = sphi 0, %s309
      %s313 = sphi 0, %s312
      %s329 = sphi 0, %s313
      %s335 = sphi 0, %s337
      %s338 = sphi 0, %s335
      %s339 = sphi 0, %s338
      %s355 = sphi 0, %s339
      %s359 = sphi 0, %s359
      %s361 = sphi 0, %s359
      %s362 = sphi 0, %s361
      %s376 = sphi 0, %s362
      %s380 = sphi 0, %s380
      %s382 = sphi 0, %s380
      %s383 = sphi 0, %s382
      %s397 = sphi 0, %s383
      %s401 = sphi 0, %s401
      %s403 = sphi 0, %s401
      %s404 = sphi 0, %s403
      %s418 = sphi 0, %s404
    $region4: #{tpu_custom_call.1} parent=1 // loop_header_branch
      %42 = sbr.rel (%p40) target = $region8
    $region5: #{tpu_custom_call.1} parent=1 // loop_body
      %s44 = ssub.s32 %s39, 1
      %s45 = ssub.s32 %s39, 2
      %s46 = sadd.s32 %s39, 1
      %s47 = ssub.s32 %s39, %s46
      %p48 = scmp.eq.s32.totalorder %s47, 0
      %s50 = sadd.s32 %s49, 1
      %s51 = scalar_select %p48, %s49, %s50
      %p54 = pneg %p48
      %p55 = scmp.eq.s32.totalorder %s39, 1
      %p56 = por %p54, %p55
      %p57 = scmp.ne.s32.totalorder %s49, %s52
      %p58 = scmp.eq.s32.totalorder %s39, 0
      %p59 = por %p57, %p58
      %p60 = scmp.ne.s32.totalorder %s49, %s52
      %p61 = scmp.eq.s32.totalorder %s44, 1
      %p62 = por %p60, %p61
      %p63 = scmp.ne.s32.totalorder %s52, %s53
      %p64 = scmp.eq.s32.totalorder %s44, 0
      %p65 = por %p63, %p64
      %p66 = scmp.ne.s32.totalorder %s52, %s53
      %p67 = scmp.eq.s32.totalorder %s45, 1
      %p68 = por %p66, %p67
      %p70 = scmp.ne.s32.totalorder %s53, %s69
      %p71 = scmp.eq.s32.totalorder %s45, 0
      %p72 = por %p70, %p71
      %s73 = ssub.s32 %s39, %s46
      %p74 = scmp.eq.s32.totalorder %s73, 0
      %s76 = sadd.s32 %s75, 1
      %s77 = scalar_select %p74, %s75, %s76
      %p80 = pneg %p74
      %p81 = scmp.eq.s32.totalorder %s39, 1
      %p82 = por %p80, %p81
      %p83 = scmp.ne.s32.totalorder %s75, %s78
      %p84 = scmp.eq.s32.totalorder %s39, 0
      %p85 = por %p83, %p84
      %p86 = scmp.ne.s32.totalorder %s75, %s78
      %p87 = scmp.eq.s32.totalorder %s44, 1
      %p88 = por %p86, %p87
      %p89 = scmp.ne.s32.totalorder %s78, %s79
      %p90 = scmp.eq.s32.totalorder %s44, 0
      %p91 = por %p89, %p90
      %p92 = scmp.ne.s32.totalorder %s78, %s79
      %p93 = scmp.eq.s32.totalorder %s45, 1
      %p94 = por %p92, %p93
      %p96 = scmp.ne.s32.totalorder %s79, %s95
      %p97 = scmp.eq.s32.totalorder %s45, 0
      %p98 = por %p96, %p97
      %s99 = ssub.s32 %s39, %s46
      %p100 = scmp.eq.s32.totalorder %s99, 0
      %s102 = sadd.s32 %s101, 1
      %s103 = scalar_select %p100, %s101, %s102
      %p106 = pneg %p100
      %p107 = scmp.eq.s32.totalorder %s39, 1
      %p108 = por %p106, %p107
      %p109 = scmp.ne.s32.totalorder %s101, %s104
      %p110 = scmp.eq.s32.totalorder %s39, 0
      %p111 = por %p109, %p110
      %p112 = scmp.ne.s32.totalorder %s101, %s104
      %p113 = scmp.eq.s32.totalorder %s44, 1
      %p114 = por %p112, %p113
      %p115 = scmp.ne.s32.totalorder %s104, %s105
      %p116 = scmp.eq.s32.totalorder %s44, 0
      %p117 = por %p115, %p116
      %p118 = scmp.ne.s32.totalorder %s104, %s105
      %p119 = scmp.eq.s32.totalorder %s45, 1
      %p120 = por %p118, %p119
      %p122 = scmp.ne.s32.totalorder %s105, %s121
      %p123 = scmp.eq.s32.totalorder %s45, 0
      %p124 = por %p122, %p123
      %s125 = ssub.s32 %s39, %s46
      %p126 = scmp.eq.s32.totalorder %s125, 0
      %s128 = sadd.s32 %s127, 1
      %s129 = scalar_select %p126, %s127, %s128
      %p132 = pneg %p126
      %p133 = scmp.eq.s32.totalorder %s39, 1
      %p134 = por %p132, %p133
      %p135 = scmp.ne.s32.totalorder %s127, %s130
      %p136 = scmp.eq.s32.totalorder %s39, 0
      %p137 = por %p135, %p136
      %p138 = scmp.ne.s32.totalorder %s127, %s130
      %p139 = scmp.eq.s32.totalorder %s44, 1
      %p140 = por %p138, %p139
      %p141 = scmp.ne.s32.totalorder %s130, %s131
      %p142 = scmp.eq.s32.totalorder %s44, 0
      %p143 = por %p141, %p142
      %p144 = scmp.ne.s32.totalorder %s130, %s131
      %p145 = scmp.eq.s32.totalorder %s45, 1
      %p146 = por %p144, %p145
      %p148 = scmp.ne.s32.totalorder %s131, %s147
      %p149 = scmp.eq.s32.totalorder %s45, 0
      %p150 = por %p148, %p149
      %s151 = ssub.s32 %s39, %s46
      %p152 = scmp.eq.s32.totalorder %s151, 0
      %s154 = sadd.s32 %s153, 1
      %s155 = scalar_select %p152, %s153, %s154
      %p158 = pneg %p152
      %p159 = scmp.eq.s32.totalorder %s39, 1
      %p160 = por %p158, %p159
      %p161 = scmp.ne.s32.totalorder %s153, %s156
      %p162 = scmp.eq.s32.totalorder %s39, 0
      %p163 = por %p161, %p162
      %p164 = scmp.ne.s32.totalorder %s153, %s156
      %p165 = scmp.eq.s32.totalorder %s44, 1
      %p166 = por %p164, %p165
      %p167 = scmp.ne.s32.totalorder %s156, %s157
      %p168 = scmp.eq.s32.totalorder %s44, 0
      %p169 = por %p167, %p168
      %p170 = scmp.ne.s32.totalorder %s156, %s157
      %p171 = scmp.eq.s32.totalorder %s45, 1
      %p172 = por %p170, %p171
      %p174 = scmp.ne.s32.totalorder %s157, %s173
      %p175 = scmp.eq.s32.totalorder %s45, 0
      %p176 = por %p174, %p175
      %s177 = ssub.s32 %s39, %s46
      %p178 = scmp.eq.s32.totalorder %s177, 0
      %s180 = sadd.s32 %s179, 1
      %s181 = scalar_select %p178, %s179, %s180
      %p184 = pneg %p178
      %p185 = scmp.eq.s32.totalorder %s39, 1
      %p186 = por %p184, %p185
      %p187 = scmp.ne.s32.totalorder %s179, %s182
      %p188 = scmp.eq.s32.totalorder %s39, 0
      %p189 = por %p187, %p188
      %p190 = scmp.ne.s32.totalorder %s179, %s182
      %p191 = scmp.eq.s32.totalorder %s44, 1
      %p192 = por %p190, %p191
      %p193 = scmp.ne.s32.totalorder %s182, %s183
      %p194 = scmp.eq.s32.totalorder %s44, 0
      %p195 = por %p193, %p194
      %p196 = scmp.ne.s32.totalorder %s182, %s183
      %p197 = scmp.eq.s32.totalorder %s45, 1
      %p198 = por %p196, %p197
      %p200 = scmp.ne.s32.totalorder %s183, %s199
      %p201 = scmp.eq.s32.totalorder %s45, 0
      %p202 = por %p200, %p201
      %s203 = ssub.s32 %s39, %s46
      %p204 = scmp.eq.s32.totalorder %s203, 0
      %s206 = sadd.s32 %s205, 1
      %s207 = scalar_select %p204, %s205, %s206
      %p210 = pneg %p204
      %p211 = scmp.eq.s32.totalorder %s39, 1
      %p212 = por %p210, %p211
      %p213 = scmp.ne.s32.totalorder %s205, %s208
      %p214 = scmp.eq.s32.totalorder %s39, 0
      %p215 = por %p213, %p214
      %p216 = scmp.ne.s32.totalorder %s205, %s208
      %p217 = scmp.eq.s32.totalorder %s44, 1
      %p218 = por %p216, %p217
      %p219 = scmp.ne.s32.totalorder %s208, %s209
      %p220 = scmp.eq.s32.totalorder %s44, 0
      %p221 = por %p219, %p220
      %p222 = scmp.ne.s32.totalorder %s208, %s209
      %p223 = scmp.eq.s32.totalorder %s45, 1
      %p224 = por %p222, %p223
      %p226 = scmp.ne.s32.totalorder %s209, %s225
      %p227 = scmp.eq.s32.totalorder %s45, 0
      %p228 = por %p226, %p227
      %s229 = ssub.s32 %s39, %s46
      %p230 = scmp.eq.s32.totalorder %s229, 0
      %s232 = sadd.s32 %s231, 1
      %s233 = scalar_select %p230, %s231, %s232
      %p236 = pneg %p230
      %p237 = scmp.eq.s32.totalorder %s39, 1
      %p238 = por %p236, %p237
      %p239 = scmp.ne.s32.totalorder %s231, %s234
      %p240 = scmp.eq.s32.totalorder %s39, 0
      %p241 = por %p239, %p240
      %p242 = scmp.ne.s32.totalorder %s231, %s234
      %p243 = scmp.eq.s32.totalorder %s44, 1
      %p244 = por %p242, %p243
      %p245 = scmp.ne.s32.totalorder %s234, %s235
      %p246 = scmp.eq.s32.totalorder %s44, 0
      %p247 = por %p245, %p246
      %p248 = scmp.ne.s32.totalorder %s234, %s235
      %p249 = scmp.eq.s32.totalorder %s45, 1
      %p250 = por %p248, %p249
      %p252 = scmp.ne.s32.totalorder %s235, %s251
      %p253 = scmp.eq.s32.totalorder %s45, 0
      %p254 = por %p252, %p253
      %s255 = ssub.s32 %s39, %s46
      %p256 = scmp.eq.s32.totalorder %s255, 0
      %s258 = sadd.s32 %s257, 1
      %s259 = scalar_select %p256, %s257, %s258
      %p262 = pneg %p256
      %p263 = scmp.eq.s32.totalorder %s39, 1
      %p264 = por %p262, %p263
      %p265 = scmp.ne.s32.totalorder %s257, %s260
      %p266 = scmp.eq.s32.totalorder %s39, 0
      %p267 = por %p265, %p266
      %p268 = scmp.ne.s32.totalorder %s257, %s260
      %p269 = scmp.eq.s32.totalorder %s44, 1
      %p270 = por %p268, %p269
      %p271 = scmp.ne.s32.totalorder %s260, %s261
      %p272 = scmp.eq.s32.totalorder %s44, 0
      %p273 = por %p271, %p272
      %p274 = scmp.ne.s32.totalorder %s260, %s261
      %p275 = scmp.eq.s32.totalorder %s45, 1
      %p276 = por %p274, %p275
      %p278 = scmp.ne.s32.totalorder %s261, %s277
      %p279 = scmp.eq.s32.totalorder %s45, 0
      %p280 = por %p278, %p279
      %s281 = ssub.s32 %s39, %s46
      %p282 = scmp.eq.s32.totalorder %s281, 0
      %s284 = sadd.s32 %s283, 1
      %s285 = scalar_select %p282, %s283, %s284
      %p288 = pneg %p282
      %p289 = scmp.eq.s32.totalorder %s39, 1
      %p290 = por %p288, %p289
      %p291 = scmp.ne.s32.totalorder %s283, %s286
      %p292 = scmp.eq.s32.totalorder %s39, 0
      %p293 = por %p291, %p292
      %p294 = scmp.ne.s32.totalorder %s283, %s286
      %p295 = scmp.eq.s32.totalorder %s44, 1
      %p296 = por %p294, %p295
      %p297 = scmp.ne.s32.totalorder %s286, %s287
      %p298 = scmp.eq.s32.totalorder %s44, 0
      %p299 = por %p297, %p298
      %p300 = scmp.ne.s32.totalorder %s286, %s287
      %p301 = scmp.eq.s32.totalorder %s45, 1
      %p302 = por %p300, %p301
      %p304 = scmp.ne.s32.totalorder %s287, %s303
      %p305 = scmp.eq.s32.totalorder %s45, 0
      %p306 = por %p304, %p305
      %s307 = ssub.s32 %s39, %s46
      %p308 = scmp.eq.s32.totalorder %s307, 0
      %s310 = sadd.s32 %s309, 1
      %s311 = scalar_select %p308, %s309, %s310
      %p314 = pneg %p308
      %p315 = scmp.eq.s32.totalorder %s39, 1
      %p316 = por %p314, %p315
      %p317 = scmp.ne.s32.totalorder %s309, %s312
      %p318 = scmp.eq.s32.totalorder %s39, 0
      %p319 = por %p317, %p318
      %p320 = scmp.ne.s32.totalorder %s309, %s312
      %p321 = scmp.eq.s32.totalorder %s44, 1
      %p322 = por %p320, %p321
      %p323 = scmp.ne.s32.totalorder %s312, %s313
      %p324 = scmp.eq.s32.totalorder %s44, 0
      %p325 = por %p323, %p324
      %p326 = scmp.ne.s32.totalorder %s312, %s313
      %p327 = scmp.eq.s32.totalorder %s45, 1
      %p328 = por %p326, %p327
      %p330 = scmp.ne.s32.totalorder %s313, %s329
      %p331 = scmp.eq.s32.totalorder %s45, 0
      %p332 = por %p330, %p331
      %s333 = ssub.s32 %s39, %s46
      %p334 = scmp.eq.s32.totalorder %s333, 0
      %s336 = sadd.s32 %s335, 1
      %s337 = scalar_select %p334, %s335, %s336
      %p340 = pneg %p334
      %p341 = scmp.eq.s32.totalorder %s39, 1
      %p342 = por %p340, %p341
      %p343 = scmp.ne.s32.totalorder %s335, %s338
      %p344 = scmp.eq.s32.totalorder %s39, 0
      %p345 = por %p343, %p344
      %p346 = scmp.ne.s32.totalorder %s335, %s338
      %p347 = scmp.eq.s32.totalorder %s44, 1
      %p348 = por %p346, %p347
      %p349 = scmp.ne.s32.totalorder %s338, %s339
      %p350 = scmp.eq.s32.totalorder %s44, 0
      %p351 = por %p349, %p350
      %p352 = scmp.ne.s32.totalorder %s338, %s339
      %p353 = scmp.eq.s32.totalorder %s45, 1
      %p354 = por %p352, %p353
      %p356 = scmp.ne.s32.totalorder %s339, %s355
      %p357 = scmp.eq.s32.totalorder %s45, 0
      %p358 = por %p356, %p357
      %s360 = sadd.s32 %s359, 1
      %p363 = scmp.eq.s32.totalorder %s39, 1
      %p364 = scmp.ne.s32.totalorder %s359, %s361
      %p365 = scmp.eq.s32.totalorder %s39, 0
      %p366 = por %p364, %p365
      %p367 = scmp.ne.s32.totalorder %s359, %s361
      %p368 = scmp.eq.s32.totalorder %s44, 1
      %p369 = por %p367, %p368
      %p370 = scmp.ne.s32.totalorder %s361, %s362
      %p371 = scmp.eq.s32.totalorder %s44, 0
      %p372 = por %p370, %p371
      %p373 = scmp.ne.s32.totalorder %s361, %s362
      %p374 = scmp.eq.s32.totalorder %s45, 1
      %p375 = por %p373, %p374
      %p377 = scmp.ne.s32.totalorder %s362, %s376
      %p378 = scmp.eq.s32.totalorder %s45, 0
      %p379 = por %p377, %p378
      %s381 = sadd.s32 %s380, 1
      %p384 = scmp.eq.s32.totalorder %s39, 1
      %p385 = scmp.ne.s32.totalorder %s380, %s382
      %p386 = scmp.eq.s32.totalorder %s39, 0
      %p387 = por %p385, %p386
      %p388 = scmp.ne.s32.totalorder %s380, %s382
      %p389 = scmp.eq.s32.totalorder %s44, 1
      %p390 = por %p388, %p389
      %p391 = scmp.ne.s32.totalorder %s382, %s383
      %p392 = scmp.eq.s32.totalorder %s44, 0
      %p393 = por %p391, %p392
      %p394 = scmp.ne.s32.totalorder %s382, %s383
      %p395 = scmp.eq.s32.totalorder %s45, 1
      %p396 = por %p394, %p395
      %p398 = scmp.ne.s32.totalorder %s383, %s397
      %p399 = scmp.eq.s32.totalorder %s45, 0
      %p400 = por %p398, %p399
      %s402 = sadd.s32 %s401, 1
      %p405 = scmp.eq.s32.totalorder %s39, 1
      %p406 = scmp.ne.s32.totalorder %s401, %s403
      %p407 = scmp.eq.s32.totalorder %s39, 0
      %p408 = por %p406, %p407
      %p409 = scmp.ne.s32.totalorder %s401, %s403
      %p410 = scmp.eq.s32.totalorder %s44, 1
      %p411 = por %p409, %p410
      %p412 = scmp.ne.s32.totalorder %s403, %s404
      %p413 = scmp.eq.s32.totalorder %s44, 0
      %p414 = por %p412, %p413
      %p415 = scmp.ne.s32.totalorder %s403, %s404
      %p416 = scmp.eq.s32.totalorder %s45, 1
      %p417 = por %p415, %p416
      %p419 = scmp.ne.s32.totalorder %s404, %s418
      %p420 = scmp.eq.s32.totalorder %s45, 0
      %p421 = por %p419, %p420
      %p422 = scmp.le.s32.totalorder 1, %s39
      %p423 = scmp.lt.s32.totalorder %s39, 3
      %p424 = pnand %p422, %p423
      %p425 = pneg %p424
      // Predicated region
      $region9: #{tpu_custom_call.1} parent=5 // pred_check
        _
      $region10: #{tpu_custom_call.1} parent=5 // pred_check_branch
        %427 = sbr.rel (%p424) target = $region12
      $region11: #{tpu_custom_call.1} parent=5 // pred_region
        %s428 = ssub.s32 %s39, 1
        // Predicated region
        $region13: #{tpu_custom_call.1} parent=11 // pred_check
          %p429 = pneg %p372
        $region14: #{tpu_custom_call.1} parent=11 // pred_check_branch
          %431 = sbr.rel (%p429) target = $region16
        $region15: #{tpu_custom_call.1} parent=11 // pred_region
          _
        $region16: #{tpu_custom_call.1} parent=11 // pred_fallthru
          _
        // Predicated region
        $region17: #{tpu_custom_call.1} parent=11 // pred_check
          %p432 = pneg %p393
        $region18: #{tpu_custom_call.1} parent=11 // pred_check_branch
          %434 = sbr.rel (%p432) target = $region20
        $region19: #{tpu_custom_call.1} parent=11 // pred_region
          _
        $region20: #{tpu_custom_call.1} parent=11 // pred_fallthru
          _
      $region12: #{tpu_custom_call.1} parent=5 // pred_fallthru
        _
      %p435 = scmp.lt.s32.totalorder %s39, 2
      // Predicated region
      $region21: #{tpu_custom_call.1} parent=5 // pred_check
        %p436 = pneg %p435
      $region22: #{tpu_custom_call.1} parent=5 // pred_check_branch
        %438 = sbr.rel (%p436) target = $region24
      $region23: #{tpu_custom_call.1} parent=5 // pred_region
        // Predicated region
        $region25: #{tpu_custom_call.1} parent=23 // pred_check
          %p439 = pneg %p59
        $region26: #{tpu_custom_call.1} parent=23 // pred_check_branch
          %441 = sbr.rel (%p439) target = $region28
        $region27: #{tpu_custom_call.1} parent=23 // pred_region
          %s442 = sand.u32 %s49, 1
          %s443 = scalar_lea.sflag [#allocation8], %s442
          %s444 = sand.u32 %s49, 1
          %s445 = scalar_lea.vmem [#allocation7], %s444
          %s447 = ssub.s32 16, 16
          %448 = vsyncadd %s443, %s447
          %s449 = smul.addr %s39, 16
          %s450 = scalar_lea.hbm %s3, %s449
          %s452 = sshll.u32 %s445, 4
          %s453 = int_to_ptr.vmem [resolvable:$true] %s452
          %455 = dma.hbm_to_vmem [thread:$0]  %s450, 16, %s453, %s443
        $region28: #{tpu_custom_call.1} parent=23 // pred_fallthru
          _
        // Predicated region
        $region29: #{tpu_custom_call.1} parent=23 // pred_check
          %p456 = pneg %p85
        $region30: #{tpu_custom_call.1} parent=23 // pred_check_branch
          %458 = sbr.rel (%p456) target = $region32
        $region31: #{tpu_custom_call.1} parent=23 // pred_region
          %s459 = sand.u32 %s39, 1
          %s460 = scalar_lea.sflag [#allocation11], %s459
          %s461 = sand.u32 %s75, 1
          %s462 = smul.addr %s461, 4
          %s463 = scalar_lea.vmem [#allocation10], %s462
          %s465 = ssub.s32 64, 64
          %466 = vsyncadd %s460, %s465
          %s467 = smul.addr %s39, 64
          %s468 = scalar_lea.hbm %s4, %s467
          %s470 = sshll.u32 %s463, 4
          %s471 = int_to_ptr.vmem [resolvable:$true] %s470
          %473 = dma.hbm_to_vmem [thread:$0]  %s468, 64, %s471, %s460
        $region32: #{tpu_custom_call.1} parent=23 // pred_fallthru
          _
        // Predicated region
        $region33: #{tpu_custom_call.1} parent=23 // pred_check
          %p474 = pneg %p111
        $region34: #{tpu_custom_call.1} parent=23 // pred_check_branch
          %476 = sbr.rel (%p474) target = $region36
        $region35: #{tpu_custom_call.1} parent=23 // pred_region
          %s477 = sand.u32 %s39, 1
          %s478 = scalar_lea.sflag [#allocation11], %s477
          %s479 = sand.u32 %s101, 1
          %s480 = scalar_lea.vmem [#allocation12], %s479
          %s482 = ssub.s32 16, 16
          %483 = vsyncadd %s478, %s482
          %s484 = smul.addr %s39, 16
          %s485 = scalar_lea.hbm %s5, %s484
          %s487 = sshll.u32 %s480, 4
          %s488 = int_to_ptr.vmem [resolvable:$true] %s487
          %490 = dma.hbm_to_vmem [thread:$0]  %s485, 16, %s488, %s478
        $region36: #{tpu_custom_call.1} parent=23 // pred_fallthru
          _
        // Predicated region
        $region37: #{tpu_custom_call.1} parent=23 // pred_check
          %p491 = pneg %p137
        $region38: #{tpu_custom_call.1} parent=23 // pred_check_branch
          %493 = sbr.rel (%p491) target = $region40
        $region39: #{tpu_custom_call.1} parent=23 // pred_region
          %p494 = scmp.lt.s32.totalorder %s39, 1
          %s495 = scalar_select %p494, %s39, 1
          %s496 = smul.addr %s495, 4
          %s497 = smul.addr %s496, 4
          %s498 = scalar_lea.vmem %s6, %s497
        $region40: #{tpu_custom_call.1} parent=23 // pred_fallthru
          _
        // Predicated region
        $region41: #{tpu_custom_call.1} parent=23 // pred_check
          %p499 = pneg %p163
        $region42: #{tpu_custom_call.1} parent=23 // pred_check_branch
          %501 = sbr.rel (%p499) target = $region44
        $region43: #{tpu_custom_call.1} parent=23 // pred_region
          %p502 = scmp.lt.s32.totalorder %s39, 1
          %s503 = scalar_select %p502, %s39, 1
          %s504 = smul.addr %s503, 4
          %s505 = smul.addr %s504, 4
          %s506 = scalar_lea.vmem %s7, %s505
        $region44: #{tpu_custom_call.1} parent=23 // pred_fallthru
          _
        // Predicated region
        $region45: #{tpu_custom_call.1} parent=23 // pred_check
          %p507 = pneg %p189
        $region46: #{tpu_custom_call.1} parent=23 // pred_check_branch
          %509 = sbr.rel (%p507) target = $region48
        $region47: #{tpu_custom_call.1} parent=23 // pred_region
          %p510 = scmp.lt.s32.totalorder %s39, 1
          %s511 = scalar_select %p510, %s39, 1
          %s512 = smul.addr %s511, 4
          %s513 = smul.addr %s512, 4
          %s514 = scalar_lea.vmem %s8, %s513
        $region48: #{tpu_custom_call.1} parent=23 // pred_fallthru
          _
        // Predicated region
        $region49: #{tpu_custom_call.1} parent=23 // pred_check
          %p515 = pneg %p215
        $region50: #{tpu_custom_call.1} parent=23 // pred_check_branch
          %517 = sbr.rel (%p515) target = $region52
        $region51: #{tpu_custom_call.1} parent=23 // pred_region
          %s518 = sand.u32 %s39, 1
          %s519 = scalar_lea.sflag [#allocation14], %s518
          %s520 = sand.u32 %s205, 1
          %s521 = scalar_lea.vmem [#allocation13], %s520
          %s523 = ssub.s32 16, 16
          %524 = vsyncadd %s519, %s523
          %s525 = smul.addr %s39, 16
          %s526 = scalar_lea.hbm %s9, %s525
          %s528 = sshll.u32 %s521, 4
          %s529 = int_to_ptr.vmem [resolvable:$true] %s528
          %531 = dma.hbm_to_vmem [thread:$0]  %s526, 16, %s529, %s519
        $region52: #{tpu_custom_call.1} parent=23 // pred_fallthru
          _
        // Predicated region
        $region53: #{tpu_custom_call.1} parent=23 // pred_check
          %p532 = pneg %p241
        $region54: #{tpu_custom_call.1} parent=23 // pred_check_branch
          %534 = sbr.rel (%p532) target = $region56
        $region55: #{tpu_custom_call.1} parent=23 // pred_region
          %s535 = sand.u32 %s39, 1
          %s536 = scalar_lea.sflag [#allocation14], %s535
          %s537 = sand.u32 %s231, 1
          %s538 = scalar_lea.vmem [#allocation15], %s537
          %s540 = ssub.s32 16, 16
          %541 = vsyncadd %s536, %s540
          %s542 = smul.addr %s39, 16
          %s543 = scalar_lea.hbm %s10, %s542
          %s545 = sshll.u32 %s538, 4
          %s546 = int_to_ptr.vmem [resolvable:$true] %s545
          %548 = dma.hbm_to_vmem [thread:$0]  %s543, 16, %s546, %s536
        $region56: #{tpu_custom_call.1} parent=23 // pred_fallthru
          _
        // Predicated region
        $region57: #{tpu_custom_call.1} parent=23 // pred_check
          %p549 = pneg %p267
        $region58: #{tpu_custom_call.1} parent=23 // pred_check_branch
          %551 = sbr.rel (%p549) target = $region60
        $region59: #{tpu_custom_call.1} parent=23 // pred_region
          %s552 = sand.u32 %s257, 1
          %s553 = scalar_lea.sflag [#allocation17], %s552
          %s554 = sand.u32 %s257, 1
          %s555 = scalar_lea.vmem [#allocation16], %s554
          %s557 = ssub.s32 16, 16
          %558 = vsyncadd %s553, %s557
          %s559 = smul.addr %s39, 16
          %s560 = scalar_lea.hbm %s11, %s559
          %s562 = sshll.u32 %s555, 4
          %s563 = int_to_ptr.vmem [resolvable:$true] %s562
          %565 = dma.hbm_to_vmem [thread:$0]  %s560, 16, %s563, %s553
        $region60: #{tpu_custom_call.1} parent=23 // pred_fallthru
          _
        // Predicated region
        $region61: #{tpu_custom_call.1} parent=23 // pred_check
          %p566 = pneg %p293
        $region62: #{tpu_custom_call.1} parent=23 // pred_check_branch
          %568 = sbr.rel (%p566) target = $region64
        $region63: #{tpu_custom_call.1} parent=23 // pred_region
          %p569 = scmp.lt.s32.totalorder %s39, 1
          %s570 = scalar_select %p569, %s39, 1
          %s571 = smul.addr %s570, 4
          %s572 = smul.addr %s571, 4
          %s573 = scalar_lea.vmem %s12, %s572
        $region64: #{tpu_custom_call.1} parent=23 // pred_fallthru
          _
        // Predicated region
        $region65: #{tpu_custom_call.1} parent=23 // pred_check
          %p574 = pneg %p319
        $region66: #{tpu_custom_call.1} parent=23 // pred_check_branch
          %576 = sbr.rel (%p574) target = $region68
        $region67: #{tpu_custom_call.1} parent=23 // pred_region
          %p577 = scmp.lt.s32.totalorder %s39, 1
          %s578 = scalar_select %p577, %s39, 1
          %s579 = smul.addr %s578, 4
          %s580 = smul.addr %s579, 4
          %s581 = scalar_lea.vmem %s13, %s580
        $region68: #{tpu_custom_call.1} parent=23 // pred_fallthru
          _
        // Predicated region
        $region69: #{tpu_custom_call.1} parent=23 // pred_check
          %p582 = pneg %p345
        $region70: #{tpu_custom_call.1} parent=23 // pred_check_branch
          %584 = sbr.rel (%p582) target = $region72
        $region71: #{tpu_custom_call.1} parent=23 // pred_region
          %p585 = scmp.lt.s32.totalorder %s39, 1
          %s586 = scalar_select %p585, %s39, 1
          %s587 = smul.addr %s586, 8
          %s588 = smul.addr %s587, 4
          %s589 = scalar_lea.vmem %s14, %s588
        $region72: #{tpu_custom_call.1} parent=23 // pred_fallthru
          _
      $region24: #{tpu_custom_call.1} parent=5 // pred_fallthru
        _
      %p590 = scmp.le.s32.totalorder 1, %s39
      %p591 = scmp.lt.s32.totalorder %s39, 3
      %p592 = pnand %p590, %p591
      %p593 = pneg %p592
      // Predicated region
      $region73: #{tpu_custom_call.1} parent=5 // pred_check
        _
      $region74: #{tpu_custom_call.1} parent=5 // pred_check_branch
        %595 = sbr.rel (%p592) target = $region76
      $region75: #{tpu_custom_call.1} parent=5 // pred_region
        %s596 = ssub.s32 %s39, 1
        %s597 = sand.u32 %s52, 1
        %s598 = scalar_lea.sflag [#allocation8], %s597
        %s599 = sand.u32 %s52, 1
        %s600 = scalar_lea.vmem [#allocation7], %s599
        // Predicated region
        $region77: #{tpu_custom_call.1} parent=75 // pred_check
          %p601 = pneg %p65
        $region78: #{tpu_custom_call.1} parent=75 // pred_check_branch
          %603 = sbr.rel (%p601) target = $region80
        $region79: #{tpu_custom_call.1} parent=75 // pred_region
          %604 = dma.done %s598, 16
        $region80: #{tpu_custom_call.1} parent=75 // pred_fallthru
          _
        %s605 = sand.u32 %s44, 1
        %s606 = scalar_lea.sflag [#allocation11], %s605
        %s607 = sand.u32 %s78, 1
        %s608 = smul.addr %s607, 4
        %s609 = scalar_lea.vmem [#allocation10], %s608
        // Predicated region
        $region81: #{tpu_custom_call.1} parent=75 // pred_check
          %p610 = pneg %p91
        $region82: #{tpu_custom_call.1} parent=75 // pred_check_branch
          %612 = sbr.rel (%p610) target = $region84
        $region83: #{tpu_custom_call.1} parent=75 // pred_region
          %613 = dma.done %s606, 64
        $region84: #{tpu_custom_call.1} parent=75 // pred_fallthru
          _
        %s614 = sand.u32 %s44, 1
        %s615 = scalar_lea.sflag [#allocation11], %s614
        %s616 = sand.u32 %s104, 1
        %s617 = scalar_lea.vmem [#allocation12], %s616
        // Predicated region
        $region85: #{tpu_custom_call.1} parent=75 // pred_check
          %p618 = pneg %p117
        $region86: #{tpu_custom_call.1} parent=75 // pred_check_branch
          %620 = sbr.rel (%p618) target = $region88
        $region87: #{tpu_custom_call.1} parent=75 // pred_region
          %621 = dma.done %s615, 16
        $region88: #{tpu_custom_call.1} parent=75 // pred_fallthru
          _
        %s622 = sand.u32 %s44, 1
        %s623 = scalar_lea.sflag [#allocation14], %s622
        %s624 = sand.u32 %s208, 1
        %s625 = scalar_lea.vmem [#allocation13], %s624
        // Predicated region
        $region89: #{tpu_custom_call.1} parent=75 // pred_check
          %p626 = pneg %p221
        $region90: #{tpu_custom_call.1} parent=75 // pred_check_branch
          %628 = sbr.rel (%p626) target = $region92
        $region91: #{tpu_custom_call.1} parent=75 // pred_region
          %629 = dma.done %s623, 16
        $region92: #{tpu_custom_call.1} parent=75 // pred_fallthru
          _
        %s630 = sand.u32 %s44, 1
        %s631 = scalar_lea.sflag [#allocation14], %s630
        %s632 = sand.u32 %s234, 1
        %s633 = scalar_lea.vmem [#allocation15], %s632
        // Predicated region
        $region93: #{tpu_custom_call.1} parent=75 // pred_check
          %p634 = pneg %p247
        $region94: #{tpu_custom_call.1} parent=75 // pred_check_branch
          %636 = sbr.rel (%p634) target = $region96
        $region95: #{tpu_custom_call.1} parent=75 // pred_region
          %637 = dma.done %s631, 16
        $region96: #{tpu_custom_call.1} parent=75 // pred_fallthru
          _
        %s638 = sand.u32 %s260, 1
        %s639 = scalar_lea.sflag [#allocation17], %s638
        %s640 = sand.u32 %s260, 1
        %s641 = scalar_lea.vmem [#allocation16], %s640
        // Predicated region
        $region97: #{tpu_custom_call.1} parent=75 // pred_check
          %p642 = pneg %p273
        $region98: #{tpu_custom_call.1} parent=75 // pred_check_branch
          %644 = sbr.rel (%p642) target = $region100
        $region99: #{tpu_custom_call.1} parent=75 // pred_region
          %645 = dma.done %s639, 16
        $region100: #{tpu_custom_call.1} parent=75 // pred_fallthru
          _
        %s646 = sand.u32 %s52, 1
        %s647 = scalar_lea.sflag [#allocation8], %s646
        %s648 = sand.u32 %s52, 1
        %s649 = scalar_lea.vmem [#allocation7], %s648
        %p650 = pneg %p65
        %p651 = pneg %p62
        %s652 = sand.u32 %s44, 1
        %s653 = scalar_lea.sflag [#allocation11], %s652
        %s654 = sand.u32 %s78, 1
        %s655 = smul.addr %s654, 4
        %s656 = scalar_lea.vmem [#allocation10], %s655
        %p657 = pneg %p91
        %p658 = pneg %p88
        %s659 = sand.u32 %s44, 1
        %s660 = scalar_lea.sflag [#allocation11], %s659
        %s661 = sand.u32 %s104, 1
        %s662 = scalar_lea.vmem [#allocation12], %s661
        %p663 = pneg %p117
        %p664 = pneg %p114
        %p665 = scmp.lt.s32.totalorder %s44, 1
        %s666 = scalar_select %p665, %s44, 1
        %s667 = smul.addr %s666, 4
        %s668 = smul.addr %s667, 4
        %s669 = scalar_lea.vmem %s6, %s668
        %p670 = pneg %p143
        %p671 = pneg %p140
        %p672 = scmp.lt.s32.totalorder %s44, 1
        %s673 = scalar_select %p672, %s44, 1
        %s674 = smul.addr %s673, 4
        %s675 = smul.addr %s674, 4
        %s676 = scalar_lea.vmem %s7, %s675
        %p677 = pneg %p169
        %p678 = pneg %p166
        %p679 = scmp.lt.s32.totalorder %s44, 1
        %s680 = scalar_select %p679, %s44, 1
        %s681 = smul.addr %s680, 4
        %s682 = smul.addr %s681, 4
        %s683 = scalar_lea.vmem %s8, %s682
        %p684 = pneg %p195
        %p685 = pneg %p192
        %s686 = sand.u32 %s44, 1
        %s687 = scalar_lea.sflag [#allocation14], %s686
        %s688 = sand.u32 %s208, 1
        %s689 = scalar_lea.vmem [#allocation13], %s688
        %p690 = pneg %p221
        %p691 = pneg %p218
        %s692 = sand.u32 %s44, 1
        %s693 = scalar_lea.sflag [#allocation14], %s692
        %s694 = sand.u32 %s234, 1
        %s695 = scalar_lea.vmem [#allocation15], %s694
        %p696 = pneg %p247
        %p697 = pneg %p244
        %s698 = sand.u32 %s260, 1
        %s699 = scalar_lea.sflag [#allocation17], %s698
        %s700 = sand.u32 %s260, 1
        %s701 = scalar_lea.vmem [#allocation16], %s700
        %p702 = pneg %p273
        %p703 = pneg %p270
        %p704 = scmp.lt.s32.totalorder %s44, 1
        %s705 = scalar_select %p704, %s44, 1
        %s706 = smul.addr %s705, 4
        %s707 = smul.addr %s706, 4
        %s708 = scalar_lea.vmem %s12, %s707
        %p709 = pneg %p299
        %p710 = pneg %p296
        %p711 = scmp.lt.s32.totalorder %s44, 1
        %s712 = scalar_select %p711, %s44, 1
        %s713 = smul.addr %s712, 4
        %s714 = smul.addr %s713, 4
        %s715 = scalar_lea.vmem %s13, %s714
        %p716 = pneg %p325
        %p717 = pneg %p322
        %p718 = scmp.lt.s32.totalorder %s44, 1
        %s719 = scalar_select %p718, %s44, 1
        %s720 = smul.addr %s719, 8
        %s721 = smul.addr %s720, 4
        %s722 = scalar_lea.vmem %s14, %s721
        %p723 = pneg %p351
        %p724 = pneg %p348
        %p725 = pneg %p372
        %p726 = pneg %p369
        %p727 = pneg %p393
        %p728 = pneg %p390
        %p729 = pneg %p414
        %p730 = pneg %p411
        %p731 = scmp.lt.s32.totalorder %s44, 1
        %s732 = scalar_select %p731, %s44, 1
        %s733 = smul.addr %s732, 4
        %s734 = smul.addr %s733, 4
        %s735 = scalar_lea.vmem %s6, %s734
        %p736 = scmp.lt.s32.totalorder %s44, 1
        %s737 = scalar_select %p736, %s44, 1
        %s738 = smul.addr %s737, 4
        %s739 = smul.addr %s738, 4
        %s740 = scalar_lea.vmem %s7, %s739
        %p741 = scmp.lt.s32.totalorder %s44, 1
        %s742 = scalar_select %p741, %s44, 1
        %s743 = smul.addr %s742, 4
        %s744 = smul.addr %s743, 4
        %s745 = scalar_lea.vmem %s8, %s744
        %p746 = scmp.lt.s32.totalorder %s44, 1
        %s747 = scalar_select %p746, %s44, 1
        %s748 = smul.addr %s747, 4
        %s749 = smul.addr %s748, 4
        %s750 = scalar_lea.vmem %s12, %s749
        %p751 = scmp.lt.s32.totalorder %s44, 1
        %s752 = scalar_select %p751, %s44, 1
        %s753 = smul.addr %s752, 4
        %s754 = smul.addr %s753, 4
        %s755 = scalar_lea.vmem %s13, %s754
        %p756 = scmp.lt.s32.totalorder %s44, 1
        %s757 = scalar_select %p756, %s44, 1
        %s758 = smul.addr %s757, 8
        %s759 = smul.addr %s758, 4
        %s760 = scalar_lea.vmem %s14, %s759
        %p762 = scmp.eq.s32.totalorder %s44, 0
        // Predicated region
        $region101: #{tpu_custom_call.1} parent=75 // pred_check
          %p763 = pneg %p762
        $region102: #{tpu_custom_call.1} parent=75 // pred_check_branch
          %765 = sbr.rel (%p763) target = $region104
        $region103: #{tpu_custom_call.1} parent=75 // pred_region
          $region105: #{tpu_custom_call.1} parent=103
            #allocation19 [shape = 'u8[32768]{0}', space=vmem, size = 0x8000, scoped, tag = 'scoped memory for tpu_custom_call.1']
            #allocation20 [shape = 'u8[2048]{0}', space=vmem, size = 0x800, scoped, tag = 'scoped memory for tpu_custom_call.1']
            #allocation21 [shape = 'u8[512]{0}', space=vmem, size = 0x400, scoped, tag = 'scoped memory for tpu_custom_call.1']
            $region106: #{tpu_custom_call.1} parent=105
              #allocation22 [shape = 's32[1]{0}', space=sflag, size = 0x4, scoped, tag = 'scoped memory for tpu_custom_call.1']
              %p767 = scmp.lt.u32.totalorder 64, 8
              %p768 = pneg %p767
              // Predicated region
              $region107: #{tpu_custom_call.1} parent=106 // pred_check
                _
              $region108: #{tpu_custom_call.1} parent=106 // pred_check_branch
                %770 = sbr.rel (%p767) target = $region110
              $region109: #{tpu_custom_call.1} parent=106 // pred_region
                %s786 = sand.u32 64, 7
                %p787 = scmp.eq.s32.totalorder %s786, 0
                // Predicated region
                $region122: #{tpu_custom_call.1} parent=109 // pred_check
                  %p788 = pneg %p787
                $region123: #{tpu_custom_call.1} parent=109 // pred_check_branch
                  %790 = sbr.rel (%p788) target = $region125
                $region124: #{tpu_custom_call.1} parent=109 // pred_region
                  loop: start=0, step=1, limit=1
                  $region126: #{tpu_custom_call.1} parent=124 // loop_pre_header
                    _
                  $region127: #{tpu_custom_call.1} parent=124 // loop_header
                    %s792 = sphi 0, %s796
                    %p793 = scmp.ge.s32.totalorder %s792, 1
                    %s797 = sphi %s0, %s0
                    %s798 = sphi [#allocation19], [#allocation19]
                  $region128: #{tpu_custom_call.1} parent=124 // loop_header_branch
                    %795 = sbr.rel (%p793) target = $region132
                  $region129: #{tpu_custom_call.1} parent=124 // loop_body
                    %v799 = vld [vmem:[%s797] sm:$0xff]
                    %800 = vst [vmem:[%s798] sm:$0xff] %v799
                    %v801 = vld [vmem:[%s797 + $0x8] sm:$0xff]
                    %802 = vst [vmem:[%s798 + $0x8] sm:$0xff] %v801
                    %v803 = vld [vmem:[%s797 + $0x10] sm:$0xff]
                    %804 = vst [vmem:[%s798 + $0x10] sm:$0xff] %v803
                    %v805 = vld [vmem:[%s797 + $0x18] sm:$0xff]
                    %806 = vst [vmem:[%s798 + $0x18] sm:$0xff] %v805
                    %v807 = vld [vmem:[%s797 + $0x20] sm:$0xff]
                    %808 = vst [vmem:[%s798 + $0x20] sm:$0xff] %v807
                    %v809 = vld [vmem:[%s797 + $0x28] sm:$0xff]
                    %810 = vst [vmem:[%s798 + $0x28] sm:$0xff] %v809
                    %v811 = vld [vmem:[%s797 + $0x30] sm:$0xff]
                    %812 = vst [vmem:[%s798 + $0x30] sm:$0xff] %v811
                    %v813 = vld [vmem:[%s797 + $0x38] sm:$0xff]
                    %814 = vst [vmem:[%s798 + $0x38] sm:$0xff] %v813
                  $region130: #{tpu_custom_call.1} parent=124 // loop_footer
                    %s796 = sadd.s32 1, %s792
                  $region131: #{tpu_custom_call.1} parent=124 // loop_footer_branch
                    %791 = sbr.rel target = $region127
                  $region132: #{tpu_custom_call.1} parent=124 // loop_exit
                    _
                $region125: #{tpu_custom_call.1} parent=109 // pred_fallthru
                  _
                %p815 = pneg %p787
                // Predicated region
                $region133: #{tpu_custom_call.1} parent=109 // pred_check
                  _
                $region134: #{tpu_custom_call.1} parent=109 // pred_check_branch
                  %817 = sbr.rel (%p787) target = $region136
                $region135: #{tpu_custom_call.1} parent=109 // pred_region
                  %s818 = sand.u32 64, 7
                $region136: #{tpu_custom_call.1} parent=109 // pred_fallthru
                  _
              $region110: #{tpu_custom_call.1} parent=106 // pred_fallthru
                _
              // Predicated region
              $region111: #{tpu_custom_call.1} parent=106 // pred_check
                %p771 = pneg %p767
              $region112: #{tpu_custom_call.1} parent=106 // pred_check_branch
                %773 = sbr.rel (%p771) target = $region114
              $region113: #{tpu_custom_call.1} parent=106 // pred_region
                %s774 = sshll.u32 1, 64
                %s775 = ssub.s32 %s774, 1
                loop: start=0, step=1, limit=1
                $region115: #{tpu_custom_call.1} parent=113 // loop_pre_header
                  _
                $region116: #{tpu_custom_call.1} parent=113 // loop_header
                  %s777 = sphi 0, %s781
                  %p778 = scmp.ge.s32.totalorder %s777, 1
                  %s782 = sphi %s0, %s0
                  %s783 = sphi [#allocation19], [#allocation19]
                $region117: #{tpu_custom_call.1} parent=113 // loop_header_branch
                  %780 = sbr.rel (%p778) target = $region121
                $region118: #{tpu_custom_call.1} parent=113 // loop_body
                  %v784 = vld [vmem:[%s782] sm:%s775]
                  %785 = vst [vmem:[%s783] sm:%s775] %v784
                $region119: #{tpu_custom_call.1} parent=113 // loop_footer
                  %s781 = sadd.s32 1, %s777
                $region120: #{tpu_custom_call.1} parent=113 // loop_footer_branch
                  %776 = sbr.rel target = $region116
                $region121: #{tpu_custom_call.1} parent=113 // loop_exit
                  _
              $region114: #{tpu_custom_call.1} parent=106 // pred_fallthru
                _
              // Predicated region
              $region137: #{tpu_custom_call.1} parent=106 // pred_check
                _
              $region138: #{tpu_custom_call.1} parent=106 // pred_check_branch
                %821 = sbr.rel (0) target = $region140
              $region139: #{tpu_custom_call.1} parent=106 // pred_region
                %822 = vsyncadd [#allocation22], 1024
              $region140: #{tpu_custom_call.1} parent=106 // pred_fallthru
                _
              %s823 = smul.u32 64, 1
              %s824 = sshll.u32 %s823, 4
              %825 = dma.done [#allocation22], %s824
            $region141: #{tpu_custom_call.1} parent=105
              #allocation24 [shape = 's32[1]{0}', space=sflag, size = 0x4, scoped, tag = 'scoped memory for tpu_custom_call.1']
              // Predicated region
              $region142: #{tpu_custom_call.1} parent=141 // pred_check
                _
              $region143: #{tpu_custom_call.1} parent=141 // pred_check_branch
                %827 = sbr.rel target = $region145
              $region144: #{tpu_custom_call.1} parent=141 // pred_region
                %828 = sst [smem:[#allocation27]] [#allocation26]
                %829 = sst [smem:[#allocation28]] [#allocation25]
              $region145: #{tpu_custom_call.1} parent=141 // pred_fallthru
                _
              %831 = shalt.err (0)
              %s833 = sshll.u32 [#allocation20], 4
              %s834 = int_to_ptr.vmem [resolvable:$true] %s833
              %836 = dma.hbm_to_vmem [thread:$0]  %s1, 64, %s834, [#allocation24]
              %s837 = smul.u32 4, 1
              %s838 = smul.u32 %s837, 1
              %s839 = sshll.u32 %s838, 4
              %840 = dma.done [#allocation24], %s839
            $region146: #{tpu_custom_call.1} parent=105
              #allocation29 [shape = 's32[1]{0}', space=sflag, size = 0x4, scoped, tag = 'scoped memory for tpu_custom_call.1']
              %p842 = scmp.lt.u32.totalorder 1, 8
              %p843 = pneg %p842
              // Predicated region
              $region147: #{tpu_custom_call.1} parent=146 // pred_check
                _
              $region148: #{tpu_custom_call.1} parent=146 // pred_check_branch
                %845 = sbr.rel (%p842) target = $region150
              $region149: #{tpu_custom_call.1} parent=146 // pred_region
                %s861 = sand.u32 1, 7
                %p862 = scmp.eq.s32.totalorder %s861, 0
                %p863 = pneg %p862
                // Predicated region
                $region162: #{tpu_custom_call.1} parent=149 // pred_check
                  _
                $region163: #{tpu_custom_call.1} parent=149 // pred_check_branch
                  %865 = sbr.rel (%p862) target = $region165
                $region164: #{tpu_custom_call.1} parent=149 // pred_region
                  %s866 = sand.u32 1, 7
                  %s867 = ssub.s32 1, %s866
                  %s868 = scalar_lea.vmem %s2, %s867
                  %s869 = ssub.s32 1, %s866
                  %s870 = scalar_lea.vmem [#allocation21], %s869
                  %s871 = sshll.u32 1, %s866
                  %s872 = ssub.s32 %s871, 1
                  loop: start=0, step=1, limit=1
                  $region166: #{tpu_custom_call.1} parent=164 // loop_pre_header
                    _
                  $region167: #{tpu_custom_call.1} parent=164 // loop_header
                    %s874 = sphi 0, %s878
                    %p875 = scmp.ge.s32.totalorder %s874, 1
                    %s879 = sphi %s868, %s868
                    %s880 = sphi %s870, %s870
                  $region168: #{tpu_custom_call.1} parent=164 // loop_header_branch
                    %877 = sbr.rel (%p875) target = $region172
                  $region169: #{tpu_custom_call.1} parent=164 // loop_body
                    %v881 = vld [vmem:[%s879] sm:%s872]
                    %882 = vst [vmem:[%s880] sm:%s872] %v881
                  $region170: #{tpu_custom_call.1} parent=164 // loop_footer
                    %s878 = sadd.s32 1, %s874
                  $region171: #{tpu_custom_call.1} parent=164 // loop_footer_branch
                    %873 = sbr.rel target = $region167
                  $region172: #{tpu_custom_call.1} parent=164 // loop_exit
                    _
                $region165: #{tpu_custom_call.1} parent=149 // pred_fallthru
                  _
              $region150: #{tpu_custom_call.1} parent=146 // pred_fallthru
                _
              // Predicated region
              $region151: #{tpu_custom_call.1} parent=146 // pred_check
                %p846 = pneg %p842
              $region152: #{tpu_custom_call.1} parent=146 // pred_check_branch
                %848 = sbr.rel (%p846) target = $region154
              $region153: #{tpu_custom_call.1} parent=146 // pred_region
                %s849 = sshll.u32 1, 1
                %s850 = ssub.s32 %s849, 1
                loop: start=0, step=1, limit=1
                $region155: #{tpu_custom_call.1} parent=153 // loop_pre_header
                  _
                $region156: #{tpu_custom_call.1} parent=153 // loop_header
                  %s852 = sphi 0, %s856
                  %p853 = scmp.ge.s32.totalorder %s852, 1
                  %s857 = sphi %s2, %s2
                  %s858 = sphi [#allocation21], [#allocation21]
                $region157: #{tpu_custom_call.1} parent=153 // loop_header_branch
                  %855 = sbr.rel (%p853) target = $region161
                $region158: #{tpu_custom_call.1} parent=153 // loop_body
                  %v859 = vld [vmem:[%s857] sm:%s850]
                  %860 = vst [vmem:[%s858] sm:%s850] %v859
                $region159: #{tpu_custom_call.1} parent=153 // loop_footer
                  %s856 = sadd.s32 1, %s852
                $region160: #{tpu_custom_call.1} parent=153 // loop_footer_branch
                  %851 = sbr.rel target = $region156
                $region161: #{tpu_custom_call.1} parent=153 // loop_exit
                  _
              $region154: #{tpu_custom_call.1} parent=146 // pred_fallthru
                _
              // Predicated region
              $region173: #{tpu_custom_call.1} parent=146 // pred_check
                _
              $region174: #{tpu_custom_call.1} parent=146 // pred_check_branch
                %885 = sbr.rel (0) target = $region176
              $region175: #{tpu_custom_call.1} parent=146 // pred_region
                %886 = vsyncadd [#allocation29], 16
              $region176: #{tpu_custom_call.1} parent=146 // pred_fallthru
                _
              %s887 = smul.u32 1, 1
              %s888 = sshll.u32 %s887, 4
              %889 = dma.done [#allocation29], %s888
            %v890 = vld [vmem:[#allocation19] sm:$0xff]
            %v891 = vld [vmem:[#allocation19 + $0x8] sm:$0xff]
            %v892 = vld [vmem:[#allocation19 + $0x10] sm:$0xff]
            %v893 = vld [vmem:[#allocation19 + $0x18] sm:$0xff]
            %v894 = vld [vmem:[#allocation19 + $0x20] sm:$0xff]
            %v895 = vld [vmem:[#allocation19 + $0x28] sm:$0xff]
            %v896 = vld [vmem:[#allocation19 + $0x30] sm:$0xff]
            %v897 = vld [vmem:[#allocation19 + $0x38] sm:$0xff]
            %v898 = vpack.c.bf16 %v891, %v890
            %v899 = vpack.c.bf16 %v893, %v892
            %v900 = vpack.c.bf16 %v895, %v894
            %v901 = vpack.c.bf16 %v897, %v896
            %v902 = vld [vmem:[#allocation20] sm:$0x7]
            %v903 = vld [vmem:[#allocation21] sm:$0x1]
            %v905 = vlaneseq
            %v906 = vshrl.u32 %v905, 7
            %v907 = vsub.s32 0, %v906
            %v908 = vrot.slane %v903, %v907
            %vm910 = vcmask 48128
            %v912 = vsel %vm910, %v898, 0
            %v915 = vsel %vm910, %v899, 0
            %v918 = vsel %vm910, %v900, 0
            %v921 = vsel %vm910, %v901, 0
            %vm923 = vcmask 1042432
            %v925 = vsel %vm923, %v902, 0
            %927 = vmatprep.subr.bf16.mxu0 0
            %928 = vmatpush1.bf16.msra.mxu0 0
            %929 = vmatprep.subr.bf16.mxu0 0
            %930 = vmatpush1.bf16.msra.mxu0 0
            %931 = vmatprep.subr.bf16.mxu0 0
            %932 = vmatpush1.bf16.msra.mxu0 0
            %933 = vmatprep.subr.bf16.mxu0 0
            %934 = vmatpush1.bf16.msra.mxu0 0
            %935 = vmatprep.subr.bf16.mxu0 0
            %936 = vmatpush1.bf16.msra.mxu0 0
            %937 = vmatprep.subr.bf16.mxu0 0
            %938 = vmatpush1.bf16.msra.mxu0 0
            %939 = vmatprep.subr.bf16.mxu0 0
            %940 = vmatpush1.bf16.msra.mxu0 0
            %941 = vmatprep.subr.bf16.mxu0 0
            %942 = vmatpush1.bf16.msra.mxu0 %v925
            %943 = vmatprep.subr.bf16.mxu0 0
            %944 = vmatpush2.bf16.msra.mxu0 0
            %945 = vmatprep.subr.bf16.mxu0 0
            %946 = vmatpush2.bf16.msra.mxu0 0
            %947 = vmatprep.subr.bf16.mxu0 0
            %948 = vmatpush2.bf16.msra.mxu0 0
            %949 = vmatprep.subr.bf16.mxu0 0
            %950 = vmatpush2.bf16.msra.mxu0 0
            %951 = vmatprep.subr.bf16.mxu0 0
            %952 = vmatpush2.bf16.msra.mxu0 0
            %953 = vmatprep.subr.bf16.mxu0 0
            %954 = vmatpush2.bf16.msra.mxu0 0
            %955 = vmatprep.subr.bf16.mxu0 0
            %956 = vmatpush2.bf16.msra.mxu0 0
            %957 = vmatprep.subr.bf16.mxu0 0
            %958 = vmatpush2.bf16.msra.mxu0 0
            %959 = vmatprep.mubr.bf16.mxu0 0
            %960 = vmatmul.mubr.bf16.gmra.mxu0 %v912
            %v961 = vpop.f32.mrf.mxu0
            %v962 = vadd.f32 %v908, %v961
            %v963 = vpop.f32.mrf.mxu0
            %v964 = vpop.f32.mrf.mxu0
            %v965 = vadd.f32 %v908, %v964
            %v966 = vpop.f32.mrf.mxu0
            %967 = vmatprep.mubr.bf16.mxu0 0
            %968 = vmatmul.mubr.bf16.gmra.mxu0 %v915
            %v969 = vpop.f32.mrf.mxu0
            %v970 = vadd.f32 %v908, %v969
            %v971 = vpop.f32.mrf.mxu0
            %v972 = vpop.f32.mrf.mxu0
            %v973 = vadd.f32 %v908, %v972
            %v974 = vpop.f32.mrf.mxu0
            %975 = vmatprep.mubr.bf16.mxu0 0
            %976 = vmatmul.mubr.bf16.gmra.mxu0 %v918
            %v977 = vpop.f32.mrf.mxu0
            %v978 = vadd.f32 %v908, %v977
            %v979 = vpop.f32.mrf.mxu0
            %v980 = vpop.f32.mrf.mxu0
            %v981 = vadd.f32 %v908, %v980
            %v982 = vpop.f32.mrf.mxu0
            %983 = vmatprep.mubr.bf16.mxu0 0
            %984 = vmatmul.mubr.bf16.gmra.mxu0 %v921
            %v985 = vpop.f32.mrf.mxu0
            %v986 = vadd.f32 %v908, %v985
            %v987 = vpop.f32.mrf.mxu0
            %v988 = vpop.f32.mrf.mxu0
            %v989 = vadd.f32 %v908, %v988
            %v990 = vpop.f32.mrf.mxu0
            %991 = vdwg.mxu0
            %vm992 = vcmask 261120
            %993 = vst.msk [vmem:[#allocation2] sm:$0xff] %vm992, %v962
            %994 = vst.msk [vmem:[#allocation2 + $0x8] sm:$0xff] %vm992, %v965
            %995 = vst.msk [vmem:[#allocation2 + $0x10] sm:$0xff] %vm992, %v970
            %996 = vst.msk [vmem:[#allocation2 + $0x18] sm:$0xff] %vm992, %v973
            %997 = vst.msk [vmem:[#allocation2 + $0x20] sm:$0xff] %vm992, %v978
            %998 = vst.msk [vmem:[#allocation2 + $0x28] sm:$0xff] %vm992, %v981
            %999 = vst.msk [vmem:[#allocation2 + $0x30] sm:$0xff] %vm992, %v986
            %1000 = vst.msk [vmem:[#allocation2 + $0x38] sm:$0xff] %vm992, %v989
            %1001 = vst.msk [vmem:[#allocation6] sm:$0xff] %vm992, 0.0
            %1002 = vst.msk [vmem:[#allocation6 + $0x8] sm:$0xff] %vm992, 0.0
            %1003 = vst.msk [vmem:[#allocation6 + $0x10] sm:$0xff] %vm992, 0.0
        $region104: #{tpu_custom_call.1} parent=75 // pred_fallthru
          _
        %v1004 = vld [vmem:[#allocation2] sm:$0xff]
        %v1005 = vld [vmem:[#allocation2 + $0x8] sm:$0xff]
        %v1006 = vld [vmem:[#allocation2 + $0x10] sm:$0xff]
        %v1007 = vld [vmem:[#allocation2 + $0x18] sm:$0xff]
        %v1008 = vld [vmem:[#allocation2 + $0x20] sm:$0xff]
        %v1009 = vld [vmem:[#allocation2 + $0x28] sm:$0xff]
        %v1010 = vld [vmem:[#allocation2 + $0x30] sm:$0xff]
        %v1011 = vld [vmem:[#allocation2 + $0x38] sm:$0xff]
        %v1012 = vld [vmem:[%s600] sm:$0x1]
        %vm1013 = vcmask 261120
        %v1014 = vsel %vm1013, %v1004, 0.0
        %1015 = vadd.xlane.f32.xlu0 %v1014
        %v1016 = vpop.xlane.xlu0 %1015
        %v1017 = vsel %vm1013, %v1005, 0.0
        %1018 = vadd.xlane.f32.xlu0 %v1017
        %v1019 = vpop.xlane.xlu0 %1018
        %v1020 = vsel %vm1013, %v1006, 0.0
        %1021 = vadd.xlane.f32.xlu0 %v1020
        %v1022 = vpop.xlane.xlu0 %1021
        %v1023 = vsel %vm1013, %v1007, 0.0
        %1024 = vadd.xlane.f32.xlu0 %v1023
        %v1025 = vpop.xlane.xlu0 %1024
        %v1026 = vsel %vm1013, %v1008, 0.0
        %1027 = vadd.xlane.f32.xlu0 %v1026
        %v1028 = vpop.xlane.xlu0 %1027
        %v1029 = vsel %vm1013, %v1009, 0.0
        %1030 = vadd.xlane.f32.xlu0 %v1029
        %v1031 = vpop.xlane.xlu0 %1030
        %v1032 = vsel %vm1013, %v1010, 0.0
        %1033 = vadd.xlane.f32.xlu0 %v1032
        %v1034 = vpop.xlane.xlu0 %1033
        %v1035 = vsel %vm1013, %v1011, 0.0
        %1036 = vadd.xlane.f32.xlu0 %v1035
        %v1037 = vpop.xlane.xlu0 %1036
        %v1038 = vrcp.pop 32.0
        %v1039 = vmul.f32 %v1016, %v1038
        %v1040 = vmul.f32 %v1019, %v1038
        %v1041 = vmul.f32 %v1022, %v1038
        %v1042 = vmul.f32 %v1025, %v1038
        %v1043 = vmul.f32 %v1028, %v1038
        %v1044 = vmul.f32 %v1031, %v1038
        %v1045 = vmul.f32 %v1034, %v1038
        %v1046 = vmul.f32 %v1037, %v1038
        %v1047 = vsub.f32 %v1004, %v1039
        %v1048 = vsub.f32 %v1005, %v1040
        %v1049 = vsub.f32 %v1006, %v1041
        %v1050 = vsub.f32 %v1007, %v1042
        %v1051 = vsub.f32 %v1008, %v1043
        %v1052 = vsub.f32 %v1009, %v1044
        %v1053 = vsub.f32 %v1010, %v1045
        %v1054 = vsub.f32 %v1011, %v1046
        %v1055 = vmul.f32 %v1047, %v1047
        %v1056 = vmul.f32 %v1048, %v1048
        %v1057 = vmul.f32 %v1049, %v1049
        %v1058 = vmul.f32 %v1050, %v1050
        %v1059 = vmul.f32 %v1051, %v1051
        %v1060 = vmul.f32 %v1052, %v1052
        %v1061 = vmul.f32 %v1053, %v1053
        %v1062 = vmul.f32 %v1054, %v1054
        %v1063 = vsel %vm1013, %v1055, 0.0
        %1064 = vadd.xlane.f32.xlu0 %v1063
        %v1065 = vpop.xlane.xlu0 %1064
        %v1066 = vsel %vm1013, %v1056, 0.0
        %1067 = vadd.xlane.f32.xlu0 %v1066
        %v1068 = vpop.xlane.xlu0 %1067
        %v1069 = vsel %vm1013, %v1057, 0.0
        %1070 = vadd.xlane.f32.xlu0 %v1069
        %v1071 = vpop.xlane.xlu0 %1070
        %v1072 = vsel %vm1013, %v1058, 0.0
        %1073 = vadd.xlane.f32.xlu0 %v1072
        %v1074 = vpop.xlane.xlu0 %1073
        %v1075 = vsel %vm1013, %v1059, 0.0
        %1076 = vadd.xlane.f32.xlu0 %v1075
        %v1077 = vpop.xlane.xlu0 %1076
        %v1078 = vsel %vm1013, %v1060, 0.0
        %1079 = vadd.xlane.f32.xlu0 %v1078
        %v1080 = vpop.xlane.xlu0 %1079
        %v1081 = vsel %vm1013, %v1061, 0.0
        %1082 = vadd.xlane.f32.xlu0 %v1081
        %v1083 = vpop.xlane.xlu0 %1082
        %v1084 = vsel %vm1013, %v1062, 0.0
        %1085 = vadd.xlane.f32.xlu0 %v1084
        %v1086 = vpop.xlane.xlu0 %1085
        %v1087 = vmul.f32 %v1065, %v1038
        %v1088 = vmul.f32 %v1068, %v1038
        %v1089 = vmul.f32 %v1071, %v1038
        %v1090 = vmul.f32 %v1074, %v1038
        %v1091 = vmul.f32 %v1077, %v1038
        %v1092 = vmul.f32 %v1080, %v1038
        %v1093 = vmul.f32 %v1083, %v1038
        %v1094 = vmul.f32 %v1086, %v1038
        %v1095 = vadd.f32 %v1087, 1e-05
        %v1096 = vadd.f32 %v1088, 1e-05
        %v1097 = vadd.f32 %v1089, 1e-05
        %v1098 = vadd.f32 %v1090, 1e-05
        %v1099 = vadd.f32 %v1091, 1e-05
        %v1100 = vadd.f32 %v1092, 1e-05
        %v1101 = vadd.f32 %v1093, 1e-05
        %v1102 = vadd.f32 %v1094, 1e-05
        %v1103 = vrsqrt.pop %v1095
        %v1104 = vrsqrt.pop %v1096
        %v1105 = vrsqrt.pop %v1097
        %v1106 = vrsqrt.pop %v1098
        %v1107 = vrsqrt.pop %v1099
        %v1108 = vrsqrt.pop %v1100
        %v1109 = vrsqrt.pop %v1101
        %v1110 = vrsqrt.pop %v1102
        %v1111 = vmul.f32 %v1047, %v1103
        %v1112 = vmul.f32 %v1048, %v1104
        %v1113 = vmul.f32 %v1049, %v1105
        %v1114 = vmul.f32 %v1050, %v1106
        %v1115 = vmul.f32 %v1051, %v1107
        %v1116 = vmul.f32 %v1052, %v1108
        %v1117 = vmul.f32 %v1053, %v1109
        %v1118 = vmul.f32 %v1054, %v1110
        %v1120 = vlaneseq
        %v1121 = vshrl.u32 %v1120, 7
        %v1122 = vsub.s32 0, %v1121
        %v1123 = vrot.slane %v1012, %v1122
        %v1125 = vmul.f32 %v1111, %v1123
        %v1126 = vmul.f32 %v1112, %v1123
        %v1127 = vmul.f32 %v1113, %v1123
        %v1128 = vmul.f32 %v1114, %v1123
        %v1129 = vmul.f32 %v1115, %v1123
        %v1130 = vmul.f32 %v1116, %v1123
        %v1131 = vmul.f32 %v1117, %v1123
        %v1132 = vmul.f32 %v1118, %v1123
        %1133 = vst.msk [vmem:[#allocation6 + $0x18] sm:$0xff] %vm1013, %v1125
        %1134 = vst.msk [vmem:[#allocation6 + $0x20] sm:$0xff] %vm1013, %v1126
        %1135 = vst.msk [vmem:[#allocation6 + $0x28] sm:$0xff] %vm1013, %v1127
        %1136 = vst.msk [vmem:[#allocation6 + $0x30] sm:$0xff] %vm1013, %v1128
        %1137 = vst.msk [vmem:[#allocation6 + $0x38] sm:$0xff] %vm1013, %v1129
        %1138 = vst.msk [vmem:[#allocation6 + $0x40] sm:$0xff] %vm1013, %v1130
        %1139 = vst.msk [vmem:[#allocation6 + $0x48] sm:$0xff] %vm1013, %v1131
        %1140 = vst.msk [vmem:[#allocation6 + $0x50] sm:$0xff] %vm1013, %v1132
        %v1141 = vld [vmem:[%s609] sm:$0xf]
        %v1142 = vld [vmem:[%s617] sm:$0x1]
        %v1143 = vlaneseq
        %v1144 = vshrl.u32 %v1143, 7
        %v1145 = vsub.s32 3, %v1144
        %v1146 = vrot.slane %v1141, %v1145
        %v1147 = vmul.f32 %v1146, %v1125
        %v1148 = vmul.f32 %v1146, %v1126
        %v1149 = vmul.f32 %v1146, %v1127
        %v1150 = vmul.f32 %v1146, %v1128
        %v1151 = vmul.f32 %v1146, %v1129
        %v1152 = vmul.f32 %v1146, %v1130
        %v1153 = vmul.f32 %v1146, %v1131
        %v1154 = vmul.f32 %v1146, %v1132
        %v1156 = vlaneseq
        %v1157 = vshrl.u32 %v1156, 7
        %v1158 = vsub.s32 0, %v1157
        %v1159 = vrot.slane %v1142, %v1158
        %v1161 = vadd.f32 %v1159, %v1147
        %v1162 = vadd.f32 %v1159, %v1148
        %v1163 = vadd.f32 %v1159, %v1149
        %v1164 = vadd.f32 %v1159, %v1150
        %v1165 = vadd.f32 %v1159, %v1151
        %v1166 = vadd.f32 %v1159, %v1152
        %v1167 = vadd.f32 %v1159, %v1153
        %v1168 = vadd.f32 %v1159, %v1154
        %v1169 = vld [vmem:[#allocation6 + $0x10] sm:$0xff]
        %v1170 = vld [vmem:[#allocation6 + $0x18] sm:$0xff]
        %v1171 = vld [vmem:[#allocation6 + $0x20] sm:$0xff]
        %v1172 = vld [vmem:[#allocation6 + $0x28] sm:$0xff]
        %v1173 = vld [vmem:[#allocation6 + $0x30] sm:$0xff]
        %v1174 = vld [vmem:[#allocation6 + $0x38] sm:$0xff]
        %v1175 = vld [vmem:[#allocation6 + $0x40] sm:$0xff]
        %v1176 = vld [vmem:[#allocation6 + $0x48] sm:$0xff]
        %v1177 = vlaneseq
        %v1178 = vshrl.u32 %v1177, 7
        %v1179 = vsub.s32 2, %v1178
        %v1180 = vrot.slane %v1141, %v1179
        %v1181 = vmul.f32 %v1180, %v1169
        %v1182 = vmul.f32 %v1180, %v1170
        %v1183 = vmul.f32 %v1180, %v1171
        %v1184 = vmul.f32 %v1180, %v1172
        %v1185 = vmul.f32 %v1180, %v1173
        %v1186 = vmul.f32 %v1180, %v1174
        %v1187 = vmul.f32 %v1180, %v1175
        %v1188 = vmul.f32 %v1180, %v1176
        %v1189 = vadd.f32 %v1161, %v1181
        %v1190 = vadd.f32 %v1162, %v1182
        %v1191 = vadd.f32 %v1163, %v1183
        %v1192 = vadd.f32 %v1164, %v1184
        %v1193 = vadd.f32 %v1165, %v1185
        %v1194 = vadd.f32 %v1166, %v1186
        %v1195 = vadd.f32 %v1167, %v1187
        %v1196 = vadd.f32 %v1168, %v1188
        %v1197 = vld [vmem:[#allocation6 + $0x8] sm:$0xff]
        %v1198 = vlaneseq
        %v1199 = vshrl.u32 %v1198, 7
        %v1200 = vsub.s32 1, %v1199
        %v1201 = vrot.slane %v1141, %v1200
        %v1202 = vmul.f32 %v1201, %v1197
        %v1203 = vmul.f32 %v1201, %v1169
        %v1204 = vmul.f32 %v1201, %v1170
        %v1205 = vmul.f32 %v1201, %v1171
        %v1206 = vmul.f32 %v1201, %v1172
        %v1207 = vmul.f32 %v1201, %v1173
        %v1208 = vmul.f32 %v1201, %v1174
        %v1209 = vmul.f32 %v1201, %v1175
        %v1210 = vadd.f32 %v1189, %v1202
        %v1211 = vadd.f32 %v1190, %v1203
        %v1212 = vadd.f32 %v1191, %v1204
        %v1213 = vadd.f32 %v1192, %v1205
        %v1214 = vadd.f32 %v1193, %v1206
        %v1215 = vadd.f32 %v1194, %v1207
        %v1216 = vadd.f32 %v1195, %v1208
        %v1217 = vadd.f32 %v1196, %v1209
        %v1218 = vld [vmem:[#allocation6] sm:$0xff]
        %v1219 = vlaneseq
        %v1220 = vshrl.u32 %v1219, 7
        %v1221 = vsub.s32 0, %v1220
        %v1222 = vrot.slane %v1141, %v1221
        %v1223 = vmul.f32 %v1222, %v1218
        %v1224 = vmul.f32 %v1222, %v1197
        %v1225 = vmul.f32 %v1222, %v1169
        %v1226 = vmul.f32 %v1222, %v1170
        %v1227 = vmul.f32 %v1222, %v1171
        %v1228 = vmul.f32 %v1222, %v1172
        %v1229 = vmul.f32 %v1222, %v1173
        %v1230 = vmul.f32 %v1222, %v1174
        %v1231 = vadd.f32 %v1210, %v1223
        %v1232 = vadd.f32 %v1211, %v1224
        %v1233 = vadd.f32 %v1212, %v1225
        %v1234 = vadd.f32 %v1213, %v1226
        %v1235 = vadd.f32 %v1214, %v1227
        %v1236 = vadd.f32 %v1215, %v1228
        %v1237 = vadd.f32 %v1216, %v1229
        %v1238 = vadd.f32 %v1217, %v1230
        %v1239 = vmul.f32 %v1231, 0.5
        %v1240 = vmul.f32 %v1232, 0.5
        %v1241 = vmul.f32 %v1233, 0.5
        %v1242 = vmul.f32 %v1234, 0.5
        %v1243 = vmul.f32 %v1235, 0.5
        %v1244 = vmul.f32 %v1236, 0.5
        %v1245 = vmul.f32 %v1237, 0.5
        %v1246 = vmul.f32 %v1238, 0.5
        %v1247 = vtanh.pop %v1239
        %v1248 = vtanh.pop %v1240
        %v1249 = vtanh.pop %v1241
        %v1250 = vtanh.pop %v1242
        %v1251 = vtanh.pop %v1243
        %v1252 = vtanh.pop %v1244
        %v1253 = vtanh.pop %v1245
        %v1254 = vtanh.pop %v1246
        %v1255 = vadd.f32 %v1247, 1.0
        %v1256 = vadd.f32 %v1248, 1.0
        %v1257 = vadd.f32 %v1249, 1.0
        %v1258 = vadd.f32 %v1250, 1.0
        %v1259 = vadd.f32 %v1251, 1.0
        %v1260 = vadd.f32 %v1252, 1.0
        %v1261 = vadd.f32 %v1253, 1.0
        %v1262 = vadd.f32 %v1254, 1.0
        %v1263 = vmul.f32 %v1255, 0.5
        %v1264 = vmul.f32 %v1256, 0.5
        %v1265 = vmul.f32 %v1257, 0.5
        %v1266 = vmul.f32 %v1258, 0.5
        %v1267 = vmul.f32 %v1259, 0.5
        %v1268 = vmul.f32 %v1260, 0.5
        %v1269 = vmul.f32 %v1261, 0.5
        %v1270 = vmul.f32 %v1262, 0.5
        %v1271 = vmul.f32 %v1231, %v1263
        %v1272 = vmul.f32 %v1232, %v1264
        %v1273 = vmul.f32 %v1233, %v1265
        %v1274 = vmul.f32 %v1234, %v1266
        %v1275 = vmul.f32 %v1235, %v1267
        %v1276 = vmul.f32 %v1236, %v1268
        %v1277 = vmul.f32 %v1237, %v1269
        %v1278 = vmul.f32 %v1238, %v1270
        %v1279 = vld [vmem:[%s625] sm:$0x1]
        %v1280 = vpack.c.bf16 %v1272, %v1271
        %v1281 = vpack.c.bf16 %v1274, %v1273
        %v1282 = vpack.c.bf16 %v1276, %v1275
        %v1283 = vpack.c.bf16 %v1278, %v1277
        %v1284 = vld [vmem:[%s735] sm:$0xf]
        %v1285 = vld [vmem:[%s735 + $0x4] sm:$0xf]
        %v1286 = vld [vmem:[%s735 + $0x8] sm:$0xf]
        %v1287 = vld [vmem:[%s735 + $0xc] sm:$0xf]
        %v1289 = vlaneseq
        %v1290 = vshrl.u32 %v1289, 7
        %v1291 = vsub.s32 0, %v1290
        %v1292 = vrot.slane %v1279, %v1291
        %v1298 = vunpack.c.l.b16 %v1284
        %v1299 = vunpack.c.l.b16 %v1285
        %v1300 = vunpack.c.l.b16 %v1286
        %v1301 = vunpack.c.l.b16 %v1287
        %v1302 = vpack.c.b16 %v1299, %v1298
        %v1303 = vpack.c.b16 %v1301, %v1300
        %v1307 = vsel %vm1013, %v1280, 0
        %v1310 = vsel %vm1013, %v1281, 0
        %v1313 = vsel %vm1013, %v1282, 0
        %v1316 = vsel %vm1013, %v1283, 0
        %1318 = vmatprep.subr.bf16.mxu0 0
        %1319 = vmatpush1.bf16.msra.mxu0 0
        %1320 = vmatprep.subr.bf16.mxu0 0
        %1321 = vmatpush1.bf16.msra.mxu0 0
        %1322 = vmatprep.subr.bf16.mxu0 0
        %1323 = vmatpush1.bf16.msra.mxu0 0
        %1324 = vmatprep.subr.bf16.mxu0 0
        %1325 = vmatpush1.bf16.msra.mxu0 0
        %1326 = vmatprep.subr.bf16.mxu0 0
        %1327 = vmatpush1.bf16.msra.mxu0 0
        %1328 = vmatprep.subr.bf16.mxu0 0
        %1329 = vmatpush1.bf16.msra.mxu0 0
        %1330 = vmatprep.subr.bf16.mxu0 0
        %1331 = vmatpush1.bf16.msra.mxu0 %v1303
        %1332 = vmatprep.subr.bf16.mxu0 0
        %1333 = vmatpush1.bf16.msra.mxu0 %v1302
        %1334 = vmatprep.subr.bf16.mxu0 0
        %1335 = vmatpush2.bf16.msra.mxu0 0
        %1336 = vmatprep.subr.bf16.mxu0 0
        %1337 = vmatpush2.bf16.msra.mxu0 0
        %1338 = vmatprep.subr.bf16.mxu0 0
        %1339 = vmatpush2.bf16.msra.mxu0 0
        %1340 = vmatprep.subr.bf16.mxu0 0
        %1341 = vmatpush2.bf16.msra.mxu0 0
        %1342 = vmatprep.subr.bf16.mxu0 0
        %1343 = vmatpush2.bf16.msra.mxu0 0
        %1344 = vmatprep.subr.bf16.mxu0 0
        %1345 = vmatpush2.bf16.msra.mxu0 0
        %1346 = vmatprep.subr.bf16.mxu0 0
        %1347 = vmatpush2.bf16.msra.mxu0 0
        %1348 = vmatprep.subr.bf16.mxu0 0
        %1349 = vmatpush2.bf16.msra.mxu0 0
        %1350 = vmatprep.mubr.bf16.mxu0 0
        %1351 = vmatmul.mubr.bf16.gmra.mxu0 %v1307
        %v1352 = vpop.f32.mrf.mxu0
        %v1353 = vadd.f32 %v1292, %v1352
        %v1354 = vpop.f32.mrf.mxu0
        %v1355 = vpop.f32.mrf.mxu0
        %v1356 = vadd.f32 %v1292, %v1355
        %v1357 = vpop.f32.mrf.mxu0
        %1358 = vmatprep.mubr.bf16.mxu0 0
        %1359 = vmatmul.mubr.bf16.gmra.mxu0 %v1310
        %v1360 = vpop.f32.mrf.mxu0
        %v1361 = vadd.f32 %v1292, %v1360
        %v1362 = vpop.f32.mrf.mxu0
        %v1363 = vpop.f32.mrf.mxu0
        %v1364 = vadd.f32 %v1292, %v1363
        %v1365 = vpop.f32.mrf.mxu0
        %1366 = vmatprep.mubr.bf16.mxu0 0
        %1367 = vmatmul.mubr.bf16.gmra.mxu0 %v1313
        %v1368 = vpop.f32.mrf.mxu0
        %v1369 = vadd.f32 %v1292, %v1368
        %v1370 = vpop.f32.mrf.mxu0
        %v1371 = vpop.f32.mrf.mxu0
        %v1372 = vadd.f32 %v1292, %v1371
        %v1373 = vpop.f32.mrf.mxu0
        %1374 = vmatprep.mubr.bf16.mxu0 0
        %1375 = vmatmul.mubr.bf16.gmra.mxu0 %v1316
        %v1376 = vpop.f32.mrf.mxu0
        %v1377 = vadd.f32 %v1292, %v1376
        %v1378 = vpop.f32.mrf.mxu0
        %v1379 = vpop.f32.mrf.mxu0
        %v1380 = vadd.f32 %v1292, %v1379
        %v1381 = vpop.f32.mrf.mxu0
        %1382 = vdwg.mxu0
        %vm1383 = vcmask 523264
        %1384 = vst.msk [vmem:[#allocation3] sm:$0xff] %vm1383, %v1353
        %1385 = vst.msk [vmem:[#allocation3 + $0x8] sm:$0xff] %vm1383, %v1356
        %1386 = vst.msk [vmem:[#allocation3 + $0x10] sm:$0xff] %vm1383, %v1361
        %1387 = vst.msk [vmem:[#allocation3 + $0x18] sm:$0xff] %vm1383, %v1364
        %1388 = vst.msk [vmem:[#allocation3 + $0x20] sm:$0xff] %vm1383, %v1369
        %1389 = vst.msk [vmem:[#allocation3 + $0x28] sm:$0xff] %vm1383, %v1372
        %1390 = vst.msk [vmem:[#allocation3 + $0x30] sm:$0xff] %vm1383, %v1377
        %1391 = vst.msk [vmem:[#allocation3 + $0x38] sm:$0xff] %vm1383, %v1380
        %v1392 = vpack.c.bf16 %v1126, %v1125
        %v1393 = vpack.c.bf16 %v1128, %v1127
        %v1394 = vpack.c.bf16 %v1130, %v1129
        %v1395 = vpack.c.bf16 %v1132, %v1131
        %v1396 = vld [vmem:[%s740] sm:$0xf]
        %v1397 = vld [vmem:[%s740 + $0x4] sm:$0xf]
        %v1398 = vld [vmem:[%s740 + $0x8] sm:$0xf]
        %v1399 = vld [vmem:[%s740 + $0xc] sm:$0xf]
        %v1404 = vunpack.c.l.b16 %v1396
        %v1405 = vunpack.c.l.b16 %v1397
        %v1406 = vunpack.c.l.b16 %v1398
        %v1407 = vunpack.c.l.b16 %v1399
        %v1408 = vpack.c.b16 %v1405, %v1404
        %v1409 = vpack.c.b16 %v1407, %v1406
        %1412 = vrot.lane.b32.xlu0 %v1292, 64
        %v1413 = vpop.permute.xlu0 %1412
        %v1416 = vsel %vm1013, %v1392, 0
        %v1419 = vsel %vm1013, %v1393, 0
        %v1422 = vsel %vm1013, %v1394, 0
        %v1425 = vsel %vm1013, %v1395, 0
        %1427 = vmatprep.subr.bf16.mxu0 0
        %1428 = vmatpush1.bf16.msra.mxu0 0
        %1429 = vmatprep.subr.bf16.mxu0 0
        %1430 = vmatpush1.bf16.msra.mxu0 0
        %1431 = vmatprep.subr.bf16.mxu0 0
        %1432 = vmatpush1.bf16.msra.mxu0 0
        %1433 = vmatprep.subr.bf16.mxu0 0
        %1434 = vmatpush1.bf16.msra.mxu0 0
        %1435 = vmatprep.subr.bf16.mxu0 0
        %1436 = vmatpush1.bf16.msra.mxu0 0
        %1437 = vmatprep.subr.bf16.mxu0 0
        %1438 = vmatpush1.bf16.msra.mxu0 0
        %1439 = vmatprep.subr.bf16.mxu0 0
        %1440 = vmatpush1.bf16.msra.mxu0 %v1409
        %1441 = vmatprep.subr.bf16.mxu0 0
        %1442 = vmatpush1.bf16.msra.mxu0 %v1408
        %1443 = vmatprep.subr.bf16.mxu0 0
        %1444 = vmatpush2.bf16.msra.mxu0 0
        %1445 = vmatprep.subr.bf16.mxu0 0
        %1446 = vmatpush2.bf16.msra.mxu0 0
        %1447 = vmatprep.subr.bf16.mxu0 0
        %1448 = vmatpush2.bf16.msra.mxu0 0
        %1449 = vmatprep.subr.bf16.mxu0 0
        %1450 = vmatpush2.bf16.msra.mxu0 0
        %1451 = vmatprep.subr.bf16.mxu0 0
        %1452 = vmatpush2.bf16.msra.mxu0 0
        %1453 = vmatprep.subr.bf16.mxu0 0
        %1454 = vmatpush2.bf16.msra.mxu0 0
        %1455 = vmatprep.subr.bf16.mxu0 0
        %1456 = vmatpush2.bf16.msra.mxu0 0
        %1457 = vmatprep.subr.bf16.mxu0 0
        %1458 = vmatpush2.bf16.msra.mxu0 0
        %1459 = vmatprep.mubr.bf16.mxu0 0
        %1460 = vmatmul.mubr.bf16.gmra.mxu0 %v1416
        %v1461 = vpop.f32.mrf.mxu0
        %v1462 = vadd.f32 %v1413, %v1461
        %v1463 = vpop.f32.mrf.mxu0
        %v1464 = vpop.f32.mrf.mxu0
        %v1465 = vadd.f32 %v1413, %v1464
        %v1466 = vpop.f32.mrf.mxu0
        %1467 = vmatprep.mubr.bf16.mxu0 0
        %1468 = vmatmul.mubr.bf16.gmra.mxu0 %v1419
        %v1469 = vpop.f32.mrf.mxu0
        %v1470 = vadd.f32 %v1413, %v1469
        %v1471 = vpop.f32.mrf.mxu0
        %v1472 = vpop.f32.mrf.mxu0
        %v1473 = vadd.f32 %v1413, %v1472
        %v1474 = vpop.f32.mrf.mxu0
        %1475 = vmatprep.mubr.bf16.mxu0 0
        %1476 = vmatmul.mubr.bf16.gmra.mxu0 %v1422
        %v1477 = vpop.f32.mrf.mxu0
        %v1478 = vadd.f32 %v1413, %v1477
        %v1479 = vpop.f32.mrf.mxu0
        %v1480 = vpop.f32.mrf.mxu0
        %v1481 = vadd.f32 %v1413, %v1480
        %v1482 = vpop.f32.mrf.mxu0
        %1483 = vmatprep.mubr.bf16.mxu0 0
        %1484 = vmatmul.mubr.bf16.gmra.mxu0 %v1425
        %v1485 = vpop.f32.mrf.mxu0
        %v1486 = vadd.f32 %v1413, %v1485
        %v1487 = vpop.f32.mrf.mxu0
        %v1488 = vpop.f32.mrf.mxu0
        %v1489 = vadd.f32 %v1413, %v1488
        %v1490 = vpop.f32.mrf.mxu0
        %1491 = vdwg.mxu0
        %1492 = vst.msk [vmem:[#allocation4] sm:$0xff] %vm1383, %v1462
        %1493 = vst.msk [vmem:[#allocation4 + $0x8] sm:$0xff] %vm1383, %v1465
        %1494 = vst.msk [vmem:[#allocation4 + $0x10] sm:$0xff] %vm1383, %v1470
        %1495 = vst.msk [vmem:[#allocation4 + $0x18] sm:$0xff] %vm1383, %v1473
        %1496 = vst.msk [vmem:[#allocation4 + $0x20] sm:$0xff] %vm1383, %v1478
        %1497 = vst.msk [vmem:[#allocation4 + $0x28] sm:$0xff] %vm1383, %v1481
        %1498 = vst.msk [vmem:[#allocation4 + $0x30] sm:$0xff] %vm1383, %v1486
        %1499 = vst.msk [vmem:[#allocation4 + $0x38] sm:$0xff] %vm1383, %v1489
        %v1500 = vld [vmem:[%s745] sm:$0xf]
        %v1501 = vld [vmem:[%s745 + $0x4] sm:$0xf]
        %v1502 = vld [vmem:[%s745 + $0x8] sm:$0xf]
        %v1503 = vld [vmem:[%s745 + $0xc] sm:$0xf]
        %v1508 = vunpack.c.l.b16 %v1500
        %v1509 = vunpack.c.l.b16 %v1501
        %v1510 = vunpack.c.l.b16 %v1502
        %v1511 = vunpack.c.l.b16 %v1503
        %v1512 = vpack.c.b16 %v1509, %v1508
        %v1513 = vpack.c.b16 %v1511, %v1510
        %v1517 = vsel %vm1013, 0, 0
        %1519 = vmatprep.subr.bf16.mxu0 0
        %1520 = vmatpush1.bf16.msra.mxu0 0
        %1521 = vmatprep.subr.bf16.mxu0 0
        %1522 = vmatpush1.bf16.msra.mxu0 0
        %1523 = vmatprep.subr.bf16.mxu0 0
        %1524 = vmatpush1.bf16.msra.mxu0 0
        %1525 = vmatprep.subr.bf16.mxu0 0
        %1526 = vmatpush1.bf16.msra.mxu0 0
        %1527 = vmatprep.subr.bf16.mxu0 0
        %1528 = vmatpush1.bf16.msra.mxu0 0
        %1529 = vmatprep.subr.bf16.mxu0 0
        %1530 = vmatpush1.bf16.msra.mxu0 0
        %1531 = vmatprep.subr.bf16.mxu0 0
        %1532 = vmatpush1.bf16.msra.mxu0 %v1513
        %1533 = vmatprep.subr.bf16.mxu0 0
        %1534 = vmatpush1.bf16.msra.mxu0 %v1512
        %1535 = vmatprep.subr.bf16.mxu0 0
        %1536 = vmatpush2.bf16.msra.mxu0 0
        %1537 = vmatprep.subr.bf16.mxu0 0
        %1538 = vmatpush2.bf16.msra.mxu0 0
        %1539 = vmatprep.subr.bf16.mxu0 0
        %1540 = vmatpush2.bf16.msra.mxu0 0
        %1541 = vmatprep.subr.bf16.mxu0 0
        %1542 = vmatpush2.bf16.msra.mxu0 0
        %1543 = vmatprep.subr.bf16.mxu0 0
        %1544 = vmatpush2.bf16.msra.mxu0 0
        %1545 = vmatprep.subr.bf16.mxu0 0
        %1546 = vmatpush2.bf16.msra.mxu0 0
        %1547 = vmatprep.subr.bf16.mxu0 0
        %1548 = vmatpush2.bf16.msra.mxu0 0
        %1549 = vmatprep.subr.bf16.mxu0 0
        %1550 = vmatpush2.bf16.msra.mxu0 0
        %1551 = vmatprep.mubr.bf16.mxu0 0
        %1552 = vmatmul.mubr.bf16.gmra.mxu0 %v1517
        %v1553 = vpop.f32.mrf.mxu0
        %v1554 = vadd.f32 0.0, %v1553
        %v1555 = vpop.f32.mrf.mxu0
        %v1556 = vpop.f32.mrf.mxu0
        %v1557 = vpop.f32.mrf.mxu0
        %1558 = vdwg.mxu0
        %v1559 = vld [vmem:[#allocation3] sm:$0xff]
        %v1560 = vadd.f32 %v1559, %v1554
        %v1561 = vld [vmem:[#allocation4] sm:$0xff]
        %1563 = vrot.lane.b32.xlu0 %v1554, 64
        %v1564 = vpop.permute.xlu0 %1563
        %v1566 = vadd.f32 %v1561, %v1564
        %v1567 = vmin.f32 %v1560, 0.0
        %v1568 = vand.u32 2147483647, %v1560
        %v1569 = vsub.f32 0.0, %v1568
        %v1570 = vmul.f32 %v1569, 1.442695
        %v1571 = vpow.pop %v1570
        %v1572 = vadd.f32 %v1571, 1.0
        %v1573 = vlog2.pop %v1572
        %v1574 = vmul.f32 %v1573, 0.6931472
        %v1575 = vsub.f32 %v1567, %v1574
        %v1576 = vadd.f32 %v1575, -1e+30
        %1578 = vrot.lane.b32.xlu0 %v1576, 96
        %v1579 = vpop.permute.xlu0 %1578
        %v1581 = vmax.f32 %v1560, %v1579
        %v1582 = vsub.f32 %v1560, %v1581
        %v1583 = vmul.f32 %v1582, 1.442695
        %v1584 = vpow.pop %v1583
        %1586 = vrot.lane.b32.xlu0 %v1581, 32
        %v1587 = vpop.permute.xlu0 %1586
        %v1589 = vsub.f32 %v1576, %v1587
        %v1590 = vmul.f32 %v1589, 1.442695
        %v1591 = vpow.pop %v1590
        %v1592 = vmul.f32 %v1591, 0.0
        %v1593 = vtanh.pop %v1566
        %v1594 = vmul.f32 %v1584, %v1593
        %1596 = vrot.lane.b32.xlu0 %v1594, 32
        %v1597 = vpop.permute.xlu0 %1596
        %v1599 = vadd.f32 %v1592, %v1597
        %1601 = vrot.lane.b32.xlu0 %v1584, 32
        %v1602 = vpop.permute.xlu0 %1601
        %v1604 = vadd.f32 %v1592, %v1602
        %v1605 = vmul.f32 %v1566, 0.5
        %v1606 = vtanh.pop %v1605
        %v1607 = vadd.f32 %v1606, 1.0
        %v1608 = vmul.f32 %v1607, 0.5
        %v1609 = vrcp.pop %v1604
        %v1610 = vmul.f32 %v1599, %v1609
        %v1611 = vmul.f32 %v1608, %v1610
        %1613 = vrot.lane.b32.xlu0 %v1611, 96
        %v1614 = vpop.permute.xlu0 %1613
        %1616 = vst.msk [vmem:[#allocation5] sm:$0xff] %vm1013, %v1614
        %v1617 = vpack.c.bf16 %v1611, %v1611
        %1619 = vrot.lane.b32.xlu0 %v1617, 96
        %v1620 = vpop.permute.xlu0 %1619
        %v1622 = vsel %vm1013, %v1620, 0
        %1624 = vmatprep.subr.bf16.mxu0 0
        %1625 = vmatpush1.bf16.msra.mxu0 0
        %1626 = vmatprep.subr.bf16.mxu0 0
        %1627 = vmatpush1.bf16.msra.mxu0 0
        %1628 = vmatprep.subr.bf16.mxu0 0
        %1629 = vmatpush1.bf16.msra.mxu0 0
        %1630 = vmatprep.subr.bf16.mxu0 0
        %1631 = vmatpush1.bf16.msra.mxu0 0
        %1632 = vmatprep.subr.bf16.mxu0 0
        %1633 = vmatpush1.bf16.msra.mxu0 0
        %1634 = vmatprep.subr.bf16.mxu0 0
        %1635 = vmatpush1.bf16.msra.mxu0 0
        %1636 = vmatprep.subr.bf16.mxu0 0
        %1637 = vmatpush1.bf16.msra.mxu0 %v1513
        %1638 = vmatprep.subr.bf16.mxu0 0
        %1639 = vmatpush1.bf16.msra.mxu0 %v1512
        %1640 = vmatprep.subr.bf16.mxu0 0
        %1641 = vmatpush2.bf16.msra.mxu0 0
        %1642 = vmatprep.subr.bf16.mxu0 0
        %1643 = vmatpush2.bf16.msra.mxu0 0
        %1644 = vmatprep.subr.bf16.mxu0 0
        %1645 = vmatpush2.bf16.msra.mxu0 0
        %1646 = vmatprep.subr.bf16.mxu0 0
        %1647 = vmatpush2.bf16.msra.mxu0 0
        %1648 = vmatprep.subr.bf16.mxu0 0
        %1649 = vmatpush2.bf16.msra.mxu0 0
        %1650 = vmatprep.subr.bf16.mxu0 0
        %1651 = vmatpush2.bf16.msra.mxu0 0
        %1652 = vmatprep.subr.bf16.mxu0 0
        %1653 = vmatpush2.bf16.msra.mxu0 0
        %1654 = vmatprep.subr.bf16.mxu0 0
        %1655 = vmatpush2.bf16.msra.mxu0 0
        %1656 = vmatprep.mubr.bf16.mxu0 0
        %1657 = vmatmul.mubr.bf16.gmra.mxu0 %v1622
        %v1658 = vpop.f32.mrf.mxu0
        %v1659 = vadd.f32 0.0, %v1658
        %v1660 = vpop.f32.mrf.mxu0
        %v1661 = vpop.f32.mrf.mxu0
        %v1662 = vpop.f32.mrf.mxu0
        %1663 = vdwg.mxu0
        %v1664 = vld [vmem:[#allocation3 + $0x8] sm:$0xff]
        %v1665 = vadd.f32 %v1664, %v1659
        %v1666 = vld [vmem:[#allocation4 + $0x8] sm:$0xff]
        %1668 = vrot.lane.b32.xlu0 %v1659, 64
        %v1669 = vpop.permute.xlu0 %1668
        %v1671 = vadd.f32 %v1666, %v1669
        %v1672 = vmin.f32 %v1665, 0.0
        %v1673 = vand.u32 2147483647, %v1665
        %v1674 = vsub.f32 0.0, %v1673
        %v1675 = vmul.f32 %v1674, 1.442695
        %v1676 = vpow.pop %v1675
        %v1677 = vadd.f32 %v1676, 1.0
        %v1678 = vlog2.pop %v1677
        %v1679 = vmul.f32 %v1678, 0.6931472
        %v1680 = vsub.f32 %v1672, %v1679
        %1682 = vrot.lane.b32.xlu0 %v1680, 96
        %v1683 = vpop.permute.xlu0 %1682
        %v1685 = vadd.f32 %v1581, %v1683
        %v1686 = vmax.f32 %v1665, %v1685
        %v1687 = vsub.f32 %v1665, %v1686
        %v1688 = vmul.f32 %v1687, 1.442695
        %v1689 = vpow.pop %v1688
        %v1690 = vsub.f32 %v1685, %v1686
        %v1691 = vmul.f32 %v1690, 1.442695
        %v1692 = vpow.pop %v1691
        %1694 = vrot.lane.b32.xlu0 %v1599, 96
        %v1695 = vpop.permute.xlu0 %1694
        %v1697 = vmul.f32 %v1692, %v1695
        %v1698 = vtanh.pop %v1671
        %v1699 = vmul.f32 %v1689, %v1698
        %v1700 = vadd.f32 %v1697, %v1699
        %1702 = vrot.lane.b32.xlu0 %v1604, 96
        %v1703 = vpop.permute.xlu0 %1702
        %v1705 = vmul.f32 %v1692, %v1703
        %v1706 = vadd.f32 %v1705, %v1689
        %v1707 = vmul.f32 %v1671, 0.5
        %v1708 = vtanh.pop %v1707
        %v1709 = vadd.f32 %v1708, 1.0
        %v1710 = vmul.f32 %v1709, 0.5
        %v1711 = vrcp.pop %v1706
        %v1712 = vmul.f32 %v1700, %v1711
        %1714 = vrot.lane.b32.xlu0 %v1712, 32
        %v1715 = vpop.permute.xlu0 %1714
        %v1717 = vmul.f32 %v1710, %v1715
        %1719 = vrot.lane.b32.xlu0 %v1717, 96
        %v1720 = vpop.permute.xlu0 %1719
        %1722 = vst.msk [vmem:[#allocation5 + $0x8] sm:$0xff] %vm1013, %v1720
        %v1723 = vpack.c.bf16 %v1717, %v1717
        %1725 = vrot.lane.b32.xlu0 %v1723, 96
        %v1726 = vpop.permute.xlu0 %1725
        %v1728 = vsel %vm1013, %v1726, 0
        %1730 = vmatprep.subr.bf16.mxu0 0
        %1731 = vmatpush1.bf16.msra.mxu0 0
        %1732 = vmatprep.subr.bf16.mxu0 0
        %1733 = vmatpush1.bf16.msra.mxu0 0
        %1734 = vmatprep.subr.bf16.mxu0 0
        %1735 = vmatpush1.bf16.msra.mxu0 0
        %1736 = vmatprep.subr.bf16.mxu0 0
        %1737 = vmatpush1.bf16.msra.mxu0 0
        %1738 = vmatprep.subr.bf16.mxu0 0
        %1739 = vmatpush1.bf16.msra.mxu0 0
        %1740 = vmatprep.subr.bf16.mxu0 0
        %1741 = vmatpush1.bf16.msra.mxu0 0
        %1742 = vmatprep.subr.bf16.mxu0 0
        %1743 = vmatpush1.bf16.msra.mxu0 %v1513
        %1744 = vmatprep.subr.bf16.mxu0 0
        %1745 = vmatpush1.bf16.msra.mxu0 %v1512
        %1746 = vmatprep.subr.bf16.mxu0 0
        %1747 = vmatpush2.bf16.msra.mxu0 0
        %1748 = vmatprep.subr.bf16.mxu0 0
        %1749 = vmatpush2.bf16.msra.mxu0 0
        %1750 = vmatprep.subr.bf16.mxu0 0
        %1751 = vmatpush2.bf16.msra.mxu0 0
        %1752 = vmatprep.subr.bf16.mxu0 0
        %1753 = vmatpush2.bf16.msra.mxu0 0
        %1754 = vmatprep.subr.bf16.mxu0 0
        %1755 = vmatpush2.bf16.msra.mxu0 0
        %1756 = vmatprep.subr.bf16.mxu0 0
        %1757 = vmatpush2.bf16.msra.mxu0 0
        %1758 = vmatprep.subr.bf16.mxu0 0
        %1759 = vmatpush2.bf16.msra.mxu0 0
        %1760 = vmatprep.subr.bf16.mxu0 0
        %1761 = vmatpush2.bf16.msra.mxu0 0
        %1762 = vmatprep.mubr.bf16.mxu0 0
        %1763 = vmatmul.mubr.bf16.gmra.mxu0 %v1728
        %v1764 = vpop.f32.mrf.mxu0
        %v1765 = vadd.f32 0.0, %v1764
        %v1766 = vpop.f32.mrf.mxu0
        %v1767 = vpop.f32.mrf.mxu0
        %v1768 = vpop.f32.mrf.mxu0
        %1769 = vdwg.mxu0
        %v1770 = vld [vmem:[#allocation3 + $0x10] sm:$0xff]
        %v1771 = vadd.f32 %v1770, %v1765
        %v1772 = vld [vmem:[#allocation4 + $0x10] sm:$0xff]
        %1774 = vrot.lane.b32.xlu0 %v1765, 64
        %v1775 = vpop.permute.xlu0 %1774
        %v1777 = vadd.f32 %v1772, %v1775
        %v1778 = vmin.f32 %v1771, 0.0
        %v1779 = vand.u32 2147483647, %v1771
        %v1780 = vsub.f32 0.0, %v1779
        %v1781 = vmul.f32 %v1780, 1.442695
        %v1782 = vpow.pop %v1781
        %v1783 = vadd.f32 %v1782, 1.0
        %v1784 = vlog2.pop %v1783
        %v1785 = vmul.f32 %v1784, 0.6931472
        %v1786 = vsub.f32 %v1778, %v1785
        %1788 = vrot.lane.b32.xlu0 %v1786, 96
        %v1789 = vpop.permute.xlu0 %1788
        %v1791 = vadd.f32 %v1686, %v1789
        %v1792 = vmax.f32 %v1771, %v1791
        %v1793 = vsub.f32 %v1771, %v1792
        %v1794 = vmul.f32 %v1793, 1.442695
        %v1795 = vpow.pop %v1794
        %v1796 = vsub.f32 %v1791, %v1792
        %v1797 = vmul.f32 %v1796, 1.442695
        %v1798 = vpow.pop %v1797
        %v1799 = vmul.f32 %v1798, %v1700
        %v1800 = vtanh.pop %v1777
        %v1801 = vmul.f32 %v1795, %v1800
        %v1802 = vadd.f32 %v1799, %v1801
        %v1803 = vmul.f32 %v1798, %v1706
        %v1804 = vadd.f32 %v1803, %v1795
        %v1805 = vmul.f32 %v1777, 0.5
        %v1806 = vtanh.pop %v1805
        %v1807 = vadd.f32 %v1806, 1.0
        %v1808 = vmul.f32 %v1807, 0.5
        %v1809 = vrcp.pop %v1804
        %v1810 = vmul.f32 %v1802, %v1809
        %1812 = vrot.lane.b32.xlu0 %v1810, 32
        %v1813 = vpop.permute.xlu0 %1812
        %v1815 = vmul.f32 %v1808, %v1813
        %1817 = vrot.lane.b32.xlu0 %v1815, 96
        %v1818 = vpop.permute.xlu0 %1817
        %1820 = vst.msk [vmem:[#allocation5 + $0x10] sm:$0xff] %vm1013, %v1818
        %v1821 = vpack.c.bf16 %v1815, %v1815
        %1823 = vrot.lane.b32.xlu0 %v1821, 96
        %v1824 = vpop.permute.xlu0 %1823
        %v1826 = vsel %vm1013, %v1824, 0
        %1828 = vmatprep.subr.bf16.mxu0 0
        %1829 = vmatpush1.bf16.msra.mxu0 0
        %1830 = vmatprep.subr.bf16.mxu0 0
        %1831 = vmatpush1.bf16.msra.mxu0 0
        %1832 = vmatprep.subr.bf16.mxu0 0
        %1833 = vmatpush1.bf16.msra.mxu0 0
        %1834 = vmatprep.subr.bf16.mxu0 0
        %1835 = vmatpush1.bf16.msra.mxu0 0
        %1836 = vmatprep.subr.bf16.mxu0 0
        %1837 = vmatpush1.bf16.msra.mxu0 0
        %1838 = vmatprep.subr.bf16.mxu0 0
        %1839 = vmatpush1.bf16.msra.mxu0 0
        %1840 = vmatprep.subr.bf16.mxu0 0
        %1841 = vmatpush1.bf16.msra.mxu0 %v1513
        %1842 = vmatprep.subr.bf16.mxu0 0
        %1843 = vmatpush1.bf16.msra.mxu0 %v1512
        %1844 = vmatprep.subr.bf16.mxu0 0
        %1845 = vmatpush2.bf16.msra.mxu0 0
        %1846 = vmatprep.subr.bf16.mxu0 0
        %1847 = vmatpush2.bf16.msra.mxu0 0
        %1848 = vmatprep.subr.bf16.mxu0 0
        %1849 = vmatpush2.bf16.msra.mxu0 0
        %1850 = vmatprep.subr.bf16.mxu0 0
        %1851 = vmatpush2.bf16.msra.mxu0 0
        %1852 = vmatprep.subr.bf16.mxu0 0
        %1853 = vmatpush2.bf16.msra.mxu0 0
        %1854 = vmatprep.subr.bf16.mxu0 0
        %1855 = vmatpush2.bf16.msra.mxu0 0
        %1856 = vmatprep.subr.bf16.mxu0 0
        %1857 = vmatpush2.bf16.msra.mxu0 0
        %1858 = vmatprep.subr.bf16.mxu0 0
        %1859 = vmatpush2.bf16.msra.mxu0 0
        %1860 = vmatprep.mubr.bf16.mxu0 0
        %1861 = vmatmul.mubr.bf16.gmra.mxu0 %v1826
        %v1862 = vpop.f32.mrf.mxu0
        %v1863 = vadd.f32 0.0, %v1862
        %v1864 = vpop.f32.mrf.mxu0
        %v1865 = vpop.f32.mrf.mxu0
        %v1866 = vpop.f32.mrf.mxu0
        %1867 = vdwg.mxu0
        %v1868 = vld [vmem:[#allocation3 + $0x18] sm:$0xff]
        %v1869 = vadd.f32 %v1868, %v1863
        %v1870 = vld [vmem:[#allocation4 + $0x18] sm:$0xff]
        %1872 = vrot.lane.b32.xlu0 %v1863, 64
        %v1873 = vpop.permute.xlu0 %1872
        %v1875 = vadd.f32 %v1870, %v1873
        %v1876 = vmin.f32 %v1869, 0.0
        %v1877 = vand.u32 2147483647, %v1869
        %v1878 = vsub.f32 0.0, %v1877
        %v1879 = vmul.f32 %v1878, 1.442695
        %v1880 = vpow.pop %v1879
        %v1881 = vadd.f32 %v1880, 1.0
        %v1882 = vlog2.pop %v1881
        %v1883 = vmul.f32 %v1882, 0.6931472
        %v1884 = vsub.f32 %v1876, %v1883
        %1886 = vrot.lane.b32.xlu0 %v1884, 96
        %v1887 = vpop.permute.xlu0 %1886
        %v1889 = vadd.f32 %v1792, %v1887
        %v1890 = vmax.f32 %v1869, %v1889
        %v1891 = vsub.f32 %v1869, %v1890
        %v1892 = vmul.f32 %v1891, 1.442695
        %v1893 = vpow.pop %v1892
        %v1894 = vsub.f32 %v1889, %v1890
        %v1895 = vmul.f32 %v1894, 1.442695
        %v1896 = vpow.pop %v1895
        %v1897 = vmul.f32 %v1896, %v1802
        %v1898 = vtanh.pop %v1875
        %v1899 = vmul.f32 %v1893, %v1898
        %v1900 = vadd.f32 %v1897, %v1899
        %v1901 = vmul.f32 %v1896, %v1804
        %v1902 = vadd.f32 %v1901, %v1893
        %v1903 = vmul.f32 %v1875, 0.5
        %v1904 = vtanh.pop %v1903
        %v1905 = vadd.f32 %v1904, 1.0
        %v1906 = vmul.f32 %v1905, 0.5
        %v1907 = vrcp.pop %v1902
        %v1908 = vmul.f32 %v1900, %v1907
        %1910 = vrot.lane.b32.xlu0 %v1908, 32
        %v1911 = vpop.permute.xlu0 %1910
        %v1913 = vmul.f32 %v1906, %v1911
        %1915 = vrot.lane.b32.xlu0 %v1913, 96
        %v1916 = vpop.permute.xlu0 %1915
        %1918 = vst.msk [vmem:[#allocation5 + $0x18] sm:$0xff] %vm1013, %v1916
        %v1919 = vpack.c.bf16 %v1913, %v1913
        %1921 = vrot.lane.b32.xlu0 %v1919, 96
        %v1922 = vpop.permute.xlu0 %1921
        %v1924 = vsel %vm1013, %v1922, 0
        %1926 = vmatprep.subr.bf16.mxu0 0
        %1927 = vmatpush1.bf16.msra.mxu0 0
        %1928 = vmatprep.subr.bf16.mxu0 0
        %1929 = vmatpush1.bf16.msra.mxu0 0
        %1930 = vmatprep.subr.bf16.mxu0 0
        %1931 = vmatpush1.bf16.msra.mxu0 0
        %1932 = vmatprep.subr.bf16.mxu0 0
        %1933 = vmatpush1.bf16.msra.mxu0 0
        %1934 = vmatprep.subr.bf16.mxu0 0
        %1935 = vmatpush1.bf16.msra.mxu0 0
        %1936 = vmatprep.subr.bf16.mxu0 0
        %1937 = vmatpush1.bf16.msra.mxu0 0
        %1938 = vmatprep.subr.bf16.mxu0 0
        %1939 = vmatpush1.bf16.msra.mxu0 %v1513
        %1940 = vmatprep.subr.bf16.mxu0 0
        %1941 = vmatpush1.bf16.msra.mxu0 %v1512
        %1942 = vmatprep.subr.bf16.mxu0 0
        %1943 = vmatpush2.bf16.msra.mxu0 0
        %1944 = vmatprep.subr.bf16.mxu0 0
        %1945 = vmatpush2.bf16.msra.mxu0 0
        %1946 = vmatprep.subr.bf16.mxu0 0
        %1947 = vmatpush2.bf16.msra.mxu0 0
        %1948 = vmatprep.subr.bf16.mxu0 0
        %1949 = vmatpush2.bf16.msra.mxu0 0
        %1950 = vmatprep.subr.bf16.mxu0 0
        %1951 = vmatpush2.bf16.msra.mxu0 0
        %1952 = vmatprep.subr.bf16.mxu0 0
        %1953 = vmatpush2.bf16.msra.mxu0 0
        %1954 = vmatprep.subr.bf16.mxu0 0
        %1955 = vmatpush2.bf16.msra.mxu0 0
        %1956 = vmatprep.subr.bf16.mxu0 0
        %1957 = vmatpush2.bf16.msra.mxu0 0
        %1958 = vmatprep.mubr.bf16.mxu0 0
        %1959 = vmatmul.mubr.bf16.gmra.mxu0 %v1924
        %v1960 = vpop.f32.mrf.mxu0
        %v1961 = vadd.f32 0.0, %v1960
        %v1962 = vpop.f32.mrf.mxu0
        %v1963 = vpop.f32.mrf.mxu0
        %v1964 = vpop.f32.mrf.mxu0
        %1965 = vdwg.mxu0
        %v1966 = vld [vmem:[#allocation3 + $0x20] sm:$0xff]
        %v1967 = vadd.f32 %v1966, %v1961
        %v1968 = vld [vmem:[#allocation4 + $0x20] sm:$0xff]
        %1970 = vrot.lane.b32.xlu0 %v1961, 64
        %v1971 = vpop.permute.xlu0 %1970
        %v1973 = vadd.f32 %v1968, %v1971
        %v1974 = vmin.f32 %v1967, 0.0
        %v1975 = vand.u32 2147483647, %v1967
        %v1976 = vsub.f32 0.0, %v1975
        %v1977 = vmul.f32 %v1976, 1.442695
        %v1978 = vpow.pop %v1977
        %v1979 = vadd.f32 %v1978, 1.0
        %v1980 = vlog2.pop %v1979
        %v1981 = vmul.f32 %v1980, 0.6931472
        %v1982 = vsub.f32 %v1974, %v1981
        %1984 = vrot.lane.b32.xlu0 %v1982, 96
        %v1985 = vpop.permute.xlu0 %1984
        %v1987 = vadd.f32 %v1890, %v1985
        %v1988 = vmax.f32 %v1967, %v1987
        %v1989 = vsub.f32 %v1967, %v1988
        %v1990 = vmul.f32 %v1989, 1.442695
        %v1991 = vpow.pop %v1990
        %v1992 = vsub.f32 %v1987, %v1988
        %v1993 = vmul.f32 %v1992, 1.442695
        %v1994 = vpow.pop %v1993
        %v1995 = vmul.f32 %v1994, %v1900
        %v1996 = vtanh.pop %v1973
        %v1997 = vmul.f32 %v1991, %v1996
        %v1998 = vadd.f32 %v1995, %v1997
        %v1999 = vmul.f32 %v1994, %v1902
        %v2000 = vadd.f32 %v1999, %v1991
        %v2001 = vmul.f32 %v1973, 0.5
        %v2002 = vtanh.pop %v2001
        %v2003 = vadd.f32 %v2002, 1.0
        %v2004 = vmul.f32 %v2003, 0.5
        %v2005 = vrcp.pop %v2000
        %v2006 = vmul.f32 %v1998, %v2005
        %2008 = vrot.lane.b32.xlu0 %v2006, 32
        %v2009 = vpop.permute.xlu0 %2008
        %v2011 = vmul.f32 %v2004, %v2009
        %2013 = vrot.lane.b32.xlu0 %v2011, 96
        %v2014 = vpop.permute.xlu0 %2013
        %2016 = vst.msk [vmem:[#allocation5 + $0x20] sm:$0xff] %vm1013, %v2014
        %v2017 = vpack.c.bf16 %v2011, %v2011
        %2019 = vrot.lane.b32.xlu0 %v2017, 96
        %v2020 = vpop.permute.xlu0 %2019
        %v2022 = vsel %vm1013, %v2020, 0
        %2024 = vmatprep.subr.bf16.mxu0 0
        %2025 = vmatpush1.bf16.msra.mxu0 0
        %2026 = vmatprep.subr.bf16.mxu0 0
        %2027 = vmatpush1.bf16.msra.mxu0 0
        %2028 = vmatprep.subr.bf16.mxu0 0
        %2029 = vmatpush1.bf16.msra.mxu0 0
        %2030 = vmatprep.subr.bf16.mxu0 0
        %2031 = vmatpush1.bf16.msra.mxu0 0
        %2032 = vmatprep.subr.bf16.mxu0 0
        %2033 = vmatpush1.bf16.msra.mxu0 0
        %2034 = vmatprep.subr.bf16.mxu0 0
        %2035 = vmatpush1.bf16.msra.mxu0 0
        %2036 = vmatprep.subr.bf16.mxu0 0
        %2037 = vmatpush1.bf16.msra.mxu0 %v1513
        %2038 = vmatprep.subr.bf16.mxu0 0
        %2039 = vmatpush1.bf16.msra.mxu0 %v1512
        %2040 = vmatprep.subr.bf16.mxu0 0
        %2041 = vmatpush2.bf16.msra.mxu0 0
        %2042 = vmatprep.subr.bf16.mxu0 0
        %2043 = vmatpush2.bf16.msra.mxu0 0
        %2044 = vmatprep.subr.bf16.mxu0 0
        %2045 = vmatpush2.bf16.msra.mxu0 0
        %2046 = vmatprep.subr.bf16.mxu0 0
        %2047 = vmatpush2.bf16.msra.mxu0 0
        %2048 = vmatprep.subr.bf16.mxu0 0
        %2049 = vmatpush2.bf16.msra.mxu0 0
        %2050 = vmatprep.subr.bf16.mxu0 0
        %2051 = vmatpush2.bf16.msra.mxu0 0
        %2052 = vmatprep.subr.bf16.mxu0 0
        %2053 = vmatpush2.bf16.msra.mxu0 0
        %2054 = vmatprep.subr.bf16.mxu0 0
        %2055 = vmatpush2.bf16.msra.mxu0 0
        %2056 = vmatprep.mubr.bf16.mxu0 0
        %2057 = vmatmul.mubr.bf16.gmra.mxu0 %v2022
        %v2058 = vpop.f32.mrf.mxu0
        %v2059 = vadd.f32 0.0, %v2058
        %v2060 = vpop.f32.mrf.mxu0
        %v2061 = vpop.f32.mrf.mxu0
        %v2062 = vpop.f32.mrf.mxu0
        %2063 = vdwg.mxu0
        %v2064 = vld [vmem:[#allocation3 + $0x28] sm:$0xff]
        %v2065 = vadd.f32 %v2064, %v2059
        %v2066 = vld [vmem:[#allocation4 + $0x28] sm:$0xff]
        %2068 = vrot.lane.b32.xlu0 %v2059, 64
        %v2069 = vpop.permute.xlu0 %2068
        %v2071 = vadd.f32 %v2066, %v2069
        %v2072 = vmin.f32 %v2065, 0.0
        %v2073 = vand.u32 2147483647, %v2065
        %v2074 = vsub.f32 0.0, %v2073
        %v2075 = vmul.f32 %v2074, 1.442695
        %v2076 = vpow.pop %v2075
        %v2077 = vadd.f32 %v2076, 1.0
        %v2078 = vlog2.pop %v2077
        %v2079 = vmul.f32 %v2078, 0.6931472
        %v2080 = vsub.f32 %v2072, %v2079
        %2082 = vrot.lane.b32.xlu0 %v2080, 96
        %v2083 = vpop.permute.xlu0 %2082
        %v2085 = vadd.f32 %v1988, %v2083
        %v2086 = vmax.f32 %v2065, %v2085
        %v2087 = vsub.f32 %v2065, %v2086
        %v2088 = vmul.f32 %v2087, 1.442695
        %v2089 = vpow.pop %v2088
        %v2090 = vsub.f32 %v2085, %v2086
        %v2091 = vmul.f32 %v2090, 1.442695
        %v2092 = vpow.pop %v2091
        %v2093 = vmul.f32 %v2092, %v1998
        %v2094 = vtanh.pop %v2071
        %v2095 = vmul.f32 %v2089, %v2094
        %v2096 = vadd.f32 %v2093, %v2095
        %v2097 = vmul.f32 %v2092, %v2000
        %v2098 = vadd.f32 %v2097, %v2089
        %v2099 = vmul.f32 %v2071, 0.5
        %v2100 = vtanh.pop %v2099
        %v2101 = vadd.f32 %v2100, 1.0
        %v2102 = vmul.f32 %v2101, 0.5
        %v2103 = vrcp.pop %v2098
        %v2104 = vmul.f32 %v2096, %v2103
        %2106 = vrot.lane.b32.xlu0 %v2104, 32
        %v2107 = vpop.permute.xlu0 %2106
        %v2109 = vmul.f32 %v2102, %v2107
        %2111 = vrot.lane.b32.xlu0 %v2109, 96
        %v2112 = vpop.permute.xlu0 %2111
        %2114 = vst.msk [vmem:[#allocation5 + $0x28] sm:$0xff] %vm1013, %v2112
        %v2115 = vpack.c.bf16 %v2109, %v2109
        %2117 = vrot.lane.b32.xlu0 %v2115, 96
        %v2118 = vpop.permute.xlu0 %2117
        %v2120 = vsel %vm1013, %v2118, 0
        %2122 = vmatprep.subr.bf16.mxu0 0
        %2123 = vmatpush1.bf16.msra.mxu0 0
        %2124 = vmatprep.subr.bf16.mxu0 0
        %2125 = vmatpush1.bf16.msra.mxu0 0
        %2126 = vmatprep.subr.bf16.mxu0 0
        %2127 = vmatpush1.bf16.msra.mxu0 0
        %2128 = vmatprep.subr.bf16.mxu0 0
        %2129 = vmatpush1.bf16.msra.mxu0 0
        %2130 = vmatprep.subr.bf16.mxu0 0
        %2131 = vmatpush1.bf16.msra.mxu0 0
        %2132 = vmatprep.subr.bf16.mxu0 0
        %2133 = vmatpush1.bf16.msra.mxu0 0
        %2134 = vmatprep.subr.bf16.mxu0 0
        %2135 = vmatpush1.bf16.msra.mxu0 %v1513
        %2136 = vmatprep.subr.bf16.mxu0 0
        %2137 = vmatpush1.bf16.msra.mxu0 %v1512
        %2138 = vmatprep.subr.bf16.mxu0 0
        %2139 = vmatpush2.bf16.msra.mxu0 0
        %2140 = vmatprep.subr.bf16.mxu0 0
        %2141 = vmatpush2.bf16.msra.mxu0 0
        %2142 = vmatprep.subr.bf16.mxu0 0
        %2143 = vmatpush2.bf16.msra.mxu0 0
        %2144 = vmatprep.subr.bf16.mxu0 0
        %2145 = vmatpush2.bf16.msra.mxu0 0
        %2146 = vmatprep.subr.bf16.mxu0 0
        %2147 = vmatpush2.bf16.msra.mxu0 0
        %2148 = vmatprep.subr.bf16.mxu0 0
        %2149 = vmatpush2.bf16.msra.mxu0 0
        %2150 = vmatprep.subr.bf16.mxu0 0
        %2151 = vmatpush2.bf16.msra.mxu0 0
        %2152 = vmatprep.subr.bf16.mxu0 0
        %2153 = vmatpush2.bf16.msra.mxu0 0
        %2154 = vmatprep.mubr.bf16.mxu0 0
        %2155 = vmatmul.mubr.bf16.gmra.mxu0 %v2120
        %v2156 = vpop.f32.mrf.mxu0
        %v2157 = vadd.f32 0.0, %v2156
        %v2158 = vpop.f32.mrf.mxu0
        %v2159 = vpop.f32.mrf.mxu0
        %v2160 = vpop.f32.mrf.mxu0
        %2161 = vdwg.mxu0
        %v2162 = vld [vmem:[#allocation3 + $0x30] sm:$0xff]
        %v2163 = vadd.f32 %v2162, %v2157
        %v2164 = vld [vmem:[#allocation4 + $0x30] sm:$0xff]
        %2166 = vrot.lane.b32.xlu0 %v2157, 64
        %v2167 = vpop.permute.xlu0 %2166
        %v2169 = vadd.f32 %v2164, %v2167
        %v2170 = vmin.f32 %v2163, 0.0
        %v2171 = vand.u32 2147483647, %v2163
        %v2172 = vsub.f32 0.0, %v2171
        %v2173 = vmul.f32 %v2172, 1.442695
        %v2174 = vpow.pop %v2173
        %v2175 = vadd.f32 %v2174, 1.0
        %v2176 = vlog2.pop %v2175
        %v2177 = vmul.f32 %v2176, 0.6931472
        %v2178 = vsub.f32 %v2170, %v2177
        %2180 = vrot.lane.b32.xlu0 %v2178, 96
        %v2181 = vpop.permute.xlu0 %2180
        %v2183 = vadd.f32 %v2086, %v2181
        %v2184 = vmax.f32 %v2163, %v2183
        %v2185 = vsub.f32 %v2163, %v2184
        %v2186 = vmul.f32 %v2185, 1.442695
        %v2187 = vpow.pop %v2186
        %v2188 = vsub.f32 %v2183, %v2184
        %v2189 = vmul.f32 %v2188, 1.442695
        %v2190 = vpow.pop %v2189
        %v2191 = vmul.f32 %v2190, %v2096
        %v2192 = vtanh.pop %v2169
        %v2193 = vmul.f32 %v2187, %v2192
        %v2194 = vadd.f32 %v2191, %v2193
        %v2195 = vmul.f32 %v2190, %v2098
        %v2196 = vadd.f32 %v2195, %v2187
        %v2197 = vmul.f32 %v2169, 0.5
        %v2198 = vtanh.pop %v2197
        %v2199 = vadd.f32 %v2198, 1.0
        %v2200 = vmul.f32 %v2199, 0.5
        %v2201 = vrcp.pop %v2196
        %v2202 = vmul.f32 %v2194, %v2201
        %2204 = vrot.lane.b32.xlu0 %v2202, 32
        %v2205 = vpop.permute.xlu0 %2204
        %v2207 = vmul.f32 %v2200, %v2205
        %2209 = vrot.lane.b32.xlu0 %v2207, 96
        %v2210 = vpop.permute.xlu0 %2209
        %2212 = vst.msk [vmem:[#allocation5 + $0x30] sm:$0xff] %vm1013, %v2210
        %v2213 = vpack.c.bf16 %v2207, %v2207
        %2215 = vrot.lane.b32.xlu0 %v2213, 96
        %v2216 = vpop.permute.xlu0 %2215
        %v2218 = vsel %vm1013, %v2216, 0
        %2220 = vmatprep.subr.bf16.mxu0 0
        %2221 = vmatpush1.bf16.msra.mxu0 0
        %2222 = vmatprep.subr.bf16.mxu0 0
        %2223 = vmatpush1.bf16.msra.mxu0 0
        %2224 = vmatprep.subr.bf16.mxu0 0
        %2225 = vmatpush1.bf16.msra.mxu0 0
        %2226 = vmatprep.subr.bf16.mxu0 0
        %2227 = vmatpush1.bf16.msra.mxu0 0
        %2228 = vmatprep.subr.bf16.mxu0 0
        %2229 = vmatpush1.bf16.msra.mxu0 0
        %2230 = vmatprep.subr.bf16.mxu0 0
        %2231 = vmatpush1.bf16.msra.mxu0 0
        %2232 = vmatprep.subr.bf16.mxu0 0
        %2233 = vmatpush1.bf16.msra.mxu0 %v1513
        %2234 = vmatprep.subr.bf16.mxu0 0
        %2235 = vmatpush1.bf16.msra.mxu0 %v1512
        %2236 = vmatprep.subr.bf16.mxu0 0
        %2237 = vmatpush2.bf16.msra.mxu0 0
        %2238 = vmatprep.subr.bf16.mxu0 0
        %2239 = vmatpush2.bf16.msra.mxu0 0
        %2240 = vmatprep.subr.bf16.mxu0 0
        %2241 = vmatpush2.bf16.msra.mxu0 0
        %2242 = vmatprep.subr.bf16.mxu0 0
        %2243 = vmatpush2.bf16.msra.mxu0 0
        %2244 = vmatprep.subr.bf16.mxu0 0
        %2245 = vmatpush2.bf16.msra.mxu0 0
        %2246 = vmatprep.subr.bf16.mxu0 0
        %2247 = vmatpush2.bf16.msra.mxu0 0
        %2248 = vmatprep.subr.bf16.mxu0 0
        %2249 = vmatpush2.bf16.msra.mxu0 0
        %2250 = vmatprep.subr.bf16.mxu0 0
        %2251 = vmatpush2.bf16.msra.mxu0 0
        %2252 = vmatprep.mubr.bf16.mxu0 0
        %2253 = vmatmul.mubr.bf16.gmra.mxu0 %v2218
        %v2254 = vpop.f32.mrf.mxu0
        %v2255 = vadd.f32 0.0, %v2254
        %v2256 = vpop.f32.mrf.mxu0
        %v2257 = vpop.f32.mrf.mxu0
        %v2258 = vpop.f32.mrf.mxu0
        %2259 = vdwg.mxu0
        %v2260 = vld [vmem:[#allocation3 + $0x38] sm:$0xff]
        %v2261 = vadd.f32 %v2260, %v2255
        %v2262 = vld [vmem:[#allocation4 + $0x38] sm:$0xff]
        %2264 = vrot.lane.b32.xlu0 %v2255, 64
        %v2265 = vpop.permute.xlu0 %2264
        %v2267 = vadd.f32 %v2262, %v2265
        %v2268 = vmin.f32 %v2261, 0.0
        %v2269 = vand.u32 2147483647, %v2261
        %v2270 = vsub.f32 0.0, %v2269
        %v2271 = vmul.f32 %v2270, 1.442695
        %v2272 = vpow.pop %v2271
        %v2273 = vadd.f32 %v2272, 1.0
        %v2274 = vlog2.pop %v2273
        %v2275 = vmul.f32 %v2274, 0.6931472
        %v2276 = vsub.f32 %v2268, %v2275
        %2278 = vrot.lane.b32.xlu0 %v2276, 96
        %v2279 = vpop.permute.xlu0 %2278
        %v2281 = vadd.f32 %v2184, %v2279
        %v2282 = vmax.f32 %v2261, %v2281
        %v2283 = vsub.f32 %v2261, %v2282
        %v2284 = vmul.f32 %v2283, 1.442695
        %v2285 = vpow.pop %v2284
        %v2286 = vsub.f32 %v2281, %v2282
        %v2287 = vmul.f32 %v2286, 1.442695
        %v2288 = vpow.pop %v2287
        %v2289 = vmul.f32 %v2288, %v2194
        %v2290 = vtanh.pop %v2267
        %v2291 = vmul.f32 %v2285, %v2290
        %v2292 = vadd.f32 %v2289, %v2291
        %v2293 = vmul.f32 %v2288, %v2196
        %v2294 = vadd.f32 %v2293, %v2285
        %v2295 = vmul.f32 %v2267, 0.5
        %v2296 = vtanh.pop %v2295
        %v2297 = vadd.f32 %v2296, 1.0
        %v2298 = vmul.f32 %v2297, 0.5
        %v2299 = vrcp.pop %v2294
        %v2300 = vmul.f32 %v2292, %v2299
        %2302 = vrot.lane.b32.xlu0 %v2300, 32
        %v2303 = vpop.permute.xlu0 %2302
        %v2305 = vmul.f32 %v2298, %v2303
        %2307 = vrot.lane.b32.xlu0 %v2305, 96
        %v2308 = vpop.permute.xlu0 %2307
        %2310 = vst.msk [vmem:[#allocation5 + $0x38] sm:$0xff] %vm1013, %v2308
        %v2311 = vld [vmem:[#allocation5] sm:$0xff]
        %v2312 = vld [vmem:[#allocation5 + $0x8] sm:$0xff]
        %v2313 = vld [vmem:[#allocation5 + $0x10] sm:$0xff]
        %v2314 = vld [vmem:[#allocation5 + $0x18] sm:$0xff]
        %v2315 = vld [vmem:[#allocation5 + $0x20] sm:$0xff]
        %v2316 = vld [vmem:[#allocation5 + $0x28] sm:$0xff]
        %v2317 = vld [vmem:[#allocation5 + $0x30] sm:$0xff]
        %v2318 = vld [vmem:[#allocation5 + $0x38] sm:$0xff]
        %v2319 = vld [vmem:[%s15] sm:$0xf]
        %v2320 = vld [vmem:[%s15 + $0x4] sm:$0xf]
        %v2321 = vld [vmem:[%s15 + $0x8] sm:$0xf]
        %v2322 = vld [vmem:[%s15 + $0xc] sm:$0xf]
        %v2323 = vld [vmem:[%s16] sm:$0xf]
        %v2324 = vpack.c.bf16 %v2312, %v2311
        %v2325 = vpack.c.bf16 %v2314, %v2313
        %v2326 = vpack.c.bf16 %v2316, %v2315
        %v2327 = vpack.c.bf16 %v2318, %v2317
        %v2332 = vunpack.c.l.b16 %v2319
        %v2333 = vunpack.c.l.b16 %v2320
        %v2334 = vunpack.c.l.b16 %v2321
        %v2335 = vunpack.c.l.b16 %v2322
        %v2336 = vpack.c.b16 %v2333, %v2332
        %v2337 = vpack.c.b16 %v2335, %v2334
        %v2341 = vsel %vm1013, %v2324, 0
        %v2344 = vsel %vm1013, %v2325, 0
        %v2347 = vsel %vm1013, %v2326, 0
        %v2350 = vsel %vm1013, %v2327, 0
        %2352 = vmatprep.subr.bf16.mxu0 0
        %2353 = vmatpush1.bf16.msra.mxu0 0
        %2354 = vmatprep.subr.bf16.mxu0 0
        %2355 = vmatpush1.bf16.msra.mxu0 0
        %2356 = vmatprep.subr.bf16.mxu0 0
        %2357 = vmatpush1.bf16.msra.mxu0 0
        %2358 = vmatprep.subr.bf16.mxu0 0
        %2359 = vmatpush1.bf16.msra.mxu0 0
        %2360 = vmatprep.subr.bf16.mxu0 0
        %2361 = vmatpush1.bf16.msra.mxu0 0
        %2362 = vmatprep.subr.bf16.mxu0 0
        %2363 = vmatpush1.bf16.msra.mxu0 0
        %2364 = vmatprep.subr.bf16.mxu0 0
        %2365 = vmatpush1.bf16.msra.mxu0 %v2337
        %2366 = vmatprep.subr.bf16.mxu0 0
        %2367 = vmatpush1.bf16.msra.mxu0 %v2336
        %2368 = vmatprep.subr.bf16.mxu0 0
        %2369 = vmatpush2.bf16.msra.mxu0 0
        %2370 = vmatprep.subr.bf16.mxu0 0
        %2371 = vmatpush2.bf16.msra.mxu0 0
        %2372 = vmatprep.subr.bf16.mxu0 0
        %2373 = vmatpush2.bf16.msra.mxu0 0
        %2374 = vmatprep.subr.bf16.mxu0 0
        %2375 = vmatpush2.bf16.msra.mxu0 0
        %2376 = vmatprep.subr.bf16.mxu0 0
        %2377 = vmatpush2.bf16.msra.mxu0 0
        %2378 = vmatprep.subr.bf16.mxu0 0
        %2379 = vmatpush2.bf16.msra.mxu0 0
        %2380 = vmatprep.subr.bf16.mxu0 0
        %2381 = vmatpush2.bf16.msra.mxu0 0
        %2382 = vmatprep.subr.bf16.mxu0 0
        %2383 = vmatpush2.bf16.msra.mxu0 0
        %2384 = vmatprep.mubr.bf16.mxu0 0
        %2385 = vmatmul.mubr.bf16.gmra.mxu0 %v2341
        %v2386 = vpop.f32.mrf.mxu0
        %v2387 = vadd.f32 0.0, %v2386
        %v2388 = vpop.f32.mrf.mxu0
        %v2389 = vpop.f32.mrf.mxu0
        %v2390 = vadd.f32 0.0, %v2389
        %v2391 = vpop.f32.mrf.mxu0
        %2392 = vmatprep.mubr.bf16.mxu0 0
        %2393 = vmatmul.mubr.bf16.gmra.mxu0 %v2344
        %v2394 = vpop.f32.mrf.mxu0
        %v2395 = vadd.f32 0.0, %v2394
        %v2396 = vpop.f32.mrf.mxu0
        %v2397 = vpop.f32.mrf.mxu0
        %v2398 = vadd.f32 0.0, %v2397
        %v2399 = vpop.f32.mrf.mxu0
        %2400 = vmatprep.mubr.bf16.mxu0 0
        %2401 = vmatmul.mubr.bf16.gmra.mxu0 %v2347
        %v2402 = vpop.f32.mrf.mxu0
        %v2403 = vadd.f32 0.0, %v2402
        %v2404 = vpop.f32.mrf.mxu0
        %v2405 = vpop.f32.mrf.mxu0
        %v2406 = vadd.f32 0.0, %v2405
        %v2407 = vpop.f32.mrf.mxu0
        %2408 = vmatprep.mubr.bf16.mxu0 0
        %2409 = vmatmul.mubr.bf16.gmra.mxu0 %v2350
        %v2410 = vpop.f32.mrf.mxu0
        %v2411 = vadd.f32 0.0, %v2410
        %v2412 = vpop.f32.mrf.mxu0
        %v2413 = vpop.f32.mrf.mxu0
        %v2414 = vadd.f32 0.0, %v2413
        %v2415 = vpop.f32.mrf.mxu0
        %2416 = vdwg.mxu0
        %v2417 = vmul.f32 %v2387, 0.125
        %v2418 = vmul.f32 %v2390, 0.125
        %v2419 = vmul.f32 %v2395, 0.125
        %v2420 = vmul.f32 %v2398, 0.125
        %v2421 = vmul.f32 %v2403, 0.125
        %v2422 = vmul.f32 %v2406, 0.125
        %v2423 = vmul.f32 %v2411, 0.125
        %v2424 = vmul.f32 %v2414, 0.125
        %vm2425 = vcmask 31744
        %v2427 = vsel %vm2425, %v2417, 0
        %v2430 = vsel %vm2425, %v2418, 0
        %v2433 = vsel %vm2425, %v2419, 0
        %v2436 = vsel %vm2425, %v2420, 0
        %v2439 = vsel %vm2425, %v2421, 0
        %v2442 = vsel %vm2425, %v2422, 0
        %v2445 = vsel %vm2425, %v2423, 0
        %v2448 = vsel %vm2425, %v2424, 0
        %vm2450 = vcmask 1043456
        %v2452 = vsel %vm2450, %v2323, 0
        %2454 = vmatprep.subr.mxu0 0.0
        %2455 = vmatpush1.msra.mxu0 0.0
        %2456 = vmatprep.subr.mxu0 0.0
        %2457 = vmatpush1.msra.mxu0 0.0
        %2458 = vmatprep.subr.mxu0 0.0
        %2459 = vmatpush1.msra.mxu0 0.0
        %2460 = vmatprep.subr.mxu0 0.0
        %2461 = vmatpush1.msra.mxu0 0.0
        %2462 = vmatprep.subr.mxu0 0.0
        %2463 = vmatpush1.msra.mxu0 0.0
        %2464 = vmatprep.subr.mxu0 0.0
        %2465 = vmatpush1.msra.mxu0 0.0
        %2466 = vmatprep.subr.mxu0 0.0
        %2467 = vmatpush1.msra.mxu0 0.0
        %2468 = vmatprep.subr.mxu0 0.0
        %2469 = vmatpush1.msra.mxu0 0.0
        %2470 = vmatprep.subr.mxu0 0.0
        %2471 = vmatpush1.msra.mxu0 0.0
        %2472 = vmatprep.subr.mxu0 0.0
        %2473 = vmatpush1.msra.mxu0 0.0
        %2474 = vmatprep.subr.mxu0 0.0
        %2475 = vmatpush1.msra.mxu0 0.0
        %2476 = vmatprep.subr.mxu0 0.0
        %2477 = vmatpush1.msra.mxu0 0.0
        %2478 = vmatprep.subr.mxu0 0.0
        %2479 = vmatpush1.msra.mxu0 0.0
        %2480 = vmatprep.subr.mxu0 0.0
        %2481 = vmatpush1.msra.mxu0 0.0
        %2482 = vmatprep.subr.mxu0 0.0
        %2483 = vmatpush1.msra.mxu0 0.0
        %2484 = vmatprep.subr.mxu0 0.0
        %2485 = vmatpush1.msra.mxu0 %v2452
        %2486 = vmatprep.subr.mxu0 0.0
        %2487 = vmatpush2.msra.mxu0 0.0
        %2488 = vmatprep.subr.mxu0 0.0
        %2489 = vmatpush2.msra.mxu0 0.0
        %2490 = vmatprep.subr.mxu0 0.0
        %2491 = vmatpush2.msra.mxu0 0.0
        %2492 = vmatprep.subr.mxu0 0.0
        %2493 = vmatpush2.msra.mxu0 0.0
        %2494 = vmatprep.subr.mxu0 0.0
        %2495 = vmatpush2.msra.mxu0 0.0
        %2496 = vmatprep.subr.mxu0 0.0
        %2497 = vmatpush2.msra.mxu0 0.0
        %2498 = vmatprep.subr.mxu0 0.0
        %2499 = vmatpush2.msra.mxu0 0.0
        %2500 = vmatprep.subr.mxu0 0.0
        %2501 = vmatpush2.msra.mxu0 0.0
        %2502 = vmatprep.subr.mxu0 0.0
        %2503 = vmatpush2.msra.mxu0 0.0
        %2504 = vmatprep.subr.mxu0 0.0
        %2505 = vmatpush2.msra.mxu0 0.0
        %2506 = vmatprep.subr.mxu0 0.0
        %2507 = vmatpush2.msra.mxu0 0.0
        %2508 = vmatprep.subr.mxu0 0.0
        %2509 = vmatpush2.msra.mxu0 0.0
        %2510 = vmatprep.subr.mxu0 0.0
        %2511 = vmatpush2.msra.mxu0 0.0
        %2512 = vmatprep.subr.mxu0 0.0
        %2513 = vmatpush2.msra.mxu0 0.0
        %2514 = vmatprep.subr.mxu0 0.0
        %2515 = vmatpush2.msra.mxu0 0.0
        %2516 = vmatprep.subr.mxu0 0.0
        %2517 = vmatpush2.msra.mxu0 0.0
        %2518 = vmatprep.mubr.f32.mxu0 0.0
        %2519 = vmatmul.mubr.f32.gmra.mxu0 %v2427
        %v2520 = vpop.f32.mrf.mxu0
        %v2521 = vadd.f32 0.0, %v2520
        %v2522 = vpop.f32.mrf.mxu0
        %2523 = vmatprep.mubr.f32.mxu0 0.0
        %2524 = vmatmul.mubr.f32.gmra.mxu0 %v2430
        %v2525 = vpop.f32.mrf.mxu0
        %v2526 = vadd.f32 0.0, %v2525
        %v2527 = vpop.f32.mrf.mxu0
        %2528 = vmatprep.mubr.f32.mxu0 0.0
        %2529 = vmatmul.mubr.f32.gmra.mxu0 %v2433
        %v2530 = vpop.f32.mrf.mxu0
        %v2531 = vadd.f32 0.0, %v2530
        %v2532 = vpop.f32.mrf.mxu0
        %2533 = vmatprep.mubr.f32.mxu0 0.0
        %2534 = vmatmul.mubr.f32.gmra.mxu0 %v2436
        %v2535 = vpop.f32.mrf.mxu0
        %v2536 = vadd.f32 0.0, %v2535
        %v2537 = vpop.f32.mrf.mxu0
        %2538 = vmatprep.mubr.f32.mxu0 0.0
        %2539 = vmatmul.mubr.f32.gmra.mxu0 %v2439
        %v2540 = vpop.f32.mrf.mxu0
        %v2541 = vadd.f32 0.0, %v2540
        %v2542 = vpop.f32.mrf.mxu0
        %2543 = vmatprep.mubr.f32.mxu0 0.0
        %2544 = vmatmul.mubr.f32.gmra.mxu0 %v2442
        %v2545 = vpop.f32.mrf.mxu0
        %v2546 = vadd.f32 0.0, %v2545
        %v2547 = vpop.f32.mrf.mxu0
        %2548 = vmatprep.mubr.f32.mxu0 0.0
        %2549 = vmatmul.mubr.f32.gmra.mxu0 %v2445
        %v2550 = vpop.f32.mrf.mxu0
        %v2551 = vadd.f32 0.0, %v2550
        %v2552 = vpop.f32.mrf.mxu0
        %2553 = vmatprep.mubr.f32.mxu0 0.0
        %2554 = vmatmul.mubr.f32.gmra.mxu0 %v2448
        %v2555 = vpop.f32.mrf.mxu0
        %v2556 = vadd.f32 0.0, %v2555
        %v2557 = vpop.f32.mrf.mxu0
        %2558 = vdwg.mxu0
        %v2559 = vsub.f32 %v2311, %v2521
        %v2560 = vsub.f32 %v2312, %v2526
        %v2561 = vsub.f32 %v2313, %v2531
        %v2562 = vsub.f32 %v2314, %v2536
        %v2563 = vsub.f32 %v2315, %v2541
        %v2564 = vsub.f32 %v2316, %v2546
        %v2565 = vsub.f32 %v2317, %v2551
        %v2566 = vsub.f32 %v2318, %v2556
        %v2567 = vmul.f32 %v2559, %v2559
        %v2568 = vmul.f32 %v2560, %v2560
        %v2569 = vmul.f32 %v2561, %v2561
        %v2570 = vmul.f32 %v2562, %v2562
        %v2571 = vmul.f32 %v2563, %v2563
        %v2572 = vmul.f32 %v2564, %v2564
        %v2573 = vmul.f32 %v2565, %v2565
        %v2574 = vmul.f32 %v2566, %v2566
        %v2575 = vpack.c.bf16 %v2568, %v2567
        %v2576 = vpack.c.bf16 %v2570, %v2569
        %v2577 = vpack.c.bf16 %v2572, %v2571
        %v2578 = vpack.c.bf16 %v2574, %v2573
        %v2580 = vsel %vm1013, %v2575, 0
        %v2583 = vsel %vm1013, %v2576, 0
        %v2586 = vsel %vm1013, %v2577, 0
        %v2589 = vsel %vm1013, %v2578, 0
        %2591 = vmatprep.subr.bf16.mxu0 0
        %2592 = vmatpush1.bf16.msra.mxu0 0
        %2593 = vmatprep.subr.bf16.mxu0 0
        %2594 = vmatpush1.bf16.msra.mxu0 0
        %2595 = vmatprep.subr.bf16.mxu0 0
        %2596 = vmatpush1.bf16.msra.mxu0 0
        %2597 = vmatprep.subr.bf16.mxu0 0
        %2598 = vmatpush1.bf16.msra.mxu0 0
        %2599 = vmatprep.subr.bf16.mxu0 0
        %2600 = vmatpush1.bf16.msra.mxu0 0
        %2601 = vmatprep.subr.bf16.mxu0 0
        %2602 = vmatpush1.bf16.msra.mxu0 0
        %2603 = vmatprep.subr.bf16.mxu0 0
        %2604 = vmatpush1.bf16.msra.mxu0 %v2337
        %2605 = vmatprep.subr.bf16.mxu0 0
        %2606 = vmatpush1.bf16.msra.mxu0 %v2336
        %2607 = vmatprep.subr.bf16.mxu0 0
        %2608 = vmatpush2.bf16.msra.mxu0 0
        %2609 = vmatprep.subr.bf16.mxu0 0
        %2610 = vmatpush2.bf16.msra.mxu0 0
        %2611 = vmatprep.subr.bf16.mxu0 0
        %2612 = vmatpush2.bf16.msra.mxu0 0
        %2613 = vmatprep.subr.bf16.mxu0 0
        %2614 = vmatpush2.bf16.msra.mxu0 0
        %2615 = vmatprep.subr.bf16.mxu0 0
        %2616 = vmatpush2.bf16.msra.mxu0 0
        %2617 = vmatprep.subr.bf16.mxu0 0
        %2618 = vmatpush2.bf16.msra.mxu0 0
        %2619 = vmatprep.subr.bf16.mxu0 0
        %2620 = vmatpush2.bf16.msra.mxu0 0
        %2621 = vmatprep.subr.bf16.mxu0 0
        %2622 = vmatpush2.bf16.msra.mxu0 0
        %2623 = vmatprep.mubr.bf16.mxu0 0
        %2624 = vmatmul.mubr.bf16.gmra.mxu0 %v2580
        %v2625 = vpop.f32.mrf.mxu0
        %v2626 = vadd.f32 0.0, %v2625
        %v2627 = vpop.f32.mrf.mxu0
        %v2628 = vpop.f32.mrf.mxu0
        %v2629 = vadd.f32 0.0, %v2628
        %v2630 = vpop.f32.mrf.mxu0
        %2631 = vmatprep.mubr.bf16.mxu0 0
        %2632 = vmatmul.mubr.bf16.gmra.mxu0 %v2583
        %v2633 = vpop.f32.mrf.mxu0
        %v2634 = vadd.f32 0.0, %v2633
        %v2635 = vpop.f32.mrf.mxu0
        %v2636 = vpop.f32.mrf.mxu0
        %v2637 = vadd.f32 0.0, %v2636
        %v2638 = vpop.f32.mrf.mxu0
        %2639 = vmatprep.mubr.bf16.mxu0 0
        %2640 = vmatmul.mubr.bf16.gmra.mxu0 %v2586
        %v2641 = vpop.f32.mrf.mxu0
        %v2642 = vadd.f32 0.0, %v2641
        %v2643 = vpop.f32.mrf.mxu0
        %v2644 = vpop.f32.mrf.mxu0
        %v2645 = vadd.f32 0.0, %v2644
        %v2646 = vpop.f32.mrf.mxu0
        %2647 = vmatprep.mubr.bf16.mxu0 0
        %2648 = vmatmul.mubr.bf16.gmra.mxu0 %v2589
        %v2649 = vpop.f32.mrf.mxu0
        %v2650 = vadd.f32 0.0, %v2649
        %v2651 = vpop.f32.mrf.mxu0
        %v2652 = vpop.f32.mrf.mxu0
        %v2653 = vadd.f32 0.0, %v2652
        %v2654 = vpop.f32.mrf.mxu0
        %2655 = vdwg.mxu0
        %v2656 = vmul.f32 %v2626, 0.125
        %v2657 = vmul.f32 %v2629, 0.125
        %v2658 = vmul.f32 %v2634, 0.125
        %v2659 = vmul.f32 %v2637, 0.125
        %v2660 = vmul.f32 %v2642, 0.125
        %v2661 = vmul.f32 %v2645, 0.125
        %v2662 = vmul.f32 %v2650, 0.125
        %v2663 = vmul.f32 %v2653, 0.125
        %v2665 = vsel %vm2425, %v2656, 0
        %v2668 = vsel %vm2425, %v2657, 0
        %v2671 = vsel %vm2425, %v2658, 0
        %v2674 = vsel %vm2425, %v2659, 0
        %v2677 = vsel %vm2425, %v2660, 0
        %v2680 = vsel %vm2425, %v2661, 0
        %v2683 = vsel %vm2425, %v2662, 0
        %v2686 = vsel %vm2425, %v2663, 0
        %2688 = vmatprep.subr.mxu0 0.0
        %2689 = vmatpush1.msra.mxu0 0.0
        %2690 = vmatprep.subr.mxu0 0.0
        %2691 = vmatpush1.msra.mxu0 0.0
        %2692 = vmatprep.subr.mxu0 0.0
        %2693 = vmatpush1.msra.mxu0 0.0
        %2694 = vmatprep.subr.mxu0 0.0
        %2695 = vmatpush1.msra.mxu0 0.0
        %2696 = vmatprep.subr.mxu0 0.0
        %2697 = vmatpush1.msra.mxu0 0.0
        %2698 = vmatprep.subr.mxu0 0.0
        %2699 = vmatpush1.msra.mxu0 0.0
        %2700 = vmatprep.subr.mxu0 0.0
        %2701 = vmatpush1.msra.mxu0 0.0
        %2702 = vmatprep.subr.mxu0 0.0
        %2703 = vmatpush1.msra.mxu0 0.0
        %2704 = vmatprep.subr.mxu0 0.0
        %2705 = vmatpush1.msra.mxu0 0.0
        %2706 = vmatprep.subr.mxu0 0.0
        %2707 = vmatpush1.msra.mxu0 0.0
        %2708 = vmatprep.subr.mxu0 0.0
        %2709 = vmatpush1.msra.mxu0 0.0
        %2710 = vmatprep.subr.mxu0 0.0
        %2711 = vmatpush1.msra.mxu0 0.0
        %2712 = vmatprep.subr.mxu0 0.0
        %2713 = vmatpush1.msra.mxu0 0.0
        %2714 = vmatprep.subr.mxu0 0.0
        %2715 = vmatpush1.msra.mxu0 0.0
        %2716 = vmatprep.subr.mxu0 0.0
        %2717 = vmatpush1.msra.mxu0 0.0
        %2718 = vmatprep.subr.mxu0 0.0
        %2719 = vmatpush1.msra.mxu0 %v2452
        %2720 = vmatprep.subr.mxu0 0.0
        %2721 = vmatpush2.msra.mxu0 0.0
        %2722 = vmatprep.subr.mxu0 0.0
        %2723 = vmatpush2.msra.mxu0 0.0
        %2724 = vmatprep.subr.mxu0 0.0
        %2725 = vmatpush2.msra.mxu0 0.0
        %2726 = vmatprep.subr.mxu0 0.0
        %2727 = vmatpush2.msra.mxu0 0.0
        %2728 = vmatprep.subr.mxu0 0.0
        %2729 = vmatpush2.msra.mxu0 0.0
        %2730 = vmatprep.subr.mxu0 0.0
        %2731 = vmatpush2.msra.mxu0 0.0
        %2732 = vmatprep.subr.mxu0 0.0
        %2733 = vmatpush2.msra.mxu0 0.0
        %2734 = vmatprep.subr.mxu0 0.0
        %2735 = vmatpush2.msra.mxu0 0.0
        %2736 = vmatprep.subr.mxu0 0.0
        %2737 = vmatpush2.msra.mxu0 0.0
        %2738 = vmatprep.subr.mxu0 0.0
        %2739 = vmatpush2.msra.mxu0 0.0
        %2740 = vmatprep.subr.mxu0 0.0
        %2741 = vmatpush2.msra.mxu0 0.0
        %2742 = vmatprep.subr.mxu0 0.0
        %2743 = vmatpush2.msra.mxu0 0.0
        %2744 = vmatprep.subr.mxu0 0.0
        %2745 = vmatpush2.msra.mxu0 0.0
        %2746 = vmatprep.subr.mxu0 0.0
        %2747 = vmatpush2.msra.mxu0 0.0
        %2748 = vmatprep.subr.mxu0 0.0
        %2749 = vmatpush2.msra.mxu0 0.0
        %2750 = vmatprep.subr.mxu0 0.0
        %2751 = vmatpush2.msra.mxu0 0.0
        %2752 = vmatprep.mubr.f32.mxu0 0.0
        %2753 = vmatmul.mubr.f32.gmra.mxu0 %v2665
        %v2754 = vpop.f32.mrf.mxu0
        %v2755 = vadd.f32 1e-05, %v2754
        %v2756 = vpop.f32.mrf.mxu0
        %2757 = vmatprep.mubr.f32.mxu0 0.0
        %2758 = vmatmul.mubr.f32.gmra.mxu0 %v2668
        %v2759 = vpop.f32.mrf.mxu0
        %v2760 = vadd.f32 1e-05, %v2759
        %v2761 = vpop.f32.mrf.mxu0
        %2762 = vmatprep.mubr.f32.mxu0 0.0
        %2763 = vmatmul.mubr.f32.gmra.mxu0 %v2671
        %v2764 = vpop.f32.mrf.mxu0
        %v2765 = vadd.f32 1e-05, %v2764
        %v2766 = vpop.f32.mrf.mxu0
        %2767 = vmatprep.mubr.f32.mxu0 0.0
        %2768 = vmatmul.mubr.f32.gmra.mxu0 %v2674
        %v2769 = vpop.f32.mrf.mxu0
        %v2770 = vadd.f32 1e-05, %v2769
        %v2771 = vpop.f32.mrf.mxu0
        %2772 = vmatprep.mubr.f32.mxu0 0.0
        %2773 = vmatmul.mubr.f32.gmra.mxu0 %v2677
        %v2774 = vpop.f32.mrf.mxu0
        %v2775 = vadd.f32 1e-05, %v2774
        %v2776 = vpop.f32.mrf.mxu0
        %2777 = vmatprep.mubr.f32.mxu0 0.0
        %2778 = vmatmul.mubr.f32.gmra.mxu0 %v2680
        %v2779 = vpop.f32.mrf.mxu0
        %v2780 = vadd.f32 1e-05, %v2779
        %v2781 = vpop.f32.mrf.mxu0
        %2782 = vmatprep.mubr.f32.mxu0 0.0
        %2783 = vmatmul.mubr.f32.gmra.mxu0 %v2683
        %v2784 = vpop.f32.mrf.mxu0
        %v2785 = vadd.f32 1e-05, %v2784
        %v2786 = vpop.f32.mrf.mxu0
        %2787 = vmatprep.mubr.f32.mxu0 0.0
        %2788 = vmatmul.mubr.f32.gmra.mxu0 %v2686
        %v2789 = vpop.f32.mrf.mxu0
        %v2790 = vadd.f32 1e-05, %v2789
        %v2791 = vpop.f32.mrf.mxu0
        %2792 = vdwg.mxu0
        %v2793 = vrsqrt.pop %v2755
        %v2794 = vrsqrt.pop %v2760
        %v2795 = vrsqrt.pop %v2765
        %v2796 = vrsqrt.pop %v2770
        %v2797 = vrsqrt.pop %v2775
        %v2798 = vrsqrt.pop %v2780
        %v2799 = vrsqrt.pop %v2785
        %v2800 = vrsqrt.pop %v2790
        %v2801 = vmul.f32 %v2559, %v2793
        %v2802 = vmul.f32 %v2560, %v2794
        %v2803 = vmul.f32 %v2561, %v2795
        %v2804 = vmul.f32 %v2562, %v2796
        %v2805 = vmul.f32 %v2563, %v2797
        %v2806 = vmul.f32 %v2564, %v2798
        %v2807 = vmul.f32 %v2565, %v2799
        %v2808 = vmul.f32 %v2566, %v2800
        %v2809 = vld [vmem:[%s633] sm:$0x1]
        %v2811 = vlaneseq
        %v2812 = vshrl.u32 %v2811, 7
        %v2813 = vsub.s32 0, %v2812
        %v2814 = vrot.slane %v2809, %v2813
        %v2816 = vmul.f32 %v2801, %v2814
        %v2817 = vmul.f32 %v2802, %v2814
        %v2818 = vmul.f32 %v2803, %v2814
        %v2819 = vmul.f32 %v2804, %v2814
        %v2820 = vmul.f32 %v2805, %v2814
        %v2821 = vmul.f32 %v2806, %v2814
        %v2822 = vmul.f32 %v2807, %v2814
        %v2823 = vmul.f32 %v2808, %v2814
        %v2824 = vadd.f32 %v1004, %v2816
        %v2825 = vadd.f32 %v1005, %v2817
        %v2826 = vadd.f32 %v1006, %v2818
        %v2827 = vadd.f32 %v1007, %v2819
        %v2828 = vadd.f32 %v1008, %v2820
        %v2829 = vadd.f32 %v1009, %v2821
        %v2830 = vadd.f32 %v1010, %v2822
        %v2831 = vadd.f32 %v1011, %v2823
        %v2832 = vld [vmem:[%s641] sm:$0x1]
        %v2833 = vsel %vm1013, %v2824, 0.0
        %2834 = vadd.xlane.f32.xlu0 %v2833
        %v2835 = vpop.xlane.xlu0 %2834
        %v2836 = vsel %vm1013, %v2825, 0.0
        %2837 = vadd.xlane.f32.xlu0 %v2836
        %v2838 = vpop.xlane.xlu0 %2837
        %v2839 = vsel %vm1013, %v2826, 0.0
        %2840 = vadd.xlane.f32.xlu0 %v2839
        %v2841 = vpop.xlane.xlu0 %2840
        %v2842 = vsel %vm1013, %v2827, 0.0
        %2843 = vadd.xlane.f32.xlu0 %v2842
        %v2844 = vpop.xlane.xlu0 %2843
        %v2845 = vsel %vm1013, %v2828, 0.0
        %2846 = vadd.xlane.f32.xlu0 %v2845
        %v2847 = vpop.xlane.xlu0 %2846
        %v2848 = vsel %vm1013, %v2829, 0.0
        %2849 = vadd.xlane.f32.xlu0 %v2848
        %v2850 = vpop.xlane.xlu0 %2849
        %v2851 = vsel %vm1013, %v2830, 0.0
        %2852 = vadd.xlane.f32.xlu0 %v2851
        %v2853 = vpop.xlane.xlu0 %2852
        %v2854 = vsel %vm1013, %v2831, 0.0
        %2855 = vadd.xlane.f32.xlu0 %v2854
        %v2856 = vpop.xlane.xlu0 %2855
        %v2857 = vmul.f32 %v2835, %v1038
        %v2858 = vmul.f32 %v2838, %v1038
        %v2859 = vmul.f32 %v2841, %v1038
        %v2860 = vmul.f32 %v2844, %v1038
        %v2861 = vmul.f32 %v2847, %v1038
        %v2862 = vmul.f32 %v2850, %v1038
        %v2863 = vmul.f32 %v2853, %v1038
        %v2864 = vmul.f32 %v2856, %v1038
        %v2865 = vsub.f32 %v2824, %v2857
        %v2866 = vsub.f32 %v2825, %v2858
        %v2867 = vsub.f32 %v2826, %v2859
        %v2868 = vsub.f32 %v2827, %v2860
        %v2869 = vsub.f32 %v2828, %v2861
        %v2870 = vsub.f32 %v2829, %v2862
        %v2871 = vsub.f32 %v2830, %v2863
        %v2872 = vsub.f32 %v2831, %v2864
        %v2873 = vmul.f32 %v2865, %v2865
        %v2874 = vmul.f32 %v2866, %v2866
        %v2875 = vmul.f32 %v2867, %v2867
        %v2876 = vmul.f32 %v2868, %v2868
        %v2877 = vmul.f32 %v2869, %v2869
        %v2878 = vmul.f32 %v2870, %v2870
        %v2879 = vmul.f32 %v2871, %v2871
        %v2880 = vmul.f32 %v2872, %v2872
        %v2881 = vsel %vm1013, %v2873, 0.0
        %2882 = vadd.xlane.f32.xlu0 %v2881
        %v2883 = vpop.xlane.xlu0 %2882
        %v2884 = vsel %vm1013, %v2874, 0.0
        %2885 = vadd.xlane.f32.xlu0 %v2884
        %v2886 = vpop.xlane.xlu0 %2885
        %v2887 = vsel %vm1013, %v2875, 0.0
        %2888 = vadd.xlane.f32.xlu0 %v2887
        %v2889 = vpop.xlane.xlu0 %2888
        %v2890 = vsel %vm1013, %v2876, 0.0
        %2891 = vadd.xlane.f32.xlu0 %v2890
        %v2892 = vpop.xlane.xlu0 %2891
        %v2893 = vsel %vm1013, %v2877, 0.0
        %2894 = vadd.xlane.f32.xlu0 %v2893
        %v2895 = vpop.xlane.xlu0 %2894
        %v2896 = vsel %vm1013, %v2878, 0.0
        %2897 = vadd.xlane.f32.xlu0 %v2896
        %v2898 = vpop.xlane.xlu0 %2897
        %v2899 = vsel %vm1013, %v2879, 0.0
        %2900 = vadd.xlane.f32.xlu0 %v2899
        %v2901 = vpop.xlane.xlu0 %2900
        %v2902 = vsel %vm1013, %v2880, 0.0
        %2903 = vadd.xlane.f32.xlu0 %v2902
        %v2904 = vpop.xlane.xlu0 %2903
        %v2905 = vmul.f32 %v2883, %v1038
        %v2906 = vmul.f32 %v2886, %v1038
        %v2907 = vmul.f32 %v2889, %v1038
        %v2908 = vmul.f32 %v2892, %v1038
        %v2909 = vmul.f32 %v2895, %v1038
        %v2910 = vmul.f32 %v2898, %v1038
        %v2911 = vmul.f32 %v2901, %v1038
        %v2912 = vmul.f32 %v2904, %v1038
        %v2913 = vadd.f32 %v2905, 1e-05
        %v2914 = vadd.f32 %v2906, 1e-05
        %v2915 = vadd.f32 %v2907, 1e-05
        %v2916 = vadd.f32 %v2908, 1e-05
        %v2917 = vadd.f32 %v2909, 1e-05
        %v2918 = vadd.f32 %v2910, 1e-05
        %v2919 = vadd.f32 %v2911, 1e-05
        %v2920 = vadd.f32 %v2912, 1e-05
        %v2921 = vrsqrt.pop %v2913
        %v2922 = vrsqrt.pop %v2914
        %v2923 = vrsqrt.pop %v2915
        %v2924 = vrsqrt.pop %v2916
        %v2925 = vrsqrt.pop %v2917
        %v2926 = vrsqrt.pop %v2918
        %v2927 = vrsqrt.pop %v2919
        %v2928 = vrsqrt.pop %v2920
        %v2929 = vmul.f32 %v2865, %v2921
        %v2930 = vmul.f32 %v2866, %v2922
        %v2931 = vmul.f32 %v2867, %v2923
        %v2932 = vmul.f32 %v2868, %v2924
        %v2933 = vmul.f32 %v2869, %v2925
        %v2934 = vmul.f32 %v2870, %v2926
        %v2935 = vmul.f32 %v2871, %v2927
        %v2936 = vmul.f32 %v2872, %v2928
        %v2938 = vlaneseq
        %v2939 = vshrl.u32 %v2938, 7
        %v2940 = vsub.s32 0, %v2939
        %v2941 = vrot.slane %v2832, %v2940
        %v2943 = vmul.f32 %v2929, %v2941
        %v2944 = vmul.f32 %v2930, %v2941
        %v2945 = vmul.f32 %v2931, %v2941
        %v2946 = vmul.f32 %v2932, %v2941
        %v2947 = vmul.f32 %v2933, %v2941
        %v2948 = vmul.f32 %v2934, %v2941
        %v2949 = vmul.f32 %v2935, %v2941
        %v2950 = vmul.f32 %v2936, %v2941
        %v2951 = vpack.c.bf16 %v2944, %v2943
        %v2952 = vpack.c.bf16 %v2946, %v2945
        %v2953 = vpack.c.bf16 %v2948, %v2947
        %v2954 = vpack.c.bf16 %v2950, %v2949
        %v2955 = vld [vmem:[%s750] sm:$0xf]
        %v2956 = vld [vmem:[%s750 + $0x4] sm:$0xf]
        %v2957 = vld [vmem:[%s750 + $0x8] sm:$0xf]
        %v2958 = vld [vmem:[%s750 + $0xc] sm:$0xf]
        %v2963 = vunpack.c.l.b16 %v2955
        %v2964 = vunpack.c.l.b16 %v2956
        %v2965 = vunpack.c.l.b16 %v2957
        %v2966 = vunpack.c.l.b16 %v2958
        %v2967 = vpack.c.b16 %v2964, %v2963
        %v2968 = vpack.c.b16 %v2966, %v2965
        %v2972 = vsel %vm1013, %v2951, 0
        %v2975 = vsel %vm1013, %v2952, 0
        %v2978 = vsel %vm1013, %v2953, 0
        %v2981 = vsel %vm1013, %v2954, 0
        %2983 = vmatprep.subr.bf16.mxu0 0
        %2984 = vmatpush1.bf16.msra.mxu0 0
        %2985 = vmatprep.subr.bf16.mxu0 0
        %2986 = vmatpush1.bf16.msra.mxu0 0
        %2987 = vmatprep.subr.bf16.mxu0 0
        %2988 = vmatpush1.bf16.msra.mxu0 0
        %2989 = vmatprep.subr.bf16.mxu0 0
        %2990 = vmatpush1.bf16.msra.mxu0 0
        %2991 = vmatprep.subr.bf16.mxu0 0
        %2992 = vmatpush1.bf16.msra.mxu0 0
        %2993 = vmatprep.subr.bf16.mxu0 0
        %2994 = vmatpush1.bf16.msra.mxu0 0
        %2995 = vmatprep.subr.bf16.mxu0 0
        %2996 = vmatpush1.bf16.msra.mxu0 %v2968
        %2997 = vmatprep.subr.bf16.mxu0 0
        %2998 = vmatpush1.bf16.msra.mxu0 %v2967
        %2999 = vmatprep.subr.bf16.mxu0 0
        %3000 = vmatpush2.bf16.msra.mxu0 0
        %3001 = vmatprep.subr.bf16.mxu0 0
        %3002 = vmatpush2.bf16.msra.mxu0 0
        %3003 = vmatprep.subr.bf16.mxu0 0
        %3004 = vmatpush2.bf16.msra.mxu0 0
        %3005 = vmatprep.subr.bf16.mxu0 0
        %3006 = vmatpush2.bf16.msra.mxu0 0
        %3007 = vmatprep.subr.bf16.mxu0 0
        %3008 = vmatpush2.bf16.msra.mxu0 0
        %3009 = vmatprep.subr.bf16.mxu0 0
        %3010 = vmatpush2.bf16.msra.mxu0 0
        %3011 = vmatprep.subr.bf16.mxu0 0
        %3012 = vmatpush2.bf16.msra.mxu0 0
        %3013 = vmatprep.subr.bf16.mxu0 0
        %3014 = vmatpush2.bf16.msra.mxu0 0
        %3015 = vmatprep.mubr.bf16.mxu0 0
        %3016 = vmatmul.mubr.bf16.gmra.mxu0 %v2972
        %v3017 = vpop.f32.mrf.mxu0
        %v3018 = vadd.f32 0.0, %v3017
        %v3019 = vpop.f32.mrf.mxu0
        %v3020 = vpop.f32.mrf.mxu0
        %v3021 = vadd.f32 0.0, %v3020
        %v3022 = vpop.f32.mrf.mxu0
        %3023 = vmatprep.mubr.bf16.mxu0 0
        %3024 = vmatmul.mubr.bf16.gmra.mxu0 %v2975
        %v3025 = vpop.f32.mrf.mxu0
        %v3026 = vadd.f32 0.0, %v3025
        %v3027 = vpop.f32.mrf.mxu0
        %v3028 = vpop.f32.mrf.mxu0
        %v3029 = vadd.f32 0.0, %v3028
        %v3030 = vpop.f32.mrf.mxu0
        %3031 = vmatprep.mubr.bf16.mxu0 0
        %3032 = vmatmul.mubr.bf16.gmra.mxu0 %v2978
        %v3033 = vpop.f32.mrf.mxu0
        %v3034 = vadd.f32 0.0, %v3033
        %v3035 = vpop.f32.mrf.mxu0
        %v3036 = vpop.f32.mrf.mxu0
        %v3037 = vadd.f32 0.0, %v3036
        %v3038 = vpop.f32.mrf.mxu0
        %3039 = vmatprep.mubr.bf16.mxu0 0
        %3040 = vmatmul.mubr.bf16.gmra.mxu0 %v2981
        %v3041 = vpop.f32.mrf.mxu0
        %v3042 = vadd.f32 0.0, %v3041
        %v3043 = vpop.f32.mrf.mxu0
        %v3044 = vpop.f32.mrf.mxu0
        %v3045 = vadd.f32 0.0, %v3044
        %v3046 = vpop.f32.mrf.mxu0
        %3047 = vdwg.mxu0
        %v3048 = vld [vmem:[%s755] sm:$0xf]
        %v3049 = vld [vmem:[%s755 + $0x4] sm:$0xf]
        %v3050 = vld [vmem:[%s755 + $0x8] sm:$0xf]
        %v3051 = vld [vmem:[%s755 + $0xc] sm:$0xf]
        %v3056 = vunpack.c.l.b16 %v3048
        %v3057 = vunpack.c.l.b16 %v3049
        %v3058 = vunpack.c.l.b16 %v3050
        %v3059 = vunpack.c.l.b16 %v3051
        %v3060 = vpack.c.b16 %v3057, %v3056
        %v3061 = vpack.c.b16 %v3059, %v3058
        %3064 = vmatprep.subr.bf16.mxu0 0
        %3065 = vmatpush1.bf16.msra.mxu0 0
        %3066 = vmatprep.subr.bf16.mxu0 0
        %3067 = vmatpush1.bf16.msra.mxu0 0
        %3068 = vmatprep.subr.bf16.mxu0 0
        %3069 = vmatpush1.bf16.msra.mxu0 0
        %3070 = vmatprep.subr.bf16.mxu0 0
        %3071 = vmatpush1.bf16.msra.mxu0 0
        %3072 = vmatprep.subr.bf16.mxu0 0
        %3073 = vmatpush1.bf16.msra.mxu0 0
        %3074 = vmatprep.subr.bf16.mxu0 0
        %3075 = vmatpush1.bf16.msra.mxu0 0
        %3076 = vmatprep.subr.bf16.mxu0 0
        %3077 = vmatpush1.bf16.msra.mxu0 %v3061
        %3078 = vmatprep.subr.bf16.mxu0 0
        %3079 = vmatpush1.bf16.msra.mxu0 %v3060
        %3080 = vmatprep.subr.bf16.mxu0 0
        %3081 = vmatpush2.bf16.msra.mxu0 0
        %3082 = vmatprep.subr.bf16.mxu0 0
        %3083 = vmatpush2.bf16.msra.mxu0 0
        %3084 = vmatprep.subr.bf16.mxu0 0
        %3085 = vmatpush2.bf16.msra.mxu0 0
        %3086 = vmatprep.subr.bf16.mxu0 0
        %3087 = vmatpush2.bf16.msra.mxu0 0
        %3088 = vmatprep.subr.bf16.mxu0 0
        %3089 = vmatpush2.bf16.msra.mxu0 0
        %3090 = vmatprep.subr.bf16.mxu0 0
        %3091 = vmatpush2.bf16.msra.mxu0 0
        %3092 = vmatprep.subr.bf16.mxu0 0
        %3093 = vmatpush2.bf16.msra.mxu0 0
        %3094 = vmatprep.subr.bf16.mxu0 0
        %3095 = vmatpush2.bf16.msra.mxu0 0
        %3096 = vmatprep.mubr.bf16.mxu0 0
        %3097 = vmatmul.mubr.bf16.gmra.mxu0 %v2972
        %v3098 = vpop.f32.mrf.mxu0
        %v3099 = vadd.f32 0.0, %v3098
        %v3100 = vpop.f32.mrf.mxu0
        %v3101 = vpop.f32.mrf.mxu0
        %v3102 = vadd.f32 0.0, %v3101
        %v3103 = vpop.f32.mrf.mxu0
        %3104 = vmatprep.mubr.bf16.mxu0 0
        %3105 = vmatmul.mubr.bf16.gmra.mxu0 %v2975
        %v3106 = vpop.f32.mrf.mxu0
        %v3107 = vadd.f32 0.0, %v3106
        %v3108 = vpop.f32.mrf.mxu0
        %v3109 = vpop.f32.mrf.mxu0
        %v3110 = vadd.f32 0.0, %v3109
        %v3111 = vpop.f32.mrf.mxu0
        %3112 = vmatprep.mubr.bf16.mxu0 0
        %3113 = vmatmul.mubr.bf16.gmra.mxu0 %v2978
        %v3114 = vpop.f32.mrf.mxu0
        %v3115 = vadd.f32 0.0, %v3114
        %v3116 = vpop.f32.mrf.mxu0
        %v3117 = vpop.f32.mrf.mxu0
        %v3118 = vadd.f32 0.0, %v3117
        %v3119 = vpop.f32.mrf.mxu0
        %3120 = vmatprep.mubr.bf16.mxu0 0
        %3121 = vmatmul.mubr.bf16.gmra.mxu0 %v2981
        %v3122 = vpop.f32.mrf.mxu0
        %v3123 = vadd.f32 0.0, %v3122
        %v3124 = vpop.f32.mrf.mxu0
        %v3125 = vpop.f32.mrf.mxu0
        %v3126 = vadd.f32 0.0, %v3125
        %v3127 = vpop.f32.mrf.mxu0
        %3128 = vdwg.mxu0
        %v3129 = vmul.f32 %v3018, 0.5
        %v3130 = vmul.f32 %v3021, 0.5
        %v3131 = vmul.f32 %v3026, 0.5
        %v3132 = vmul.f32 %v3029, 0.5
        %v3133 = vmul.f32 %v3034, 0.5
        %v3134 = vmul.f32 %v3037, 0.5
        %v3135 = vmul.f32 %v3042, 0.5
        %v3136 = vmul.f32 %v3045, 0.5
        %v3137 = vmul.f32 %v3018, 0.044715
        %v3138 = vmul.f32 %v3021, 0.044715
        %v3139 = vmul.f32 %v3026, 0.044715
        %v3140 = vmul.f32 %v3029, 0.044715
        %v3141 = vmul.f32 %v3034, 0.044715
        %v3142 = vmul.f32 %v3037, 0.044715
        %v3143 = vmul.f32 %v3042, 0.044715
        %v3144 = vmul.f32 %v3045, 0.044715
        %v3145 = vmul.f32 %v3137, %v3018
        %v3146 = vmul.f32 %v3138, %v3021
        %v3147 = vmul.f32 %v3139, %v3026
        %v3148 = vmul.f32 %v3140, %v3029
        %v3149 = vmul.f32 %v3141, %v3034
        %v3150 = vmul.f32 %v3142, %v3037
        %v3151 = vmul.f32 %v3143, %v3042
        %v3152 = vmul.f32 %v3144, %v3045
        %v3153 = vmul.f32 %v3145, %v3018
        %v3154 = vmul.f32 %v3146, %v3021
        %v3155 = vmul.f32 %v3147, %v3026
        %v3156 = vmul.f32 %v3148, %v3029
        %v3157 = vmul.f32 %v3149, %v3034
        %v3158 = vmul.f32 %v3150, %v3037
        %v3159 = vmul.f32 %v3151, %v3042
        %v3160 = vmul.f32 %v3152, %v3045
        %v3161 = vadd.f32 %v3018, %v3153
        %v3162 = vadd.f32 %v3021, %v3154
        %v3163 = vadd.f32 %v3026, %v3155
        %v3164 = vadd.f32 %v3029, %v3156
        %v3165 = vadd.f32 %v3034, %v3157
        %v3166 = vadd.f32 %v3037, %v3158
        %v3167 = vadd.f32 %v3042, %v3159
        %v3168 = vadd.f32 %v3045, %v3160
        %v3169 = vmul.f32 %v3161, 0.7978846
        %v3170 = vmul.f32 %v3162, 0.7978846
        %v3171 = vmul.f32 %v3163, 0.7978846
        %v3172 = vmul.f32 %v3164, 0.7978846
        %v3173 = vmul.f32 %v3165, 0.7978846
        %v3174 = vmul.f32 %v3166, 0.7978846
        %v3175 = vmul.f32 %v3167, 0.7978846
        %v3176 = vmul.f32 %v3168, 0.7978846
        %v3177 = vtanh.pop %v3169
        %v3178 = vtanh.pop %v3170
        %v3179 = vtanh.pop %v3171
        %v3180 = vtanh.pop %v3172
        %v3181 = vtanh.pop %v3173
        %v3182 = vtanh.pop %v3174
        %v3183 = vtanh.pop %v3175
        %v3184 = vtanh.pop %v3176
        %v3185 = vadd.f32 %v3177, 1.0
        %v3186 = vadd.f32 %v3178, 1.0
        %v3187 = vadd.f32 %v3179, 1.0
        %v3188 = vadd.f32 %v3180, 1.0
        %v3189 = vadd.f32 %v3181, 1.0
        %v3190 = vadd.f32 %v3182, 1.0
        %v3191 = vadd.f32 %v3183, 1.0
        %v3192 = vadd.f32 %v3184, 1.0
        %v3193 = vmul.f32 %v3129, %v3185
        %v3194 = vmul.f32 %v3130, %v3186
        %v3195 = vmul.f32 %v3131, %v3187
        %v3196 = vmul.f32 %v3132, %v3188
        %v3197 = vmul.f32 %v3133, %v3189
        %v3198 = vmul.f32 %v3134, %v3190
        %v3199 = vmul.f32 %v3135, %v3191
        %v3200 = vmul.f32 %v3136, %v3192
        %v3201 = vmul.f32 %v3193, %v3099
        %v3202 = vmul.f32 %v3194, %v3102
        %v3203 = vmul.f32 %v3195, %v3107
        %v3204 = vmul.f32 %v3196, %v3110
        %v3205 = vmul.f32 %v3197, %v3115
        %v3206 = vmul.f32 %v3198, %v3118
        %v3207 = vmul.f32 %v3199, %v3123
        %v3208 = vmul.f32 %v3200, %v3126
        %v3209 = vpack.c.bf16 %v3202, %v3201
        %v3210 = vpack.c.bf16 %v3204, %v3203
        %v3211 = vpack.c.bf16 %v3206, %v3205
        %v3212 = vpack.c.bf16 %v3208, %v3207
        %v3213 = vld [vmem:[%s760] sm:$0xf]
        %v3214 = vld [vmem:[%s760 + $0x4] sm:$0xf]
        %v3215 = vld [vmem:[%s760 + $0x8] sm:$0xf]
        %v3216 = vld [vmem:[%s760 + $0xc] sm:$0xf]
        %v3217 = vld [vmem:[%s760 + $0x10] sm:$0xf]
        %v3218 = vld [vmem:[%s760 + $0x14] sm:$0xf]
        %v3219 = vld [vmem:[%s760 + $0x18] sm:$0xf]
        %v3220 = vld [vmem:[%s760 + $0x1c] sm:$0xf]
        %v3229 = vunpack.c.l.b16 %v3213
        %v3230 = vunpack.c.l.b16 %v3214
        %v3231 = vunpack.c.l.b16 %v3215
        %v3232 = vunpack.c.l.b16 %v3216
        %v3233 = vunpack.c.l.b16 %v3217
        %v3234 = vunpack.c.l.b16 %v3218
        %v3235 = vunpack.c.l.b16 %v3219
        %v3236 = vunpack.c.l.b16 %v3220
        %v3237 = vpack.c.b16 %v3230, %v3229
        %v3238 = vpack.c.b16 %v3232, %v3231
        %v3239 = vpack.c.b16 %v3234, %v3233
        %v3240 = vpack.c.b16 %v3236, %v3235
        %v3246 = vsel %vm1383, %v3209, 0
        %v3249 = vsel %vm1383, %v3210, 0
        %v3252 = vsel %vm1383, %v3211, 0
        %v3255 = vsel %vm1383, %v3212, 0
        %3257 = vmatprep.subr.bf16.mxu0 0
        %3258 = vmatpush1.bf16.msra.mxu0 0
        %3259 = vmatprep.subr.bf16.mxu0 0
        %3260 = vmatpush1.bf16.msra.mxu0 0
        %3261 = vmatprep.subr.bf16.mxu0 0
        %3262 = vmatpush1.bf16.msra.mxu0 0
        %3263 = vmatprep.subr.bf16.mxu0 0
        %3264 = vmatpush1.bf16.msra.mxu0 0
        %3265 = vmatprep.subr.bf16.mxu0 0
        %3266 = vmatpush1.bf16.msra.mxu0 %v3240
        %3267 = vmatprep.subr.bf16.mxu0 0
        %3268 = vmatpush1.bf16.msra.mxu0 %v3239
        %3269 = vmatprep.subr.bf16.mxu0 0
        %3270 = vmatpush1.bf16.msra.mxu0 %v3238
        %3271 = vmatprep.subr.bf16.mxu0 0
        %3272 = vmatpush1.bf16.msra.mxu0 %v3237
        %3273 = vmatprep.subr.bf16.mxu0 0
        %3274 = vmatpush2.bf16.msra.mxu0 0
        %3275 = vmatprep.subr.bf16.mxu0 0
        %3276 = vmatpush2.bf16.msra.mxu0 0
        %3277 = vmatprep.subr.bf16.mxu0 0
        %3278 = vmatpush2.bf16.msra.mxu0 0
        %3279 = vmatprep.subr.bf16.mxu0 0
        %3280 = vmatpush2.bf16.msra.mxu0 0
        %3281 = vmatprep.subr.bf16.mxu0 0
        %3282 = vmatpush2.bf16.msra.mxu0 0
        %3283 = vmatprep.subr.bf16.mxu0 0
        %3284 = vmatpush2.bf16.msra.mxu0 0
        %3285 = vmatprep.subr.bf16.mxu0 0
        %3286 = vmatpush2.bf16.msra.mxu0 0
        %3287 = vmatprep.subr.bf16.mxu0 0
        %3288 = vmatpush2.bf16.msra.mxu0 0
        %3289 = vmatprep.mubr.bf16.mxu0 0
        %3290 = vmatmul.mubr.bf16.gmra.mxu0 %v3246
        %v3291 = vpop.f32.mrf.mxu0
        %v3292 = vadd.f32 0.0, %v3291
        %v3293 = vpop.f32.mrf.mxu0
        %v3294 = vpop.f32.mrf.mxu0
        %v3295 = vadd.f32 0.0, %v3294
        %v3296 = vpop.f32.mrf.mxu0
        %3297 = vmatprep.mubr.bf16.mxu0 0
        %3298 = vmatmul.mubr.bf16.gmra.mxu0 %v3249
        %v3299 = vpop.f32.mrf.mxu0
        %v3300 = vadd.f32 0.0, %v3299
        %v3301 = vpop.f32.mrf.mxu0
        %v3302 = vpop.f32.mrf.mxu0
        %v3303 = vadd.f32 0.0, %v3302
        %v3304 = vpop.f32.mrf.mxu0
        %3305 = vmatprep.mubr.bf16.mxu0 0
        %3306 = vmatmul.mubr.bf16.gmra.mxu0 %v3252
        %v3307 = vpop.f32.mrf.mxu0
        %v3308 = vadd.f32 0.0, %v3307
        %v3309 = vpop.f32.mrf.mxu0
        %v3310 = vpop.f32.mrf.mxu0
        %v3311 = vadd.f32 0.0, %v3310
        %v3312 = vpop.f32.mrf.mxu0
        %3313 = vmatprep.mubr.bf16.mxu0 0
        %3314 = vmatmul.mubr.bf16.gmra.mxu0 %v3255
        %v3315 = vpop.f32.mrf.mxu0
        %v3316 = vadd.f32 0.0, %v3315
        %v3317 = vpop.f32.mrf.mxu0
        %v3318 = vpop.f32.mrf.mxu0
        %v3319 = vadd.f32 0.0, %v3318
        %v3320 = vpop.f32.mrf.mxu0
        %3321 = vdwg.mxu0
        %v3322 = vadd.f32 %v2824, %v3292
        %v3323 = vadd.f32 %v2825, %v3295
        %v3324 = vadd.f32 %v2826, %v3300
        %v3325 = vadd.f32 %v2827, %v3303
        %v3326 = vadd.f32 %v2828, %v3308
        %v3327 = vadd.f32 %v2829, %v3311
        %v3328 = vadd.f32 %v2830, %v3316
        %v3329 = vadd.f32 %v2831, %v3319
        %3330 = vst.msk [vmem:[#allocation2] sm:$0xff] %vm1013, %v3322
        %3331 = vst.msk [vmem:[#allocation2 + $0x8] sm:$0xff] %vm1013, %v3323
        %3332 = vst.msk [vmem:[#allocation2 + $0x10] sm:$0xff] %vm1013, %v3324
        %3333 = vst.msk [vmem:[#allocation2 + $0x18] sm:$0xff] %vm1013, %v3325
        %3334 = vst.msk [vmem:[#allocation2 + $0x20] sm:$0xff] %vm1013, %v3326
        %3335 = vst.msk [vmem:[#allocation2 + $0x28] sm:$0xff] %vm1013, %v3327
        %3336 = vst.msk [vmem:[#allocation2 + $0x30] sm:$0xff] %vm1013, %v3328
        %3337 = vst.msk [vmem:[#allocation2 + $0x38] sm:$0xff] %vm1013, %v3329
        %p3338 = scmp.eq.s32.totalorder %s44, 1
        // Predicated region
        $region177: #{tpu_custom_call.1} parent=75 // pred_check
          %p3339 = pneg %p3338
        $region178: #{tpu_custom_call.1} parent=75 // pred_check_branch
          %3341 = sbr.rel (%p3339) target = $region180
        $region179: #{tpu_custom_call.1} parent=75 // pred_region
          $region181: #{tpu_custom_call.1} parent=179
            #allocation31 [shape = 'u8[512]{0}', space=vmem, size = 0x400, scoped, tag = 'scoped memory for tpu_custom_call.1']
            #allocation32 [shape = 'u8[8192]{0}', space=vmem, size = 0x2000, scoped, tag = 'scoped memory for tpu_custom_call.1']
            #allocation33 [shape = 'u8[512]{0}', space=vmem, size = 0x400, scoped, tag = 'scoped memory for tpu_custom_call.1']
            $region182: #{tpu_custom_call.1} parent=181
              #allocation34 [shape = 's32[1]{0}', space=sflag, size = 0x4, scoped, tag = 'scoped memory for tpu_custom_call.1']
              // Predicated region
              $region183: #{tpu_custom_call.1} parent=182 // pred_check
                _
              $region184: #{tpu_custom_call.1} parent=182 // pred_check_branch
                %3343 = sbr.rel target = $region186
              $region185: #{tpu_custom_call.1} parent=182 // pred_region
                %3344 = sst [smem:[#allocation27]] [#allocation36]
                %3345 = sst [smem:[#allocation28]] [#allocation35]
              $region186: #{tpu_custom_call.1} parent=182 // pred_fallthru
                _
              %3347 = shalt.err (0)
              %s3349 = sshll.u32 [#allocation31], 4
              %s3350 = int_to_ptr.vmem [resolvable:$true] %s3349
              %3352 = dma.hbm_to_vmem [thread:$0]  %s17, 16, %s3350, [#allocation34]
              %s3353 = smul.u32 1, 1
              %s3354 = sshll.u32 %s3353, 4
              %3355 = dma.done [#allocation34], %s3354
            $region187: #{tpu_custom_call.1} parent=181
              #allocation37 [shape = 's32[1]{0}', space=sflag, size = 0x4, scoped, tag = 'scoped memory for tpu_custom_call.1']
              %p3357 = scmp.lt.u32.totalorder 16, 8
              %p3358 = pneg %p3357
              // Predicated region
              $region188: #{tpu_custom_call.1} parent=187 // pred_check
                _
              $region189: #{tpu_custom_call.1} parent=187 // pred_check_branch
                %3360 = sbr.rel (%p3357) target = $region191
              $region190: #{tpu_custom_call.1} parent=187 // pred_region
                %s3376 = sand.u32 16, 7
                %p3377 = scmp.eq.s32.totalorder %s3376, 0
                // Predicated region
                $region203: #{tpu_custom_call.1} parent=190 // pred_check
                  %p3378 = pneg %p3377
                $region204: #{tpu_custom_call.1} parent=190 // pred_check_branch
                  %3380 = sbr.rel (%p3378) target = $region206
                $region205: #{tpu_custom_call.1} parent=190 // pred_region
                  loop: start=0, step=1, limit=1
                  $region207: #{tpu_custom_call.1} parent=205 // loop_pre_header
                    _
                  $region208: #{tpu_custom_call.1} parent=205 // loop_header
                    %s3382 = sphi 0, %s3386
                    %p3383 = scmp.ge.s32.totalorder %s3382, 1
                    %s3387 = sphi %s18, %s18
                    %s3388 = sphi [#allocation32], [#allocation32]
                  $region209: #{tpu_custom_call.1} parent=205 // loop_header_branch
                    %3385 = sbr.rel (%p3383) target = $region213
                  $region210: #{tpu_custom_call.1} parent=205 // loop_body
                    %v3389 = vld [vmem:[%s3387] sm:$0xff]
                    %3390 = vst [vmem:[%s3388] sm:$0xff] %v3389
                    %v3391 = vld [vmem:[%s3387 + $0x8] sm:$0xff]
                    %3392 = vst [vmem:[%s3388 + $0x8] sm:$0xff] %v3391
                  $region211: #{tpu_custom_call.1} parent=205 // loop_footer
                    %s3386 = sadd.s32 1, %s3382
                  $region212: #{tpu_custom_call.1} parent=205 // loop_footer_branch
                    %3381 = sbr.rel target = $region208
                  $region213: #{tpu_custom_call.1} parent=205 // loop_exit
                    _
                $region206: #{tpu_custom_call.1} parent=190 // pred_fallthru
                  _
                %p3393 = pneg %p3377
                // Predicated region
                $region214: #{tpu_custom_call.1} parent=190 // pred_check
                  _
                $region215: #{tpu_custom_call.1} parent=190 // pred_check_branch
                  %3395 = sbr.rel (%p3377) target = $region217
                $region216: #{tpu_custom_call.1} parent=190 // pred_region
                  %s3396 = sand.u32 16, 7
                $region217: #{tpu_custom_call.1} parent=190 // pred_fallthru
                  _
              $region191: #{tpu_custom_call.1} parent=187 // pred_fallthru
                _
              // Predicated region
              $region192: #{tpu_custom_call.1} parent=187 // pred_check
                %p3361 = pneg %p3357
              $region193: #{tpu_custom_call.1} parent=187 // pred_check_branch
                %3363 = sbr.rel (%p3361) target = $region195
              $region194: #{tpu_custom_call.1} parent=187 // pred_region
                %s3364 = sshll.u32 1, 16
                %s3365 = ssub.s32 %s3364, 1
                loop: start=0, step=1, limit=1
                $region196: #{tpu_custom_call.1} parent=194 // loop_pre_header
                  _
                $region197: #{tpu_custom_call.1} parent=194 // loop_header
                  %s3367 = sphi 0, %s3371
                  %p3368 = scmp.ge.s32.totalorder %s3367, 1
                  %s3372 = sphi %s18, %s18
                  %s3373 = sphi [#allocation32], [#allocation32]
                $region198: #{tpu_custom_call.1} parent=194 // loop_header_branch
                  %3370 = sbr.rel (%p3368) target = $region202
                $region199: #{tpu_custom_call.1} parent=194 // loop_body
                  %v3374 = vld [vmem:[%s3372] sm:%s3365]
                  %3375 = vst [vmem:[%s3373] sm:%s3365] %v3374
                $region200: #{tpu_custom_call.1} parent=194 // loop_footer
                  %s3371 = sadd.s32 1, %s3367
                $region201: #{tpu_custom_call.1} parent=194 // loop_footer_branch
                  %3366 = sbr.rel target = $region197
                $region202: #{tpu_custom_call.1} parent=194 // loop_exit
                  _
              $region195: #{tpu_custom_call.1} parent=187 // pred_fallthru
                _
              // Predicated region
              $region218: #{tpu_custom_call.1} parent=187 // pred_check
                _
              $region219: #{tpu_custom_call.1} parent=187 // pred_check_branch
                %3399 = sbr.rel (0) target = $region221
              $region220: #{tpu_custom_call.1} parent=187 // pred_region
                %3400 = vsyncadd [#allocation37], 256
              $region221: #{tpu_custom_call.1} parent=187 // pred_fallthru
                _
              %s3401 = smul.u32 4, 4
              %s3402 = smul.u32 %s3401, 1
              %s3403 = sshll.u32 %s3402, 4
              %3404 = dma.done [#allocation37], %s3403
            $region222: #{tpu_custom_call.1} parent=181
              #allocation39 [shape = 's32[1]{0}', space=sflag, size = 0x4, scoped, tag = 'scoped memory for tpu_custom_call.1']
              %p3406 = scmp.lt.u32.totalorder 1, 8
              %p3407 = pneg %p3406
              // Predicated region
              $region223: #{tpu_custom_call.1} parent=222 // pred_check
                _
              $region224: #{tpu_custom_call.1} parent=222 // pred_check_branch
                %3409 = sbr.rel (%p3406) target = $region226
              $region225: #{tpu_custom_call.1} parent=222 // pred_region
                %s3425 = sand.u32 1, 7
                %p3426 = scmp.eq.s32.totalorder %s3425, 0
                %p3427 = pneg %p3426
                // Predicated region
                $region238: #{tpu_custom_call.1} parent=225 // pred_check
                  _
                $region239: #{tpu_custom_call.1} parent=225 // pred_check_branch
                  %3429 = sbr.rel (%p3426) target = $region241
                $region240: #{tpu_custom_call.1} parent=225 // pred_region
                  %s3430 = sand.u32 1, 7
                  %s3431 = ssub.s32 1, %s3430
                  %s3432 = scalar_lea.vmem %s19, %s3431
                  %s3433 = ssub.s32 1, %s3430
                  %s3434 = scalar_lea.vmem [#allocation33], %s3433
                  %s3435 = sshll.u32 1, %s3430
                  %s3436 = ssub.s32 %s3435, 1
                  loop: start=0, step=1, limit=1
                  $region242: #{tpu_custom_call.1} parent=240 // loop_pre_header
                    _
                  $region243: #{tpu_custom_call.1} parent=240 // loop_header
                    %s3438 = sphi 0, %s3442
                    %p3439 = scmp.ge.s32.totalorder %s3438, 1
                    %s3443 = sphi %s3432, %s3432
                    %s3444 = sphi %s3434, %s3434
                  $region244: #{tpu_custom_call.1} parent=240 // loop_header_branch
                    %3441 = sbr.rel (%p3439) target = $region248
                  $region245: #{tpu_custom_call.1} parent=240 // loop_body
                    %v3445 = vld [vmem:[%s3443] sm:%s3436]
                    %3446 = vst [vmem:[%s3444] sm:%s3436] %v3445
                  $region246: #{tpu_custom_call.1} parent=240 // loop_footer
                    %s3442 = sadd.s32 1, %s3438
                  $region247: #{tpu_custom_call.1} parent=240 // loop_footer_branch
                    %3437 = sbr.rel target = $region243
                  $region248: #{tpu_custom_call.1} parent=240 // loop_exit
                    _
                $region241: #{tpu_custom_call.1} parent=225 // pred_fallthru
                  _
              $region226: #{tpu_custom_call.1} parent=222 // pred_fallthru
                _
              // Predicated region
              $region227: #{tpu_custom_call.1} parent=222 // pred_check
                %p3410 = pneg %p3406
              $region228: #{tpu_custom_call.1} parent=222 // pred_check_branch
                %3412 = sbr.rel (%p3410) target = $region230
              $region229: #{tpu_custom_call.1} parent=222 // pred_region
                %s3413 = sshll.u32 1, 1
                %s3414 = ssub.s32 %s3413, 1
                loop: start=0, step=1, limit=1
                $region231: #{tpu_custom_call.1} parent=229 // loop_pre_header
                  _
                $region232: #{tpu_custom_call.1} parent=229 // loop_header
                  %s3416 = sphi 0, %s3420
                  %p3417 = scmp.ge.s32.totalorder %s3416, 1
                  %s3421 = sphi %s19, %s19
                  %s3422 = sphi [#allocation33], [#allocation33]
                $region233: #{tpu_custom_call.1} parent=229 // loop_header_branch
                  %3419 = sbr.rel (%p3417) target = $region237
                $region234: #{tpu_custom_call.1} parent=229 // loop_body
                  %v3423 = vld [vmem:[%s3421] sm:%s3414]
                  %3424 = vst [vmem:[%s3422] sm:%s3414] %v3423
                $region235: #{tpu_custom_call.1} parent=229 // loop_footer
                  %s3420 = sadd.s32 1, %s3416
                $region236: #{tpu_custom_call.1} parent=229 // loop_footer_branch
                  %3415 = sbr.rel target = $region232
                $region237: #{tpu_custom_call.1} parent=229 // loop_exit
                  _
              $region230: #{tpu_custom_call.1} parent=222 // pred_fallthru
                _
              // Predicated region
              $region249: #{tpu_custom_call.1} parent=222 // pred_check
                _
              $region250: #{tpu_custom_call.1} parent=222 // pred_check_branch
                %3449 = sbr.rel (0) target = $region252
              $region251: #{tpu_custom_call.1} parent=222 // pred_region
                %3450 = vsyncadd [#allocation39], 16
              $region252: #{tpu_custom_call.1} parent=222 // pred_fallthru
                _
              %s3451 = smul.u32 1, 1
              %s3452 = sshll.u32 %s3451, 4
              %3453 = dma.done [#allocation39], %s3452
            %v3454 = vld [vmem:[#allocation31] sm:$0x1]
            %v3455 = vsel %vm1013, %v3329, 0.0
            %3456 = vadd.xlane.f32.xlu0 %v3455
            %v3457 = vpop.xlane.xlu0 %3456
            %v3458 = vmul.f32 %v3457, %v1038
            %v3459 = vsub.f32 %v3329, %v3458
            %v3460 = vmul.f32 %v3459, %v3459
            %v3461 = vsel %vm1013, %v3460, 0.0
            %3462 = vadd.xlane.f32.xlu0 %v3461
            %v3463 = vpop.xlane.xlu0 %3462
            %v3464 = vmul.f32 %v3463, %v1038
            %v3465 = vadd.f32 %v3464, 1e-05
            %v3466 = vrsqrt.pop %v3465
            %v3467 = vmul.f32 %v3459, %v3466
            %v3469 = vlaneseq
            %v3470 = vshrl.u32 %v3469, 7
            %v3471 = vsub.s32 0, %v3470
            %v3472 = vrot.slane %v3454, %v3471
            %v3474 = vmul.f32 %v3467, %v3472
            %v3475 = vpack.c.bf16 %v3474, %v3474
            %v3476 = vld [vmem:[#allocation32] sm:$0xff]
            %v3477 = vld [vmem:[#allocation32 + $0x8] sm:$0xff]
            %v3478 = vld [vmem:[#allocation33] sm:$0x1]
            %v3480 = vlaneseq
            %v3481 = vshrl.u32 %v3480, 7
            %v3482 = vsub.s32 0, %v3481
            %v3483 = vrot.slane %v3478, %v3482
            %v3486 = vsel %vm1013, %v3475, 0
            %3488 = vmatprep.subr.bf16.mxu0 0
            %3489 = vmatpush1.bf16.msra.mxu0 0
            %3490 = vmatprep.subr.bf16.mxu0 0
            %3491 = vmatpush1.bf16.msra.mxu0 0
            %3492 = vmatprep.subr.bf16.mxu0 0
            %3493 = vmatpush1.bf16.msra.mxu0 0
            %3494 = vmatprep.subr.bf16.mxu0 0
            %3495 = vmatpush1.bf16.msra.mxu0 0
            %3496 = vmatprep.subr.bf16.mxu0 0
            %3497 = vmatpush1.bf16.msra.mxu0 0
            %3498 = vmatprep.subr.bf16.mxu0 0
            %3499 = vmatpush1.bf16.msra.mxu0 0
            %3500 = vmatprep.subr.bf16.mxu0 0
            %3501 = vmatpush1.bf16.msra.mxu0 %v3477
            %3502 = vmatprep.subr.bf16.mxu0 0
            %3503 = vmatpush1.bf16.msra.mxu0 %v3476
            %3504 = vmatprep.subr.bf16.mxu0 0
            %3505 = vmatpush2.bf16.msra.mxu0 0
            %3506 = vmatprep.subr.bf16.mxu0 0
            %3507 = vmatpush2.bf16.msra.mxu0 0
            %3508 = vmatprep.subr.bf16.mxu0 0
            %3509 = vmatpush2.bf16.msra.mxu0 0
            %3510 = vmatprep.subr.bf16.mxu0 0
            %3511 = vmatpush2.bf16.msra.mxu0 0
            %3512 = vmatprep.subr.bf16.mxu0 0
            %3513 = vmatpush2.bf16.msra.mxu0 0
            %3514 = vmatprep.subr.bf16.mxu0 0
            %3515 = vmatpush2.bf16.msra.mxu0 0
            %3516 = vmatprep.subr.bf16.mxu0 0
            %3517 = vmatpush2.bf16.msra.mxu0 0
            %3518 = vmatprep.subr.bf16.mxu0 0
            %3519 = vmatpush2.bf16.msra.mxu0 0
            %3520 = vmatprep.mubr.bf16.mxu0 0
            %3521 = vmatmul.mubr.bf16.gmra.mxu0 %v3486
            %v3522 = vpop.f32.mrf.mxu0
            %v3523 = vadd.f32 %v3483, %v3522
            %v3524 = vpop.f32.mrf.mxu0
            %v3525 = vpop.f32.mrf.mxu0
            %v3526 = vpop.f32.mrf.mxu0
            %3527 = vdwg.mxu0
            %3528 = vst [vmem:[#allocation18] sm:$0xff] %v3523
        $region180: #{tpu_custom_call.1} parent=75 // pred_fallthru
          _
        // Predicated region
        $region253: #{tpu_custom_call.1} parent=75 // pred_check
          %p3529 = pneg %p411
        $region254: #{tpu_custom_call.1} parent=75 // pred_check_branch
          %3531 = sbr.rel (%p3529) target = $region256
        $region255: #{tpu_custom_call.1} parent=75 // pred_region
          %s3533 = ssub.s32 128, 128
          %3534 = vsyncadd [#allocation9], %s3533
          %s3536 = sshll.u32 [#allocation18], 4
          %s3537 = int_to_ptr.vmem [resolvable:$true] %s3536
          %3539 = dma.vmem_to_hbm [thread:$0]  %s3537, 128, %s20, [#allocation9]
        $region256: #{tpu_custom_call.1} parent=75 // pred_fallthru
          _
        // Predicated region
        $region257: #{tpu_custom_call.1} parent=75 // pred_check
          %p3540 = pneg %p411
        $region258: #{tpu_custom_call.1} parent=75 // pred_check_branch
          %3542 = sbr.rel (%p3540) target = $region260
        $region259: #{tpu_custom_call.1} parent=75 // pred_region
          %3543 = dma.done [#allocation9], 128
        $region260: #{tpu_custom_call.1} parent=75 // pred_fallthru
          _
      $region76: #{tpu_custom_call.1} parent=5 // pred_fallthru
        _
      %p3544 = scmp.le.s32.totalorder 2, %s39
      // Predicated region
      $region261: #{tpu_custom_call.1} parent=5 // pred_check
        %p3545 = pneg %p3544
      $region262: #{tpu_custom_call.1} parent=5 // pred_check_branch
        %3547 = sbr.rel (%p3545) target = $region264
      $region263: #{tpu_custom_call.1} parent=5 // pred_region
        %s3548 = ssub.s32 %s39, 2
      $region264: #{tpu_custom_call.1} parent=5 // pred_fallthru
        _
    $region6: #{tpu_custom_call.1} parent=1 // loop_footer
      %s43 = sadd.s32 1, %s39
    $region7: #{tpu_custom_call.1} parent=1 // loop_footer_branch
      %38 = sbr.rel target = $region3
    $region8: #{tpu_custom_call.1} parent=1 // loop_exit
      _
    %3549 = vsyncpa [#allocation8], 1
    %s3550 = scalar_lea.sflag [#allocation8], 1
    %3551 = vsyncpa %s3550, 1
    %3552 = vsyncpa [#allocation11], 1
    %s3553 = scalar_lea.sflag [#allocation11], 1
    %3554 = vsyncpa %s3553, 1
    %3555 = vsyncpa [#allocation14], 1
    %s3556 = scalar_lea.sflag [#allocation14], 1
    %3557 = vsyncpa %s3556, 1
    %3558 = vsyncpa [#allocation17], 1
    %s3559 = scalar_lea.sflag [#allocation17], 1
    %3560 = vsyncpa %s3559, 1
    %3561 = vsyncpa [#allocation9], 1
    %s3562 = scalar_lea.sflag [#allocation9], 1
    %3563 = vsyncpa %s3562, 1

</llo_original>
